<compile_context>
chip_gen: v5e
topology: v5e:2x2
jax: 0.10.0
libtpu: 0.0.40
codegen_flags: <defaults>
</compile_context>

<pallas_src>
import jax
import jax.numpy as jnp
from jax import lax
from jax.experimental import pallas as pl
from jax.experimental.pallas import tpu as pltpu

WIDTH = 128
IN_DIM = 2
OUT_DIM = 1
N_HIDDEN = 5           # number of (128,128) hidden layers (layers 2..6)
LANE = 128
MAX_BLOCK_B = 2048     # max batch tile (lane) size


def _silu(x):
    # x * sigmoid(x); logistic goes to the EUP, the mul to the VPU.
    return x * lax.logistic(x)


def _mlp_kernel(x_ref, w1t_ref, wht_ref, w7_ref, b_ref, out_ref):
    """One batch tile of the full forward pass, feature-major layout.

    x_ref  : (2, TB)         input tile, batch on lanes
    w1t_ref: (128, 2)        layer-1 weight, transposed
    wht_ref: (5, 128, 128)   stacked hidden weights (layers 2..6), transposed, bf16
    w7_ref : (128, 1)        layer-7 weight column
    b_ref  : (7, 128, 1)     stacked bias columns (row 6 holds b7 at [6,0,0])
    out_ref: (1, TB)         lane-dense output row
    """
    x = x_ref[...]                                   # (2, TB) f32
    w1t = w1t_ref[...]                               # (128, 2) f32

    # Layer 1: input dim is only 2 -> two outer-product FMAs on the VPU
    # instead of a zero-padded MXU matmul.
    h = w1t[:, 0:1] * x[0:1, :] + w1t[:, 1:2] * x[1:2, :] + b_ref[0]
    h = _silu(h)                                     # (128, TB) f32

    # Layers 2..6: bf16 (128,128) @ (128,TB) on the MXU, f32 accumulation,
    # bias-add + SiLU in f32 on EUP/VPU.
    def hidden_layer(l, h):
        z = jnp.dot(wht_ref[l], h.astype(jnp.bfloat16),
                    preferred_element_type=jnp.float32)
        return _silu(z + b_ref[l + 1])

    h = lax.fori_loop(0, N_HIDDEN, hidden_layer, h, unroll=True)

    # Layer 7: single output feature -> mul + sublane reduction (stays off the
    # MXU), result is already a lane-dense (1, TB) row.
    b7 = b_ref[N_HIDDEN + 1][0:1, :]                 # (1, 1)
    out_ref[...] = jnp.sum(w7_ref[...] * h, axis=0, keepdims=True) + b7


def init_params(key):
    """Deterministic init mimicking torch.nn.Linear's default U(+-1/sqrt(fan_in))."""
    dims = [(IN_DIM, WIDTH)] + [(WIDTH, WIDTH)] * N_HIDDEN + [(WIDTH, OUT_DIM)]
    params = []
    for fan_in, fan_out in dims:
        key, kw, kb = jax.random.split(key, 3)
        bound = 1.0 / jnp.sqrt(jnp.float32(fan_in))
        w = jax.random.uniform(kw, (fan_in, fan_out), jnp.float32, -bound, bound)
        b = jax.random.uniform(kb, (fan_out,), jnp.float32, -bound, bound)
        params.append((w, b))
    return params


def prepare_params(params):
    """One-time packing of the 7 (w, b) pairs into kernel-friendly arrays.

    Kept OUT of the jitted forward path.  Hidden weights are transposed (for
    the feature-major layout) and pre-cast to bf16 once.
    """
    w1t = params[0][0].T.astype(jnp.float32)                          # (128, 2)
    wht = jnp.stack([w.T for (w, _) in params[1:1 + N_HIDDEN]])        # (5,128,128)
    wht = wht.astype(jnp.bfloat16)
    w7c = params[-1][0].astype(jnp.float32)                            # (128, 1)
    b = jnp.zeros((N_HIDDEN + 2, WIDTH, 1), jnp.float32)
    for i in range(N_HIDDEN + 1):
        b = b.at[i, :, 0].set(params[i][1])
    b = b.at[N_HIDDEN + 1, 0, 0].set(params[-1][1][0])
    return w1t, wht, w7c, b


def _round_up(n, m):
    return ((n + m - 1) // m) * m


@jax.jit
def neural_net_forward(x, packed):
    """x: (B, 2) float32 -> (B, 1) float32, matching the PyTorch module."""
    w1t, wht, w7c, b = packed
    B = x.shape[0]

    # Batch tile: multiple of 128 lanes (lane-dense blocks), capped at
    # MAX_BLOCK_B, and ~ceil(B/2) so there are >=2 even blocks when B > 128
    # (lets v7x's two TensorCores split the "parallel" grid axis).
    half = (B + 1) // 2
    tb = max(LANE, min(MAX_BLOCK_B, _round_up(half, LANE)))
    n_blocks = pl.cdiv(B, tb)
    bp = n_blocks * tb

    x_pad = x if bp == B else jnp.pad(x, ((0, bp - B), (0, 0)))
    xt = x_pad.T                                      # (2, bp) lane-dense input

    flops = 2 * bp * WIDTH * (IN_DIM + N_HIDDEN * WIDTH + OUT_DIM)
    transcendentals = (N_HIDDEN + 1) * bp * WIDTH
    weight_bytes = (N_HIDDEN * WIDTH * WIDTH * 2          # bf16 hidden weights
                    + WIDTH * IN_DIM * 4 + WIDTH * 4      # w1t, w7
                    + (N_HIDDEN + 2) * WIDTH * 4)         # biases
    bytes_accessed = bp * (IN_DIM + OUT_DIM) * 4 + weight_bytes

    out = pl.pallas_call(
        _mlp_kernel,
        out_shape=jax.ShapeDtypeStruct((1, bp), jnp.float32),
        grid=(n_blocks,),
        in_specs=[
            pl.BlockSpec((IN_DIM, tb), lambda i: (0, i)),                  # x tile
            pl.BlockSpec((WIDTH, IN_DIM), lambda i: (0, 0)),               # w1t (pinned)
            pl.BlockSpec((N_HIDDEN, WIDTH, WIDTH), lambda i: (0, 0, 0)),   # wht (pinned)
            pl.BlockSpec((WIDTH, 1), lambda i: (0, 0)),                    # w7 (pinned)
            pl.BlockSpec((N_HIDDEN + 2, WIDTH, 1), lambda i: (0, 0, 0)),   # biases
        ],
        out_specs=pl.BlockSpec((1, tb), lambda i: (0, i)),
        compiler_params=pltpu.CompilerParams(
            dimension_semantics=("parallel",)),
        cost_estimate=pl.CostEstimate(
            flops=flops,
            transcendentals=transcendentals,
            bytes_accessed=bytes_accessed),
    )(xt, w1t, wht, w7c, b)

    return out[0, :B][:, None]


def _reference_forward_f32(x, params):
    """Pure-f32 reference (exact PyTorch-module semantics)."""
    h = x
    for i, (w, b) in enumerate(params):
        h = h @ w + b
        if i < len(params) - 1:
            h = jax.nn.silu(h)
    return h


def _reference_forward_matched(x, packed):
    """Reference matching the kernel's precision (bf16 MXU operands, f32 accum)."""
    w1t, wht, w7c, b = packed
    xt = x.T
    h = w1t[:, 0:1] * xt[0:1, :] + w1t[:, 1:2] * xt[1:2, :] + b[0]
    h = jax.nn.silu(h)
    for l in range(N_HIDDEN):
        z = jnp.dot(wht[l], h.astype(jnp.bfloat16),
                    preferred_element_type=jnp.float32)
        h = jax.nn.silu(z + b[l + 1])
    out = jnp.sum(w7c * h, axis=0, keepdims=True) + b[N_HIDDEN + 1][0:1, :]
    return out.T


if __name__ == "__main__":
    key = jax.random.PRNGKey(0)
    key, kx = jax.random.split(key)

    params = init_params(key)
    packed = prepare_params(params)

    # Small batch (single tile).
    B = 8
    x = jax.random.normal(kx, (B, IN_DIM), jnp.float32)
    y = jax.block_until_ready(neural_net_forward(x, packed))
    assert y.shape == (B, OUT_DIM), y.shape
    y_match = _reference_forward_matched(x, packed)
    assert jnp.allclose(y, y_match, atol=1e-3, rtol=1e-3)
    y_f32 = _reference_forward_f32(x, params)
    assert jnp.allclose(y, y_f32, atol=5e-2, rtol=5e-2)

    # Larger batch exercising the multi-tile (even-block) grid and ragged tail.
    key, kx2 = jax.random.split(key)
    B2 = 1000
    x2 = jax.random.normal(kx2, (B2, IN_DIM), jnp.float32)
    y2 = jax.block_until_ready(neural_net_forward(x2, packed))
    assert y2.shape == (B2, OUT_DIM), y2.shape
    y2_match = _reference_forward_matched(x2, packed)
    assert jnp.allclose(y2, y2_match, atol=1e-3, rtol=1e-3)
    y2_f32 = _reference_forward_f32(x2, params)
    assert jnp.allclose(y2, y2_f32, atol=5e-2, rtol=5e-2)

    print("KERNEL_OK")
</pallas_src>

<mosaic_0001>
module attributes {stable_mosaic.version = 11 : i64} {
  func.func @_mlp_kernel(%arg0: i32, %arg1: memref<2x128xf32, #tpu.memory_space<vmem>>, %arg2: memref<128x2xf32, #tpu.memory_space<vmem>>, %arg3: memref<5x128x128xbf16, #tpu.memory_space<vmem>>, %arg4: memref<128x1xf32, #tpu.memory_space<vmem>>, %arg5: memref<7x128x1xf32, #tpu.memory_space<vmem>>, %arg6: memref<1x128xf32, #tpu.memory_space<vmem>>) attributes {dimension_semantics = [#tpu.dimension_semantics<parallel>], iteration_bounds = array<i64: 1>, scalar_prefetch = 0 : i64, scratch_operands = 0 : i64, tpu.core_type = #tpu.core_type<tc>, window_params = [{transform_indices = @transform_0, window_bounds = array<i64: 2, 128>}, {pipeline_mode = #tpu.pipeline_mode<synchronous>, transform_indices = @transform_1, window_bounds = array<i64: 128, 2>}, {pipeline_mode = #tpu.pipeline_mode<synchronous>, transform_indices = @transform_2, window_bounds = array<i64: 5, 128, 128>}, {pipeline_mode = #tpu.pipeline_mode<synchronous>, transform_indices = @transform_3, window_bounds = array<i64: 128, 1>}, {pipeline_mode = #tpu.pipeline_mode<synchronous>, transform_indices = @transform_4, window_bounds = array<i64: 7, 128, 1>}, {transform_indices = @transform_5, window_bounds = array<i64: 1, 128>}]} {
    %c0 = arith.constant 0 : index
    %c0_0 = arith.constant 0 : index
    %0 = vector.load %arg1[%c0, %c0_0] : memref<2x128xf32, #tpu.memory_space<vmem>>, vector<2x128xf32>
    %c0_1 = arith.constant 0 : index
    %c0_2 = arith.constant 0 : index
    %1 = vector.load %arg2[%c0_1, %c0_2] : memref<128x2xf32, #tpu.memory_space<vmem>>, vector<128x2xf32>
    %2 = vector.extract_strided_slice %1 {offsets = [0, 0], sizes = [128, 1], strides = [1, 1]} : vector<128x2xf32> to vector<128x1xf32>
    %3 = vector.extract_strided_slice %0 {offsets = [0, 0], sizes = [1, 128], strides = [1, 1]} : vector<2x128xf32> to vector<1x128xf32>
    %4 = vector.broadcast %2 : vector<128x1xf32> to vector<128x128xf32>
    %5 = vector.broadcast %3 : vector<1x128xf32> to vector<128x128xf32>
    %6 = arith.mulf %4, %5 : vector<128x128xf32>
    %7 = vector.extract_strided_slice %1 {offsets = [0, 1], sizes = [128, 1], strides = [1, 1]} : vector<128x2xf32> to vector<128x1xf32>
    %8 = vector.extract_strided_slice %0 {offsets = [1, 0], sizes = [1, 128], strides = [1, 1]} : vector<2x128xf32> to vector<1x128xf32>
    %9 = vector.broadcast %7 : vector<128x1xf32> to vector<128x128xf32>
    %10 = vector.broadcast %8 : vector<1x128xf32> to vector<128x128xf32>
    %11 = arith.mulf %9, %10 : vector<128x128xf32>
    %12 = arith.addf %6, %11 : vector<128x128xf32>
    %c0_3 = arith.constant 0 : index
    %c0_4 = arith.constant 0 : index
    %c0_5 = arith.constant 0 : index
    %13 = vector.load %arg5[%c0_3, %c0_4, %c0_5] : memref<7x128x1xf32, #tpu.memory_space<vmem>>, vector<1x128x1xf32>
    %14 = vector.shape_cast %13 : vector<1x128x1xf32> to vector<128x1xf32>
    %15 = vector.broadcast %14 : vector<128x1xf32> to vector<128x128xf32>
    %16 = arith.addf %12, %15 : vector<128x128xf32>
    %17 = arith.negf %16 : vector<128x128xf32>
    %18 = math.exp %17 : vector<128x128xf32>
    %cst = arith.constant 1.000000e+00 : f32
    %19 = vector.broadcast %cst : f32 to vector<128x128xf32>
    %20 = arith.addf %19, %18 : vector<128x128xf32>
    %21 = arith.divf %19, %20 : vector<128x128xf32>
    %22 = arith.mulf %16, %21 : vector<128x128xf32>
    %c0_i32 = arith.constant 0 : i32
    %23 = arith.index_cast %c0_i32 : i32 to index
    %c0_6 = arith.constant 0 : index
    %c0_7 = arith.constant 0 : index
    %24 = vector.load %arg3[%23, %c0_6, %c0_7] : memref<5x128x128xbf16, #tpu.memory_space<vmem>>, vector<1x128x128xbf16>
    %25 = vector.shape_cast %24 : vector<1x128x128xbf16> to vector<128x128xbf16>
    %26 = arith.truncf %22 : vector<128x128xf32> to vector<128x128xbf16>
    %cst_8 = arith.constant dense<0.000000e+00> : vector<128x128xf32>
    %27 = tpu.matmul %25, %26, %cst_8 {dimension_numbers = #tpu.dot_dimension_numbers<[1], [0], [0], [1], [0, 0, 1, 1], [], []>} : vector<128x128xbf16>, vector<128x128xbf16>, vector<128x128xf32> -> vector<128x128xf32>
    %c1_i32 = arith.constant 1 : i32
    %28 = arith.addi %c0_i32, %c1_i32 : i32
    %29 = arith.index_cast %28 : i32 to index
    %c0_9 = arith.constant 0 : index
    %c0_10 = arith.constant 0 : index
    %30 = vector.load %arg5[%29, %c0_9, %c0_10] : memref<7x128x1xf32, #tpu.memory_space<vmem>>, vector<1x128x1xf32>
    %31 = vector.shape_cast %30 : vector<1x128x1xf32> to vector<128x1xf32>
    %32 = vector.broadcast %31 : vector<128x1xf32> to vector<128x128xf32>
    %33 = arith.addf %27, %32 : vector<128x128xf32>
    %34 = arith.negf %33 : vector<128x128xf32>
    %35 = math.exp %34 : vector<128x128xf32>
    %cst_11 = arith.constant 1.000000e+00 : f32
    %36 = vector.broadcast %cst_11 : f32 to vector<128x128xf32>
    %37 = arith.addf %36, %35 : vector<128x128xf32>
    %38 = arith.divf %36, %37 : vector<128x128xf32>
    %39 = arith.mulf %33, %38 : vector<128x128xf32>
    %c1_i32_12 = arith.constant 1 : i32
    %40 = arith.index_cast %c1_i32_12 : i32 to index
    %c0_13 = arith.constant 0 : index
    %c0_14 = arith.constant 0 : index
    %41 = vector.load %arg3[%40, %c0_13, %c0_14] : memref<5x128x128xbf16, #tpu.memory_space<vmem>>, vector<1x128x128xbf16>
    %42 = vector.shape_cast %41 : vector<1x128x128xbf16> to vector<128x128xbf16>
    %43 = arith.truncf %39 : vector<128x128xf32> to vector<128x128xbf16>
    %cst_15 = arith.constant dense<0.000000e+00> : vector<128x128xf32>
    %44 = tpu.matmul %42, %43, %cst_15 {dimension_numbers = #tpu.dot_dimension_numbers<[1], [0], [0], [1], [0, 0, 1, 1], [], []>} : vector<128x128xbf16>, vector<128x128xbf16>, vector<128x128xf32> -> vector<128x128xf32>
    %c1_i32_16 = arith.constant 1 : i32
    %45 = arith.addi %c1_i32_12, %c1_i32_16 : i32
    %46 = arith.index_cast %45 : i32 to index
    %c0_17 = arith.constant 0 : index
    %c0_18 = arith.constant 0 : index
    %47 = vector.load %arg5[%46, %c0_17, %c0_18] : memref<7x128x1xf32, #tpu.memory_space<vmem>>, vector<1x128x1xf32>
    %48 = vector.shape_cast %47 : vector<1x128x1xf32> to vector<128x1xf32>
    %49 = vector.broadcast %48 : vector<128x1xf32> to vector<128x128xf32>
    %50 = arith.addf %44, %49 : vector<128x128xf32>
    %51 = arith.negf %50 : vector<128x128xf32>
    %52 = math.exp %51 : vector<128x128xf32>
    %cst_19 = arith.constant 1.000000e+00 : f32
    %53 = vector.broadcast %cst_19 : f32 to vector<128x128xf32>
    %54 = arith.addf %53, %52 : vector<128x128xf32>
    %55 = arith.divf %53, %54 : vector<128x128xf32>
    %56 = arith.mulf %50, %55 : vector<128x128xf32>
    %c2_i32 = arith.constant 2 : i32
    %57 = arith.index_cast %c2_i32 : i32 to index
    %c0_20 = arith.constant 0 : index
    %c0_21 = arith.constant 0 : index
    %58 = vector.load %arg3[%57, %c0_20, %c0_21] : memref<5x128x128xbf16, #tpu.memory_space<vmem>>, vector<1x128x128xbf16>
    %59 = vector.shape_cast %58 : vector<1x128x128xbf16> to vector<128x128xbf16>
    %60 = arith.truncf %56 : vector<128x128xf32> to vector<128x128xbf16>
    %cst_22 = arith.constant dense<0.000000e+00> : vector<128x128xf32>
    %61 = tpu.matmul %59, %60, %cst_22 {dimension_numbers = #tpu.dot_dimension_numbers<[1], [0], [0], [1], [0, 0, 1, 1], [], []>} : vector<128x128xbf16>, vector<128x128xbf16>, vector<128x128xf32> -> vector<128x128xf32>
    %c1_i32_23 = arith.constant 1 : i32
    %62 = arith.addi %c2_i32, %c1_i32_23 : i32
    %63 = arith.index_cast %62 : i32 to index
    %c0_24 = arith.constant 0 : index
    %c0_25 = arith.constant 0 : index
    %64 = vector.load %arg5[%63, %c0_24, %c0_25] : memref<7x128x1xf32, #tpu.memory_space<vmem>>, vector<1x128x1xf32>
    %65 = vector.shape_cast %64 : vector<1x128x1xf32> to vector<128x1xf32>
    %66 = vector.broadcast %65 : vector<128x1xf32> to vector<128x128xf32>
    %67 = arith.addf %61, %66 : vector<128x128xf32>
    %68 = arith.negf %67 : vector<128x128xf32>
    %69 = math.exp %68 : vector<128x128xf32>
    %cst_26 = arith.constant 1.000000e+00 : f32
    %70 = vector.broadcast %cst_26 : f32 to vector<128x128xf32>
    %71 = arith.addf %70, %69 : vector<128x128xf32>
    %72 = arith.divf %70, %71 : vector<128x128xf32>
    %73 = arith.mulf %67, %72 : vector<128x128xf32>
    %c3_i32 = arith.constant 3 : i32
    %74 = arith.index_cast %c3_i32 : i32 to index
    %c0_27 = arith.constant 0 : index
    %c0_28 = arith.constant 0 : index
    %75 = vector.load %arg3[%74, %c0_27, %c0_28] : memref<5x128x128xbf16, #tpu.memory_space<vmem>>, vector<1x128x128xbf16>
    %76 = vector.shape_cast %75 : vector<1x128x128xbf16> to vector<128x128xbf16>
    %77 = arith.truncf %73 : vector<128x128xf32> to vector<128x128xbf16>
    %cst_29 = arith.constant dense<0.000000e+00> : vector<128x128xf32>
    %78 = tpu.matmul %76, %77, %cst_29 {dimension_numbers = #tpu.dot_dimension_numbers<[1], [0], [0], [1], [0, 0, 1, 1], [], []>} : vector<128x128xbf16>, vector<128x128xbf16>, vector<128x128xf32> -> vector<128x128xf32>
    %c1_i32_30 = arith.constant 1 : i32
    %79 = arith.addi %c3_i32, %c1_i32_30 : i32
    %80 = arith.index_cast %79 : i32 to index
    %c0_31 = arith.constant 0 : index
    %c0_32 = arith.constant 0 : index
    %81 = vector.load %arg5[%80, %c0_31, %c0_32] : memref<7x128x1xf32, #tpu.memory_space<vmem>>, vector<1x128x1xf32>
    %82 = vector.shape_cast %81 : vector<1x128x1xf32> to vector<128x1xf32>
    %83 = vector.broadcast %82 : vector<128x1xf32> to vector<128x128xf32>
    %84 = arith.addf %78, %83 : vector<128x128xf32>
    %85 = arith.negf %84 : vector<128x128xf32>
    %86 = math.exp %85 : vector<128x128xf32>
    %cst_33 = arith.constant 1.000000e+00 : f32
    %87 = vector.broadcast %cst_33 : f32 to vector<128x128xf32>
    %88 = arith.addf %87, %86 : vector<128x128xf32>
    %89 = arith.divf %87, %88 : vector<128x128xf32>
    %90 = arith.mulf %84, %89 : vector<128x128xf32>
    %c4_i32 = arith.constant 4 : i32
    %91 = arith.index_cast %c4_i32 : i32 to index
    %c0_34 = arith.constant 0 : index
    %c0_35 = arith.constant 0 : index
    %92 = vector.load %arg3[%91, %c0_34, %c0_35] : memref<5x128x128xbf16, #tpu.memory_space<vmem>>, vector<1x128x128xbf16>
    %93 = vector.shape_cast %92 : vector<1x128x128xbf16> to vector<128x128xbf16>
    %94 = arith.truncf %90 : vector<128x128xf32> to vector<128x128xbf16>
    %cst_36 = arith.constant dense<0.000000e+00> : vector<128x128xf32>
    %95 = tpu.matmul %93, %94, %cst_36 {dimension_numbers = #tpu.dot_dimension_numbers<[1], [0], [0], [1], [0, 0, 1, 1], [], []>} : vector<128x128xbf16>, vector<128x128xbf16>, vector<128x128xf32> -> vector<128x128xf32>
    %c1_i32_37 = arith.constant 1 : i32
    %96 = arith.addi %c4_i32, %c1_i32_37 : i32
    %97 = arith.index_cast %96 : i32 to index
    %c0_38 = arith.constant 0 : index
    %c0_39 = arith.constant 0 : index
    %98 = vector.load %arg5[%97, %c0_38, %c0_39] : memref<7x128x1xf32, #tpu.memory_space<vmem>>, vector<1x128x1xf32>
    %99 = vector.shape_cast %98 : vector<1x128x1xf32> to vector<128x1xf32>
    %100 = vector.broadcast %99 : vector<128x1xf32> to vector<128x128xf32>
    %101 = arith.addf %95, %100 : vector<128x128xf32>
    %102 = arith.negf %101 : vector<128x128xf32>
    %103 = math.exp %102 : vector<128x128xf32>
    %cst_40 = arith.constant 1.000000e+00 : f32
    %104 = vector.broadcast %cst_40 : f32 to vector<128x128xf32>
    %105 = arith.addf %104, %103 : vector<128x128xf32>
    %106 = arith.divf %104, %105 : vector<128x128xf32>
    %107 = arith.mulf %101, %106 : vector<128x128xf32>
    %c5_i32 = arith.constant 5 : i32
    %c6 = arith.constant 6 : index
    %c0_41 = arith.constant 0 : index
    %c0_42 = arith.constant 0 : index
    %108 = vector.load %arg5[%c6, %c0_41, %c0_42] : memref<7x128x1xf32, #tpu.memory_space<vmem>>, vector<1x128x1xf32>
    %109 = vector.shape_cast %108 : vector<1x128x1xf32> to vector<128x1xf32>
    %110 = vector.extract_strided_slice %109 {offsets = [0, 0], sizes = [1, 1], strides = [1, 1]} : vector<128x1xf32> to vector<1x1xf32>
    %c0_43 = arith.constant 0 : index
    %c0_44 = arith.constant 0 : index
    %111 = vector.load %arg4[%c0_43, %c0_44] : memref<128x1xf32, #tpu.memory_space<vmem>>, vector<128x1xf32>
    %112 = vector.broadcast %111 : vector<128x1xf32> to vector<128x128xf32>
    %113 = arith.mulf %112, %107 : vector<128x128xf32>
    %cst_45 = arith.constant dense<0.000000e+00> : vector<128xf32>
    %114 = vector.multi_reduction <add>, %113, %cst_45 [0] : vector<128x128xf32> to vector<128xf32>
    %115 = vector.shape_cast %114 : vector<128xf32> to vector<1x128xf32>
    %116 = vector.broadcast %110 : vector<1x1xf32> to vector<1x128xf32>
    %117 = arith.addf %115, %116 : vector<1x128xf32>
    %c0_46 = arith.constant 0 : index
    %c0_47 = arith.constant 0 : index
    %118 = vector.load %arg6[%c0_46, %c0_47] : memref<1x128xf32, #tpu.memory_space<vmem>>, vector<1x128xf32>
    tpu.vector_store %arg6[%c0_46, %c0_47], %117 {strides = array<i32>} : memref<1x128xf32, #tpu.memory_space<vmem>>, vector<1x128xf32>,
    return
  }
  func.func @transform_0(%arg0: i32) -> (i32, i32) {
    %c0_i32 = arith.constant 0 : i32
    %c0_i32_0 = arith.constant 0 : i32
    return %c0_i32, %arg0 : i32, i32
  }
  func.func @transform_1(%arg0: i32) -> (i32, i32) {
    %c0_i32 = arith.constant 0 : i32
    %c0_i32_0 = arith.constant 0 : i32
    %c0_i32_1 = arith.constant 0 : i32
    return %c0_i32, %c0_i32_0 : i32, i32
  }
  func.func @transform_2(%arg0: i32) -> (i32, i32, i32) {
    %c0_i32 = arith.constant 0 : i32
    %c0_i32_0 = arith.constant 0 : i32
    %c0_i32_1 = arith.constant 0 : i32
    %c0_i32_2 = arith.constant 0 : i32
    return %c0_i32, %c0_i32_0, %c0_i32_1 : i32, i32, i32
  }
  func.func @transform_3(%arg0: i32) -> (i32, i32) {
    %c0_i32 = arith.constant 0 : i32
    %c0_i32_0 = arith.constant 0 : i32
    %c0_i32_1 = arith.constant 0 : i32
    return %c0_i32, %c0_i32_0 : i32, i32
  }
  func.func @transform_4(%arg0: i32) -> (i32, i32, i32) {
    %c0_i32 = arith.constant 0 : i32
    %c0_i32_0 = arith.constant 0 : i32
    %c0_i32_1 = arith.constant 0 : i32
    %c0_i32_2 = arith.constant 0 : i32
    return %c0_i32, %c0_i32_0, %c0_i32_1 : i32, i32, i32
  }
  func.func @transform_5(%arg0: i32) -> (i32, i32) {
    %c0_i32 = arith.constant 0 : i32
    %c0_i32_0 = arith.constant 0 : i32
    return %c0_i32, %arg0 : i32, i32
  }
}

</mosaic_0001>

<llo_original>
// kernel: neural_net_forward.1
$region0: #{neural_net_forward.1}
  #allocation0 [shape = 'u32[]', space=smem, size = 0x4, offset = 0x4, fixed_abs, tag = 'smem constant byte address 0x4 - core index']
  #allocation1 [shape = 'u32[72,128]{1,0:T(1,128)}', space=vmem, size = 0x9000, scoped, tag = 'internal scratch']
  %s0 = inlined_call_operand.vmem [shape: f32[2,128], index: 0, kind: input, shape index: {}]
  %s1 = inlined_call_operand.vmem [shape: f32[128,2], index: 1, kind: input, shape index: {}]
  %s2 = inlined_call_operand.vmem [shape: bf16[5,128,128], index: 2, kind: input, shape index: {}]
  %s3 = inlined_call_operand.vmem [shape: f32[128,1], index: 3, kind: input, shape index: {}]
  %s4 = inlined_call_operand.vmem [shape: f32[7,128,1], index: 4, kind: input, shape index: {}]
  %s5 = inlined_call_operand.vmem [shape: f32[1,128], index: 5, kind: output, shape index: {}]
  %s6 = sld [smem:[#allocation0]]
  $region30: #{neural_net_forward.1} parent=0
    _
  %s8 = ssub.s32 1, %s6
  %s9 = scalar_select 0, %s8, %s6
  // Predicated region
  $region2: #{neural_net_forward.1} parent=0 // pred_check
    _
  $region3: #{neural_net_forward.1} parent=0 // pred_check_branch
    %11 = sbr.rel (0) target = $region5
  $region4: #{neural_net_forward.1} parent=0 // pred_region
    _
  $region5: #{neural_net_forward.1} parent=0 // pred_fallthru
    _
  // Predicated region
  $region6: #{neural_net_forward.1} parent=0 // pred_check
    _
  $region7: #{neural_net_forward.1} parent=0 // pred_check_branch
    %13 = sbr.rel (0) target = $region9
  $region8: #{neural_net_forward.1} parent=0 // pred_region
    _
  $region9: #{neural_net_forward.1} parent=0 // pred_fallthru
    _
  // Predicated region
  $region10: #{neural_net_forward.1} parent=0 // pred_check
    _
  $region11: #{neural_net_forward.1} parent=0 // pred_check_branch
    %15 = sbr.rel (0) target = $region13
  $region12: #{neural_net_forward.1} parent=0 // pred_region
    _
  $region13: #{neural_net_forward.1} parent=0 // pred_fallthru
    _
  // Predicated region
  $region14: #{neural_net_forward.1} parent=0 // pred_check
    _
  $region15: #{neural_net_forward.1} parent=0 // pred_check_branch
    %17 = sbr.rel (0) target = $region17
  $region16: #{neural_net_forward.1} parent=0 // pred_region
    _
  $region17: #{neural_net_forward.1} parent=0 // pred_fallthru
    _
  // Predicated region
  $region18: #{neural_net_forward.1} parent=0 // pred_check
    _
  $region19: #{neural_net_forward.1} parent=0 // pred_check_branch
    %19 = sbr.rel (0) target = $region21
  $region20: #{neural_net_forward.1} parent=0 // pred_region
    _
  $region21: #{neural_net_forward.1} parent=0 // pred_fallthru
    _
  %v20 = vld [vmem:[%s0] sm:$0x3]
  %v21 = vld [vmem:[%s1] sm:$0xff]
  %v22 = vld [vmem:[%s1 + $0x8] sm:$0xff]
  %v23 = vld [vmem:[%s1 + $0x10] sm:$0xff]
  %v24 = vld [vmem:[%s1 + $0x18] sm:$0xff]
  %v25 = vld [vmem:[%s1 + $0x20] sm:$0xff]
  %v26 = vld [vmem:[%s1 + $0x28] sm:$0xff]
  %v27 = vld [vmem:[%s1 + $0x30] sm:$0xff]
  %v28 = vld [vmem:[%s1 + $0x38] sm:$0xff]
  %v29 = vld [vmem:[%s1 + $0x40] sm:$0xff]
  %v30 = vld [vmem:[%s1 + $0x48] sm:$0xff]
  %v31 = vld [vmem:[%s1 + $0x50] sm:$0xff]
  %v32 = vld [vmem:[%s1 + $0x58] sm:$0xff]
  %v33 = vld [vmem:[%s1 + $0x60] sm:$0xff]
  %v34 = vld [vmem:[%s1 + $0x68] sm:$0xff]
  %v35 = vld [vmem:[%s1 + $0x70] sm:$0xff]
  %v36 = vld [vmem:[%s1 + $0x78] sm:$0xff]
  %38 = vset.pattern.permute.xlu0 0
  %39 = vperm.xlu0 %38, %v21
  %v40 = vpop.permute.xlu0 %39
  %43 = vset.pattern.permute.xlu0 0
  %44 = vperm.xlu0 %43, %v22
  %v45 = vpop.permute.xlu0 %44
  %48 = vset.pattern.permute.xlu0 0
  %49 = vperm.xlu0 %48, %v23
  %v50 = vpop.permute.xlu0 %49
  %53 = vset.pattern.permute.xlu0 0
  %54 = vperm.xlu0 %53, %v24
  %v55 = vpop.permute.xlu0 %54
  %58 = vset.pattern.permute.xlu0 0
  %59 = vperm.xlu0 %58, %v25
  %v60 = vpop.permute.xlu0 %59
  %63 = vset.pattern.permute.xlu0 0
  %64 = vperm.xlu0 %63, %v26
  %v65 = vpop.permute.xlu0 %64
  %68 = vset.pattern.permute.xlu0 0
  %69 = vperm.xlu0 %68, %v27
  %v70 = vpop.permute.xlu0 %69
  %73 = vset.pattern.permute.xlu0 0
  %74 = vperm.xlu0 %73, %v28
  %v75 = vpop.permute.xlu0 %74
  %78 = vset.pattern.permute.xlu0 0
  %79 = vperm.xlu0 %78, %v29
  %v80 = vpop.permute.xlu0 %79
  %83 = vset.pattern.permute.xlu0 0
  %84 = vperm.xlu0 %83, %v30
  %v85 = vpop.permute.xlu0 %84
  %88 = vset.pattern.permute.xlu0 0
  %89 = vperm.xlu0 %88, %v31
  %v90 = vpop.permute.xlu0 %89
  %93 = vset.pattern.permute.xlu0 0
  %94 = vperm.xlu0 %93, %v32
  %v95 = vpop.permute.xlu0 %94
  %98 = vset.pattern.permute.xlu0 0
  %99 = vperm.xlu0 %98, %v33
  %v100 = vpop.permute.xlu0 %99
  %103 = vset.pattern.permute.xlu0 0
  %104 = vperm.xlu0 %103, %v34
  %v105 = vpop.permute.xlu0 %104
  %108 = vset.pattern.permute.xlu0 0
  %109 = vperm.xlu0 %108, %v35
  %v110 = vpop.permute.xlu0 %109
  %113 = vset.pattern.permute.xlu0 0
  %114 = vperm.xlu0 %113, %v36
  %v115 = vpop.permute.xlu0 %114
  %v117 = vperm.slane %v20, 0
  %v118 = vmul.f32 %v40, %v117
  %v119 = vmul.f32 %v45, %v117
  %v120 = vmul.f32 %v50, %v117
  %v121 = vmul.f32 %v55, %v117
  %v122 = vmul.f32 %v60, %v117
  %v123 = vmul.f32 %v65, %v117
  %v124 = vmul.f32 %v70, %v117
  %v125 = vmul.f32 %v75, %v117
  %v126 = vmul.f32 %v80, %v117
  %v127 = vmul.f32 %v85, %v117
  %v128 = vmul.f32 %v90, %v117
  %v129 = vmul.f32 %v95, %v117
  %v130 = vmul.f32 %v100, %v117
  %v131 = vmul.f32 %v105, %v117
  %v132 = vmul.f32 %v110, %v117
  %v133 = vmul.f32 %v115, %v117
  %134 = vset.pattern.permute.xlu0 1
  %135 = vperm.xlu0 %134, %v21
  %v136 = vpop.permute.xlu0 %135
  %138 = vset.pattern.permute.xlu0 1
  %139 = vperm.xlu0 %138, %v22
  %v140 = vpop.permute.xlu0 %139
  %142 = vset.pattern.permute.xlu0 1
  %143 = vperm.xlu0 %142, %v23
  %v144 = vpop.permute.xlu0 %143
  %146 = vset.pattern.permute.xlu0 1
  %147 = vperm.xlu0 %146, %v24
  %v148 = vpop.permute.xlu0 %147
  %150 = vset.pattern.permute.xlu0 1
  %151 = vperm.xlu0 %150, %v25
  %v152 = vpop.permute.xlu0 %151
  %154 = vset.pattern.permute.xlu0 1
  %155 = vperm.xlu0 %154, %v26
  %v156 = vpop.permute.xlu0 %155
  %158 = vset.pattern.permute.xlu0 1
  %159 = vperm.xlu0 %158, %v27
  %v160 = vpop.permute.xlu0 %159
  %162 = vset.pattern.permute.xlu0 1
  %163 = vperm.xlu0 %162, %v28
  %v164 = vpop.permute.xlu0 %163
  %166 = vset.pattern.permute.xlu0 1
  %167 = vperm.xlu0 %166, %v29
  %v168 = vpop.permute.xlu0 %167
  %170 = vset.pattern.permute.xlu0 1
  %171 = vperm.xlu0 %170, %v30
  %v172 = vpop.permute.xlu0 %171
  %174 = vset.pattern.permute.xlu0 1
  %175 = vperm.xlu0 %174, %v31
  %v176 = vpop.permute.xlu0 %175
  %178 = vset.pattern.permute.xlu0 1
  %179 = vperm.xlu0 %178, %v32
  %v180 = vpop.permute.xlu0 %179
  %182 = vset.pattern.permute.xlu0 1
  %183 = vperm.xlu0 %182, %v33
  %v184 = vpop.permute.xlu0 %183
  %186 = vset.pattern.permute.xlu0 1
  %187 = vperm.xlu0 %186, %v34
  %v188 = vpop.permute.xlu0 %187
  %190 = vset.pattern.permute.xlu0 1
  %191 = vperm.xlu0 %190, %v35
  %v192 = vpop.permute.xlu0 %191
  %194 = vset.pattern.permute.xlu0 1
  %195 = vperm.xlu0 %194, %v36
  %v196 = vpop.permute.xlu0 %195
  %v198 = vperm.slane %v20, 1
  %v199 = vmul.f32 %v136, %v198
  %v200 = vmul.f32 %v140, %v198
  %v201 = vmul.f32 %v144, %v198
  %v202 = vmul.f32 %v148, %v198
  %v203 = vmul.f32 %v152, %v198
  %v204 = vmul.f32 %v156, %v198
  %v205 = vmul.f32 %v160, %v198
  %v206 = vmul.f32 %v164, %v198
  %v207 = vmul.f32 %v168, %v198
  %v208 = vmul.f32 %v172, %v198
  %v209 = vmul.f32 %v176, %v198
  %v210 = vmul.f32 %v180, %v198
  %v211 = vmul.f32 %v184, %v198
  %v212 = vmul.f32 %v188, %v198
  %v213 = vmul.f32 %v192, %v198
  %v214 = vmul.f32 %v196, %v198
  %v215 = vadd.f32 %v118, %v199
  %v216 = vadd.f32 %v119, %v200
  %v217 = vadd.f32 %v120, %v201
  %v218 = vadd.f32 %v121, %v202
  %v219 = vadd.f32 %v122, %v203
  %v220 = vadd.f32 %v123, %v204
  %v221 = vadd.f32 %v124, %v205
  %v222 = vadd.f32 %v125, %v206
  %v223 = vadd.f32 %v126, %v207
  %v224 = vadd.f32 %v127, %v208
  %v225 = vadd.f32 %v128, %v209
  %v226 = vadd.f32 %v129, %v210
  %v227 = vadd.f32 %v130, %v211
  %v228 = vadd.f32 %v131, %v212
  %v229 = vadd.f32 %v132, %v213
  %v230 = vadd.f32 %v133, %v214
  %v231 = vld [vmem:[%s4] sm:$0xff]
  %v232 = vld [vmem:[%s4 + $0x8] sm:$0xff]
  %v233 = vld [vmem:[%s4 + $0x10] sm:$0xff]
  %v234 = vld [vmem:[%s4 + $0x18] sm:$0xff]
  %v235 = vld [vmem:[%s4 + $0x20] sm:$0xff]
  %v236 = vld [vmem:[%s4 + $0x28] sm:$0xff]
  %v237 = vld [vmem:[%s4 + $0x30] sm:$0xff]
  %v238 = vld [vmem:[%s4 + $0x38] sm:$0xff]
  %v239 = vld [vmem:[%s4 + $0x40] sm:$0xff]
  %v240 = vld [vmem:[%s4 + $0x48] sm:$0xff]
  %v241 = vld [vmem:[%s4 + $0x50] sm:$0xff]
  %v242 = vld [vmem:[%s4 + $0x58] sm:$0xff]
  %v243 = vld [vmem:[%s4 + $0x60] sm:$0xff]
  %v244 = vld [vmem:[%s4 + $0x68] sm:$0xff]
  %v245 = vld [vmem:[%s4 + $0x70] sm:$0xff]
  %v246 = vld [vmem:[%s4 + $0x78] sm:$0xff]
  %248 = vset.pattern.permute.xlu0 0
  %249 = vperm.xlu0 %248, %v231
  %v250 = vpop.permute.xlu0 %249
  %253 = vset.pattern.permute.xlu0 0
  %254 = vperm.xlu0 %253, %v232
  %v255 = vpop.permute.xlu0 %254
  %258 = vset.pattern.permute.xlu0 0
  %259 = vperm.xlu0 %258, %v233
  %v260 = vpop.permute.xlu0 %259
  %263 = vset.pattern.permute.xlu0 0
  %264 = vperm.xlu0 %263, %v234
  %v265 = vpop.permute.xlu0 %264
  %268 = vset.pattern.permute.xlu0 0
  %269 = vperm.xlu0 %268, %v235
  %v270 = vpop.permute.xlu0 %269
  %273 = vset.pattern.permute.xlu0 0
  %274 = vperm.xlu0 %273, %v236
  %v275 = vpop.permute.xlu0 %274
  %278 = vset.pattern.permute.xlu0 0
  %279 = vperm.xlu0 %278, %v237
  %v280 = vpop.permute.xlu0 %279
  %283 = vset.pattern.permute.xlu0 0
  %284 = vperm.xlu0 %283, %v238
  %v285 = vpop.permute.xlu0 %284
  %288 = vset.pattern.permute.xlu0 0
  %289 = vperm.xlu0 %288, %v239
  %v290 = vpop.permute.xlu0 %289
  %293 = vset.pattern.permute.xlu0 0
  %294 = vperm.xlu0 %293, %v240
  %v295 = vpop.permute.xlu0 %294
  %298 = vset.pattern.permute.xlu0 0
  %299 = vperm.xlu0 %298, %v241
  %v300 = vpop.permute.xlu0 %299
  %303 = vset.pattern.permute.xlu0 0
  %304 = vperm.xlu0 %303, %v242
  %v305 = vpop.permute.xlu0 %304
  %308 = vset.pattern.permute.xlu0 0
  %309 = vperm.xlu0 %308, %v243
  %v310 = vpop.permute.xlu0 %309
  %313 = vset.pattern.permute.xlu0 0
  %314 = vperm.xlu0 %313, %v244
  %v315 = vpop.permute.xlu0 %314
  %318 = vset.pattern.permute.xlu0 0
  %319 = vperm.xlu0 %318, %v245
  %v320 = vpop.permute.xlu0 %319
  %323 = vset.pattern.permute.xlu0 0
  %324 = vperm.xlu0 %323, %v246
  %v325 = vpop.permute.xlu0 %324
  %v327 = vadd.f32 %v215, %v250
  %v328 = vadd.f32 %v216, %v255
  %v329 = vadd.f32 %v217, %v260
  %v330 = vadd.f32 %v218, %v265
  %v331 = vadd.f32 %v219, %v270
  %v332 = vadd.f32 %v220, %v275
  %v333 = vadd.f32 %v221, %v280
  %v334 = vadd.f32 %v222, %v285
  %v335 = vadd.f32 %v223, %v290
  %v336 = vadd.f32 %v224, %v295
  %v337 = vadd.f32 %v225, %v300
  %v338 = vadd.f32 %v226, %v305
  %v339 = vadd.f32 %v227, %v310
  %v340 = vadd.f32 %v228, %v315
  %v341 = vadd.f32 %v229, %v320
  %v342 = vadd.f32 %v230, %v325
  %v343 = vxor.u32 %v327, 2147483648
  %v344 = vxor.u32 %v328, 2147483648
  %v345 = vxor.u32 %v329, 2147483648
  %v346 = vxor.u32 %v330, 2147483648
  %v347 = vxor.u32 %v331, 2147483648
  %v348 = vxor.u32 %v332, 2147483648
  %v349 = vxor.u32 %v333, 2147483648
  %v350 = vxor.u32 %v334, 2147483648
  %v351 = vxor.u32 %v335, 2147483648
  %v352 = vxor.u32 %v336, 2147483648
  %v353 = vxor.u32 %v337, 2147483648
  %v354 = vxor.u32 %v338, 2147483648
  %v355 = vxor.u32 %v339, 2147483648
  %v356 = vxor.u32 %v340, 2147483648
  %v357 = vxor.u32 %v341, 2147483648
  %v358 = vxor.u32 %v342, 2147483648
  %v359 = vmul.f32 %v343, 1.442695
  %v360 = vpow.pop %v359
  %v361 = vmul.f32 %v344, 1.442695
  %v362 = vpow.pop %v361
  %v363 = vmul.f32 %v345, 1.442695
  %v364 = vpow.pop %v363
  %v365 = vmul.f32 %v346, 1.442695
  %v366 = vpow.pop %v365
  %v367 = vmul.f32 %v347, 1.442695
  %v368 = vpow.pop %v367
  %v369 = vmul.f32 %v348, 1.442695
  %v370 = vpow.pop %v369
  %v371 = vmul.f32 %v349, 1.442695
  %v372 = vpow.pop %v371
  %v373 = vmul.f32 %v350, 1.442695
  %v374 = vpow.pop %v373
  %v375 = vmul.f32 %v351, 1.442695
  %v376 = vpow.pop %v375
  %v377 = vmul.f32 %v352, 1.442695
  %v378 = vpow.pop %v377
  %v379 = vmul.f32 %v353, 1.442695
  %v380 = vpow.pop %v379
  %v381 = vmul.f32 %v354, 1.442695
  %v382 = vpow.pop %v381
  %v383 = vmul.f32 %v355, 1.442695
  %v384 = vpow.pop %v383
  %v385 = vmul.f32 %v356, 1.442695
  %v386 = vpow.pop %v385
  %v387 = vmul.f32 %v357, 1.442695
  %v388 = vpow.pop %v387
  %v389 = vmul.f32 %v358, 1.442695
  %v390 = vpow.pop %v389
  %v391 = vadd.f32 %v360, 1.0
  %v392 = vadd.f32 %v362, 1.0
  %v393 = vadd.f32 %v364, 1.0
  %v394 = vadd.f32 %v366, 1.0
  %v395 = vadd.f32 %v368, 1.0
  %v396 = vadd.f32 %v370, 1.0
  %v397 = vadd.f32 %v372, 1.0
  %v398 = vadd.f32 %v374, 1.0
  %v399 = vadd.f32 %v376, 1.0
  %v400 = vadd.f32 %v378, 1.0
  %v401 = vadd.f32 %v380, 1.0
  %v402 = vadd.f32 %v382, 1.0
  %v403 = vadd.f32 %v384, 1.0
  %v404 = vadd.f32 %v386, 1.0
  %v405 = vadd.f32 %v388, 1.0
  %v406 = vadd.f32 %v390, 1.0
  %v407 = vrcp.pop %v391
  %v408 = vmul.f32 %v391, %v407
  %v409 = vsub.f32 1.0, %v408
  %v410 = vmul.f32 %v407, %v409
  %v411 = vadd.f32 %v407, %v410
  %vm412 = vweird.f32 %v391
  %vm413 = vweird.f32 %v407
  %vm414 = vmor %vm412, %vm413
  %v415 = vsel %vm414, %v407, %v411
  %v416 = vand.u32 2147483647, %v391
  %vm417 = vcmp.eq.f32.partialorder %v416, 8.507059e+37
  %v418 = vand.u32 %v391, 2147483648
  %v419 = vor.u32 1.1754944e-38, %v418
  %v420 = vsel %vm417, %v419, %v415
  %v421 = vmul.f32 1.0, %v420
  %v422 = vrcp.pop %v392
  %v423 = vmul.f32 %v392, %v422
  %v424 = vsub.f32 1.0, %v423
  %v425 = vmul.f32 %v422, %v424
  %v426 = vadd.f32 %v422, %v425
  %vm427 = vweird.f32 %v392
  %vm428 = vweird.f32 %v422
  %vm429 = vmor %vm427, %vm428
  %v430 = vsel %vm429, %v422, %v426
  %v431 = vand.u32 2147483647, %v392
  %vm432 = vcmp.eq.f32.partialorder %v431, 8.507059e+37
  %v433 = vand.u32 %v392, 2147483648
  %v434 = vor.u32 1.1754944e-38, %v433
  %v435 = vsel %vm432, %v434, %v430
  %v436 = vmul.f32 1.0, %v435
  %v437 = vrcp.pop %v393
  %v438 = vmul.f32 %v393, %v437
  %v439 = vsub.f32 1.0, %v438
  %v440 = vmul.f32 %v437, %v439
  %v441 = vadd.f32 %v437, %v440
  %vm442 = vweird.f32 %v393
  %vm443 = vweird.f32 %v437
  %vm444 = vmor %vm442, %vm443
  %v445 = vsel %vm444, %v437, %v441
  %v446 = vand.u32 2147483647, %v393
  %vm447 = vcmp.eq.f32.partialorder %v446, 8.507059e+37
  %v448 = vand.u32 %v393, 2147483648
  %v449 = vor.u32 1.1754944e-38, %v448
  %v450 = vsel %vm447, %v449, %v445
  %v451 = vmul.f32 1.0, %v450
  %v452 = vrcp.pop %v394
  %v453 = vmul.f32 %v394, %v452
  %v454 = vsub.f32 1.0, %v453
  %v455 = vmul.f32 %v452, %v454
  %v456 = vadd.f32 %v452, %v455
  %vm457 = vweird.f32 %v394
  %vm458 = vweird.f32 %v452
  %vm459 = vmor %vm457, %vm458
  %v460 = vsel %vm459, %v452, %v456
  %v461 = vand.u32 2147483647, %v394
  %vm462 = vcmp.eq.f32.partialorder %v461, 8.507059e+37
  %v463 = vand.u32 %v394, 2147483648
  %v464 = vor.u32 1.1754944e-38, %v463
  %v465 = vsel %vm462, %v464, %v460
  %v466 = vmul.f32 1.0, %v465
  %v467 = vrcp.pop %v395
  %v468 = vmul.f32 %v395, %v467
  %v469 = vsub.f32 1.0, %v468
  %v470 = vmul.f32 %v467, %v469
  %v471 = vadd.f32 %v467, %v470
  %vm472 = vweird.f32 %v395
  %vm473 = vweird.f32 %v467
  %vm474 = vmor %vm472, %vm473
  %v475 = vsel %vm474, %v467, %v471
  %v476 = vand.u32 2147483647, %v395
  %vm477 = vcmp.eq.f32.partialorder %v476, 8.507059e+37
  %v478 = vand.u32 %v395, 2147483648
  %v479 = vor.u32 1.1754944e-38, %v478
  %v480 = vsel %vm477, %v479, %v475
  %v481 = vmul.f32 1.0, %v480
  %v482 = vrcp.pop %v396
  %v483 = vmul.f32 %v396, %v482
  %v484 = vsub.f32 1.0, %v483
  %v485 = vmul.f32 %v482, %v484
  %v486 = vadd.f32 %v482, %v485
  %vm487 = vweird.f32 %v396
  %vm488 = vweird.f32 %v482
  %vm489 = vmor %vm487, %vm488
  %v490 = vsel %vm489, %v482, %v486
  %v491 = vand.u32 2147483647, %v396
  %vm492 = vcmp.eq.f32.partialorder %v491, 8.507059e+37
  %v493 = vand.u32 %v396, 2147483648
  %v494 = vor.u32 1.1754944e-38, %v493
  %v495 = vsel %vm492, %v494, %v490
  %v496 = vmul.f32 1.0, %v495
  %v497 = vrcp.pop %v397
  %v498 = vmul.f32 %v397, %v497
  %v499 = vsub.f32 1.0, %v498
  %v500 = vmul.f32 %v497, %v499
  %v501 = vadd.f32 %v497, %v500
  %vm502 = vweird.f32 %v397
  %vm503 = vweird.f32 %v497
  %vm504 = vmor %vm502, %vm503
  %v505 = vsel %vm504, %v497, %v501
  %v506 = vand.u32 2147483647, %v397
  %vm507 = vcmp.eq.f32.partialorder %v506, 8.507059e+37
  %v508 = vand.u32 %v397, 2147483648
  %v509 = vor.u32 1.1754944e-38, %v508
  %v510 = vsel %vm507, %v509, %v505
  %v511 = vmul.f32 1.0, %v510
  %v512 = vrcp.pop %v398
  %v513 = vmul.f32 %v398, %v512
  %v514 = vsub.f32 1.0, %v513
  %v515 = vmul.f32 %v512, %v514
  %v516 = vadd.f32 %v512, %v515
  %vm517 = vweird.f32 %v398
  %vm518 = vweird.f32 %v512
  %vm519 = vmor %vm517, %vm518
  %v520 = vsel %vm519, %v512, %v516
  %v521 = vand.u32 2147483647, %v398
  %vm522 = vcmp.eq.f32.partialorder %v521, 8.507059e+37
  %v523 = vand.u32 %v398, 2147483648
  %v524 = vor.u32 1.1754944e-38, %v523
  %v525 = vsel %vm522, %v524, %v520
  %v526 = vmul.f32 1.0, %v525
  %v527 = vrcp.pop %v399
  %v528 = vmul.f32 %v399, %v527
  %v529 = vsub.f32 1.0, %v528
  %v530 = vmul.f32 %v527, %v529
  %v531 = vadd.f32 %v527, %v530
  %vm532 = vweird.f32 %v399
  %vm533 = vweird.f32 %v527
  %vm534 = vmor %vm532, %vm533
  %v535 = vsel %vm534, %v527, %v531
  %v536 = vand.u32 2147483647, %v399
  %vm537 = vcmp.eq.f32.partialorder %v536, 8.507059e+37
  %v538 = vand.u32 %v399, 2147483648
  %v539 = vor.u32 1.1754944e-38, %v538
  %v540 = vsel %vm537, %v539, %v535
  %v541 = vmul.f32 1.0, %v540
  %v542 = vrcp.pop %v400
  %v543 = vmul.f32 %v400, %v542
  %v544 = vsub.f32 1.0, %v543
  %v545 = vmul.f32 %v542, %v544
  %v546 = vadd.f32 %v542, %v545
  %vm547 = vweird.f32 %v400
  %vm548 = vweird.f32 %v542
  %vm549 = vmor %vm547, %vm548
  %v550 = vsel %vm549, %v542, %v546
  %v551 = vand.u32 2147483647, %v400
  %vm552 = vcmp.eq.f32.partialorder %v551, 8.507059e+37
  %v553 = vand.u32 %v400, 2147483648
  %v554 = vor.u32 1.1754944e-38, %v553
  %v555 = vsel %vm552, %v554, %v550
  %v556 = vmul.f32 1.0, %v555
  %v557 = vrcp.pop %v401
  %v558 = vmul.f32 %v401, %v557
  %v559 = vsub.f32 1.0, %v558
  %v560 = vmul.f32 %v557, %v559
  %v561 = vadd.f32 %v557, %v560
  %vm562 = vweird.f32 %v401
  %vm563 = vweird.f32 %v557
  %vm564 = vmor %vm562, %vm563
  %v565 = vsel %vm564, %v557, %v561
  %v566 = vand.u32 2147483647, %v401
  %vm567 = vcmp.eq.f32.partialorder %v566, 8.507059e+37
  %v568 = vand.u32 %v401, 2147483648
  %v569 = vor.u32 1.1754944e-38, %v568
  %v570 = vsel %vm567, %v569, %v565
  %v571 = vmul.f32 1.0, %v570
  %v572 = vrcp.pop %v402
  %v573 = vmul.f32 %v402, %v572
  %v574 = vsub.f32 1.0, %v573
  %v575 = vmul.f32 %v572, %v574
  %v576 = vadd.f32 %v572, %v575
  %vm577 = vweird.f32 %v402
  %vm578 = vweird.f32 %v572
  %vm579 = vmor %vm577, %vm578
  %v580 = vsel %vm579, %v572, %v576
  %v581 = vand.u32 2147483647, %v402
  %vm582 = vcmp.eq.f32.partialorder %v581, 8.507059e+37
  %v583 = vand.u32 %v402, 2147483648
  %v584 = vor.u32 1.1754944e-38, %v583
  %v585 = vsel %vm582, %v584, %v580
  %v586 = vmul.f32 1.0, %v585
  %v587 = vrcp.pop %v403
  %v588 = vmul.f32 %v403, %v587
  %v589 = vsub.f32 1.0, %v588
  %v590 = vmul.f32 %v587, %v589
  %v591 = vadd.f32 %v587, %v590
  %vm592 = vweird.f32 %v403
  %vm593 = vweird.f32 %v587
  %vm594 = vmor %vm592, %vm593
  %v595 = vsel %vm594, %v587, %v591
  %v596 = vand.u32 2147483647, %v403
  %vm597 = vcmp.eq.f32.partialorder %v596, 8.507059e+37
  %v598 = vand.u32 %v403, 2147483648
  %v599 = vor.u32 1.1754944e-38, %v598
  %v600 = vsel %vm597, %v599, %v595
  %v601 = vmul.f32 1.0, %v600
  %v602 = vrcp.pop %v404
  %v603 = vmul.f32 %v404, %v602
  %v604 = vsub.f32 1.0, %v603
  %v605 = vmul.f32 %v602, %v604
  %v606 = vadd.f32 %v602, %v605
  %vm607 = vweird.f32 %v404
  %vm608 = vweird.f32 %v602
  %vm609 = vmor %vm607, %vm608
  %v610 = vsel %vm609, %v602, %v606
  %v611 = vand.u32 2147483647, %v404
  %vm612 = vcmp.eq.f32.partialorder %v611, 8.507059e+37
  %v613 = vand.u32 %v404, 2147483648
  %v614 = vor.u32 1.1754944e-38, %v613
  %v615 = vsel %vm612, %v614, %v610
  %v616 = vmul.f32 1.0, %v615
  %v617 = vrcp.pop %v405
  %v618 = vmul.f32 %v405, %v617
  %v619 = vsub.f32 1.0, %v618
  %v620 = vmul.f32 %v617, %v619
  %v621 = vadd.f32 %v617, %v620
  %vm622 = vweird.f32 %v405
  %vm623 = vweird.f32 %v617
  %vm624 = vmor %vm622, %vm623
  %v625 = vsel %vm624, %v617, %v621
  %v626 = vand.u32 2147483647, %v405
  %vm627 = vcmp.eq.f32.partialorder %v626, 8.507059e+37
  %v628 = vand.u32 %v405, 2147483648
  %v629 = vor.u32 1.1754944e-38, %v628
  %v630 = vsel %vm627, %v629, %v625
  %v631 = vmul.f32 1.0, %v630
  %v632 = vrcp.pop %v406
  %v633 = vmul.f32 %v406, %v632
  %v634 = vsub.f32 1.0, %v633
  %v635 = vmul.f32 %v632, %v634
  %v636 = vadd.f32 %v632, %v635
  %vm637 = vweird.f32 %v406
  %vm638 = vweird.f32 %v632
  %vm639 = vmor %vm637, %vm638
  %v640 = vsel %vm639, %v632, %v636
  %v641 = vand.u32 2147483647, %v406
  %vm642 = vcmp.eq.f32.partialorder %v641, 8.507059e+37
  %v643 = vand.u32 %v406, 2147483648
  %v644 = vor.u32 1.1754944e-38, %v643
  %v645 = vsel %vm642, %v644, %v640
  %v646 = vmul.f32 1.0, %v645
  %v647 = vmul.f32 %v327, %v421
  %v648 = vmul.f32 %v328, %v436
  %v649 = vmul.f32 %v329, %v451
  %v650 = vmul.f32 %v330, %v466
  %v651 = vmul.f32 %v331, %v481
  %v652 = vmul.f32 %v332, %v496
  %v653 = vmul.f32 %v333, %v511
  %v654 = vmul.f32 %v334, %v526
  %v655 = vmul.f32 %v335, %v541
  %v656 = vmul.f32 %v336, %v556
  %v657 = vmul.f32 %v337, %v571
  %v658 = vmul.f32 %v338, %v586
  %v659 = vmul.f32 %v339, %v601
  %v660 = vmul.f32 %v340, %v616
  %v661 = vmul.f32 %v341, %v631
  %v662 = vmul.f32 %v342, %v646
  %v663 = vld [vmem:[%s2] sm:$0xf]
  %v664 = vld [vmem:[%s2 + $0x4] sm:$0xf]
  %v665 = vld [vmem:[%s2 + $0x8] sm:$0xf]
  %v666 = vld [vmem:[%s2 + $0xc] sm:$0xf]
  %v667 = vld [vmem:[%s2 + $0x10] sm:$0xf]
  %v668 = vld [vmem:[%s2 + $0x14] sm:$0xf]
  %v669 = vld [vmem:[%s2 + $0x18] sm:$0xf]
  %v670 = vld [vmem:[%s2 + $0x1c] sm:$0xf]
  %v671 = vld [vmem:[%s2 + $0x20] sm:$0xf]
  %v672 = vld [vmem:[%s2 + $0x24] sm:$0xf]
  %v673 = vld [vmem:[%s2 + $0x28] sm:$0xf]
  %v674 = vld [vmem:[%s2 + $0x2c] sm:$0xf]
  %v675 = vld [vmem:[%s2 + $0x30] sm:$0xf]
  %v676 = vld [vmem:[%s2 + $0x34] sm:$0xf]
  %v677 = vld [vmem:[%s2 + $0x38] sm:$0xf]
  %v678 = vld [vmem:[%s2 + $0x3c] sm:$0xf]
  %v679 = vpack.c.bf16 %v648, %v647
  %v680 = vpack.c.bf16 %v650, %v649
  %v681 = vpack.c.bf16 %v652, %v651
  %v682 = vpack.c.bf16 %v654, %v653
  %v683 = vpack.c.bf16 %v656, %v655
  %v684 = vpack.c.bf16 %v658, %v657
  %v685 = vpack.c.bf16 %v660, %v659
  %v686 = vpack.c.bf16 %v662, %v661
  %s687 = scalar_lea.vmem %s4, 128
  %v688 = vld [vmem:[%s687] sm:$0xff]
  %v689 = vld [vmem:[%s687 + $0x8] sm:$0xff]
  %v690 = vld [vmem:[%s687 + $0x10] sm:$0xff]
  %v691 = vld [vmem:[%s687 + $0x18] sm:$0xff]
  %v692 = vld [vmem:[%s687 + $0x20] sm:$0xff]
  %v693 = vld [vmem:[%s687 + $0x28] sm:$0xff]
  %v694 = vld [vmem:[%s687 + $0x30] sm:$0xff]
  %v695 = vld [vmem:[%s687 + $0x38] sm:$0xff]
  %v696 = vld [vmem:[%s687 + $0x40] sm:$0xff]
  %v697 = vld [vmem:[%s687 + $0x48] sm:$0xff]
  %v698 = vld [vmem:[%s687 + $0x50] sm:$0xff]
  %v699 = vld [vmem:[%s687 + $0x58] sm:$0xff]
  %v700 = vld [vmem:[%s687 + $0x60] sm:$0xff]
  %v701 = vld [vmem:[%s687 + $0x68] sm:$0xff]
  %v702 = vld [vmem:[%s687 + $0x70] sm:$0xff]
  %v703 = vld [vmem:[%s687 + $0x78] sm:$0xff]
  %705 = vset.pattern.permute.xlu0 0
  %706 = vperm.xlu0 %705, %v688
  %v707 = vpop.permute.xlu0 %706
  %710 = vset.pattern.permute.xlu0 0
  %711 = vperm.xlu0 %710, %v689
  %v712 = vpop.permute.xlu0 %711
  %715 = vset.pattern.permute.xlu0 0
  %716 = vperm.xlu0 %715, %v690
  %v717 = vpop.permute.xlu0 %716
  %720 = vset.pattern.permute.xlu0 0
  %721 = vperm.xlu0 %720, %v691
  %v722 = vpop.permute.xlu0 %721
  %725 = vset.pattern.permute.xlu0 0
  %726 = vperm.xlu0 %725, %v692
  %v727 = vpop.permute.xlu0 %726
  %730 = vset.pattern.permute.xlu0 0
  %731 = vperm.xlu0 %730, %v693
  %v732 = vpop.permute.xlu0 %731
  %735 = vset.pattern.permute.xlu0 0
  %736 = vperm.xlu0 %735, %v694
  %v737 = vpop.permute.xlu0 %736
  %740 = vset.pattern.permute.xlu0 0
  %741 = vperm.xlu0 %740, %v695
  %v742 = vpop.permute.xlu0 %741
  %745 = vset.pattern.permute.xlu0 0
  %746 = vperm.xlu0 %745, %v696
  %v747 = vpop.permute.xlu0 %746
  %750 = vset.pattern.permute.xlu0 0
  %751 = vperm.xlu0 %750, %v697
  %v752 = vpop.permute.xlu0 %751
  %755 = vset.pattern.permute.xlu0 0
  %756 = vperm.xlu0 %755, %v698
  %v757 = vpop.permute.xlu0 %756
  %760 = vset.pattern.permute.xlu0 0
  %761 = vperm.xlu0 %760, %v699
  %v762 = vpop.permute.xlu0 %761
  %765 = vset.pattern.permute.xlu0 0
  %766 = vperm.xlu0 %765, %v700
  %v767 = vpop.permute.xlu0 %766
  %770 = vset.pattern.permute.xlu0 0
  %771 = vperm.xlu0 %770, %v701
  %v772 = vpop.permute.xlu0 %771
  %775 = vset.pattern.permute.xlu0 0
  %776 = vperm.xlu0 %775, %v702
  %v777 = vpop.permute.xlu0 %776
  %780 = vset.pattern.permute.xlu0 0
  %781 = vperm.xlu0 %780, %v703
  %v782 = vpop.permute.xlu0 %781
  %v800 = vunpack.c.l.b16 %v663
  %v801 = vunpack.c.l.b16 %v664
  %v802 = vunpack.c.l.b16 %v665
  %v803 = vunpack.c.l.b16 %v666
  %v804 = vunpack.c.l.b16 %v667
  %v805 = vunpack.c.l.b16 %v668
  %v806 = vunpack.c.l.b16 %v669
  %v807 = vunpack.c.l.b16 %v670
  %v808 = vunpack.c.l.b16 %v671
  %v809 = vunpack.c.l.b16 %v672
  %v810 = vunpack.c.l.b16 %v673
  %v811 = vunpack.c.l.b16 %v674
  %v812 = vunpack.c.l.b16 %v675
  %v813 = vunpack.c.l.b16 %v676
  %v814 = vunpack.c.l.b16 %v677
  %v815 = vunpack.c.l.b16 %v678
  %v816 = vpack.c.b16 %v801, %v800
  %v817 = vpack.c.b16 %v803, %v802
  %v818 = vpack.c.b16 %v805, %v804
  %v819 = vpack.c.b16 %v807, %v806
  %v820 = vpack.c.b16 %v809, %v808
  %v821 = vpack.c.b16 %v811, %v810
  %v822 = vpack.c.b16 %v813, %v812
  %v823 = vpack.c.b16 %v815, %v814
  %832 = vmatpush.bf16.msra.mxu0 %v686
  %833 = vmatpush.bf16.msra.mxu0 %v685
  %834 = vmatpush.bf16.msra.mxu0 %v684
  %835 = vmatpush.bf16.msra.mxu0 %v683
  %836 = vmatpush.bf16.msra.mxu0 %v682
  %837 = vmatpush.bf16.msra.mxu0 %v681
  %838 = vmatpush.bf16.msra.mxu0 %v680
  %839 = vmatpush.bf16.msra.mxu0 %v679
  %840 = vmatmul.bf16.gmra.mxu0 %v816
  %v841 = vpop.f32.mrf.mxu0
  %v842 = vadd.f32 %v707, %v841
  %v843 = vpop.f32.mrf.mxu0
  %v844 = vadd.f32 %v712, %v843
  %845 = vmatmul.bf16.gmra.mxu0 %v817
  %v846 = vpop.f32.mrf.mxu0
  %v847 = vadd.f32 %v717, %v846
  %v848 = vpop.f32.mrf.mxu0
  %v849 = vadd.f32 %v722, %v848
  %850 = vmatmul.bf16.gmra.mxu0 %v818
  %v851 = vpop.f32.mrf.mxu0
  %v852 = vadd.f32 %v727, %v851
  %v853 = vpop.f32.mrf.mxu0
  %v854 = vadd.f32 %v732, %v853
  %855 = vmatmul.bf16.gmra.mxu0 %v819
  %v856 = vpop.f32.mrf.mxu0
  %v857 = vadd.f32 %v737, %v856
  %v858 = vpop.f32.mrf.mxu0
  %v859 = vadd.f32 %v742, %v858
  %860 = vmatmul.bf16.gmra.mxu0 %v820
  %v861 = vpop.f32.mrf.mxu0
  %v862 = vadd.f32 %v747, %v861
  %v863 = vpop.f32.mrf.mxu0
  %v864 = vadd.f32 %v752, %v863
  %865 = vmatmul.bf16.gmra.mxu0 %v821
  %v866 = vpop.f32.mrf.mxu0
  %v867 = vadd.f32 %v757, %v866
  %v868 = vpop.f32.mrf.mxu0
  %v869 = vadd.f32 %v762, %v868
  %870 = vmatmul.bf16.gmra.mxu0 %v822
  %v871 = vpop.f32.mrf.mxu0
  %v872 = vadd.f32 %v767, %v871
  %v873 = vpop.f32.mrf.mxu0
  %v874 = vadd.f32 %v772, %v873
  %875 = vmatmul.bf16.gmra.mxu0 %v823
  %v876 = vpop.f32.mrf.mxu0
  %v877 = vadd.f32 %v777, %v876
  %v878 = vpop.f32.mrf.mxu0
  %v879 = vadd.f32 %v782, %v878
  %880 = vdwg.mxu0
  %v881 = vxor.u32 %v842, 2147483648
  %v882 = vxor.u32 %v844, 2147483648
  %v883 = vxor.u32 %v847, 2147483648
  %v884 = vxor.u32 %v849, 2147483648
  %v885 = vxor.u32 %v852, 2147483648
  %v886 = vxor.u32 %v854, 2147483648
  %v887 = vxor.u32 %v857, 2147483648
  %v888 = vxor.u32 %v859, 2147483648
  %v889 = vxor.u32 %v862, 2147483648
  %v890 = vxor.u32 %v864, 2147483648
  %v891 = vxor.u32 %v867, 2147483648
  %v892 = vxor.u32 %v869, 2147483648
  %v893 = vxor.u32 %v872, 2147483648
  %v894 = vxor.u32 %v874, 2147483648
  %v895 = vxor.u32 %v877, 2147483648
  %v896 = vxor.u32 %v879, 2147483648
  %v897 = vmul.f32 %v881, 1.442695
  %v898 = vpow.pop %v897
  %v899 = vmul.f32 %v882, 1.442695
  %v900 = vpow.pop %v899
  %v901 = vmul.f32 %v883, 1.442695
  %v902 = vpow.pop %v901
  %v903 = vmul.f32 %v884, 1.442695
  %v904 = vpow.pop %v903
  %v905 = vmul.f32 %v885, 1.442695
  %v906 = vpow.pop %v905
  %v907 = vmul.f32 %v886, 1.442695
  %v908 = vpow.pop %v907
  %v909 = vmul.f32 %v887, 1.442695
  %v910 = vpow.pop %v909
  %v911 = vmul.f32 %v888, 1.442695
  %v912 = vpow.pop %v911
  %v913 = vmul.f32 %v889, 1.442695
  %v914 = vpow.pop %v913
  %v915 = vmul.f32 %v890, 1.442695
  %v916 = vpow.pop %v915
  %v917 = vmul.f32 %v891, 1.442695
  %v918 = vpow.pop %v917
  %v919 = vmul.f32 %v892, 1.442695
  %v920 = vpow.pop %v919
  %v921 = vmul.f32 %v893, 1.442695
  %v922 = vpow.pop %v921
  %v923 = vmul.f32 %v894, 1.442695
  %v924 = vpow.pop %v923
  %v925 = vmul.f32 %v895, 1.442695
  %v926 = vpow.pop %v925
  %v927 = vmul.f32 %v896, 1.442695
  %v928 = vpow.pop %v927
  %v929 = vadd.f32 %v898, 1.0
  %v930 = vadd.f32 %v900, 1.0
  %v931 = vadd.f32 %v902, 1.0
  %v932 = vadd.f32 %v904, 1.0
  %v933 = vadd.f32 %v906, 1.0
  %v934 = vadd.f32 %v908, 1.0
  %v935 = vadd.f32 %v910, 1.0
  %v936 = vadd.f32 %v912, 1.0
  %v937 = vadd.f32 %v914, 1.0
  %v938 = vadd.f32 %v916, 1.0
  %v939 = vadd.f32 %v918, 1.0
  %v940 = vadd.f32 %v920, 1.0
  %v941 = vadd.f32 %v922, 1.0
  %v942 = vadd.f32 %v924, 1.0
  %v943 = vadd.f32 %v926, 1.0
  %v944 = vadd.f32 %v928, 1.0
  %v945 = vrcp.pop %v929
  %v946 = vmul.f32 %v929, %v945
  %v947 = vsub.f32 1.0, %v946
  %v948 = vmul.f32 %v945, %v947
  %v949 = vadd.f32 %v945, %v948
  %vm950 = vweird.f32 %v929
  %vm951 = vweird.f32 %v945
  %vm952 = vmor %vm950, %vm951
  %v953 = vsel %vm952, %v945, %v949
  %v954 = vand.u32 2147483647, %v929
  %vm955 = vcmp.eq.f32.partialorder %v954, 8.507059e+37
  %v956 = vand.u32 %v929, 2147483648
  %v957 = vor.u32 1.1754944e-38, %v956
  %v958 = vsel %vm955, %v957, %v953
  %v959 = vmul.f32 1.0, %v958
  %v960 = vrcp.pop %v930
  %v961 = vmul.f32 %v930, %v960
  %v962 = vsub.f32 1.0, %v961
  %v963 = vmul.f32 %v960, %v962
  %v964 = vadd.f32 %v960, %v963
  %vm965 = vweird.f32 %v930
  %vm966 = vweird.f32 %v960
  %vm967 = vmor %vm965, %vm966
  %v968 = vsel %vm967, %v960, %v964
  %v969 = vand.u32 2147483647, %v930
  %vm970 = vcmp.eq.f32.partialorder %v969, 8.507059e+37
  %v971 = vand.u32 %v930, 2147483648
  %v972 = vor.u32 1.1754944e-38, %v971
  %v973 = vsel %vm970, %v972, %v968
  %v974 = vmul.f32 1.0, %v973
  %v975 = vrcp.pop %v931
  %v976 = vmul.f32 %v931, %v975
  %v977 = vsub.f32 1.0, %v976
  %v978 = vmul.f32 %v975, %v977
  %v979 = vadd.f32 %v975, %v978
  %vm980 = vweird.f32 %v931
  %vm981 = vweird.f32 %v975
  %vm982 = vmor %vm980, %vm981
  %v983 = vsel %vm982, %v975, %v979
  %v984 = vand.u32 2147483647, %v931
  %vm985 = vcmp.eq.f32.partialorder %v984, 8.507059e+37
  %v986 = vand.u32 %v931, 2147483648
  %v987 = vor.u32 1.1754944e-38, %v986
  %v988 = vsel %vm985, %v987, %v983
  %v989 = vmul.f32 1.0, %v988
  %v990 = vrcp.pop %v932
  %v991 = vmul.f32 %v932, %v990
  %v992 = vsub.f32 1.0, %v991
  %v993 = vmul.f32 %v990, %v992
  %v994 = vadd.f32 %v990, %v993
  %vm995 = vweird.f32 %v932
  %vm996 = vweird.f32 %v990
  %vm997 = vmor %vm995, %vm996
  %v998 = vsel %vm997, %v990, %v994
  %v999 = vand.u32 2147483647, %v932
  %vm1000 = vcmp.eq.f32.partialorder %v999, 8.507059e+37
  %v1001 = vand.u32 %v932, 2147483648
  %v1002 = vor.u32 1.1754944e-38, %v1001
  %v1003 = vsel %vm1000, %v1002, %v998
  %v1004 = vmul.f32 1.0, %v1003
  %v1005 = vrcp.pop %v933
  %v1006 = vmul.f32 %v933, %v1005
  %v1007 = vsub.f32 1.0, %v1006
  %v1008 = vmul.f32 %v1005, %v1007
  %v1009 = vadd.f32 %v1005, %v1008
  %vm1010 = vweird.f32 %v933
  %vm1011 = vweird.f32 %v1005
  %vm1012 = vmor %vm1010, %vm1011
  %v1013 = vsel %vm1012, %v1005, %v1009
  %v1014 = vand.u32 2147483647, %v933
  %vm1015 = vcmp.eq.f32.partialorder %v1014, 8.507059e+37
  %v1016 = vand.u32 %v933, 2147483648
  %v1017 = vor.u32 1.1754944e-38, %v1016
  %v1018 = vsel %vm1015, %v1017, %v1013
  %v1019 = vmul.f32 1.0, %v1018
  %v1020 = vrcp.pop %v934
  %v1021 = vmul.f32 %v934, %v1020
  %v1022 = vsub.f32 1.0, %v1021
  %v1023 = vmul.f32 %v1020, %v1022
  %v1024 = vadd.f32 %v1020, %v1023
  %vm1025 = vweird.f32 %v934
  %vm1026 = vweird.f32 %v1020
  %vm1027 = vmor %vm1025, %vm1026
  %v1028 = vsel %vm1027, %v1020, %v1024
  %v1029 = vand.u32 2147483647, %v934
  %vm1030 = vcmp.eq.f32.partialorder %v1029, 8.507059e+37
  %v1031 = vand.u32 %v934, 2147483648
  %v1032 = vor.u32 1.1754944e-38, %v1031
  %v1033 = vsel %vm1030, %v1032, %v1028
  %v1034 = vmul.f32 1.0, %v1033
  %v1035 = vrcp.pop %v935
  %v1036 = vmul.f32 %v935, %v1035
  %v1037 = vsub.f32 1.0, %v1036
  %v1038 = vmul.f32 %v1035, %v1037
  %v1039 = vadd.f32 %v1035, %v1038
  %vm1040 = vweird.f32 %v935
  %vm1041 = vweird.f32 %v1035
  %vm1042 = vmor %vm1040, %vm1041
  %v1043 = vsel %vm1042, %v1035, %v1039
  %v1044 = vand.u32 2147483647, %v935
  %vm1045 = vcmp.eq.f32.partialorder %v1044, 8.507059e+37
  %v1046 = vand.u32 %v935, 2147483648
  %v1047 = vor.u32 1.1754944e-38, %v1046
  %v1048 = vsel %vm1045, %v1047, %v1043
  %v1049 = vmul.f32 1.0, %v1048
  %v1050 = vrcp.pop %v936
  %v1051 = vmul.f32 %v936, %v1050
  %v1052 = vsub.f32 1.0, %v1051
  %v1053 = vmul.f32 %v1050, %v1052
  %v1054 = vadd.f32 %v1050, %v1053
  %vm1055 = vweird.f32 %v936
  %vm1056 = vweird.f32 %v1050
  %vm1057 = vmor %vm1055, %vm1056
  %v1058 = vsel %vm1057, %v1050, %v1054
  %v1059 = vand.u32 2147483647, %v936
  %vm1060 = vcmp.eq.f32.partialorder %v1059, 8.507059e+37
  %v1061 = vand.u32 %v936, 2147483648
  %v1062 = vor.u32 1.1754944e-38, %v1061
  %v1063 = vsel %vm1060, %v1062, %v1058
  %v1064 = vmul.f32 1.0, %v1063
  %v1065 = vrcp.pop %v937
  %v1066 = vmul.f32 %v937, %v1065
  %v1067 = vsub.f32 1.0, %v1066
  %v1068 = vmul.f32 %v1065, %v1067
  %v1069 = vadd.f32 %v1065, %v1068
  %vm1070 = vweird.f32 %v937
  %vm1071 = vweird.f32 %v1065
  %vm1072 = vmor %vm1070, %vm1071
  %v1073 = vsel %vm1072, %v1065, %v1069
  %v1074 = vand.u32 2147483647, %v937
  %vm1075 = vcmp.eq.f32.partialorder %v1074, 8.507059e+37
  %v1076 = vand.u32 %v937, 2147483648
  %v1077 = vor.u32 1.1754944e-38, %v1076
  %v1078 = vsel %vm1075, %v1077, %v1073
  %v1079 = vmul.f32 1.0, %v1078
  %v1080 = vrcp.pop %v938
  %v1081 = vmul.f32 %v938, %v1080
  %v1082 = vsub.f32 1.0, %v1081
  %v1083 = vmul.f32 %v1080, %v1082
  %v1084 = vadd.f32 %v1080, %v1083
  %vm1085 = vweird.f32 %v938
  %vm1086 = vweird.f32 %v1080
  %vm1087 = vmor %vm1085, %vm1086
  %v1088 = vsel %vm1087, %v1080, %v1084
  %v1089 = vand.u32 2147483647, %v938
  %vm1090 = vcmp.eq.f32.partialorder %v1089, 8.507059e+37
  %v1091 = vand.u32 %v938, 2147483648
  %v1092 = vor.u32 1.1754944e-38, %v1091
  %v1093 = vsel %vm1090, %v1092, %v1088
  %v1094 = vmul.f32 1.0, %v1093
  %v1095 = vrcp.pop %v939
  %v1096 = vmul.f32 %v939, %v1095
  %v1097 = vsub.f32 1.0, %v1096
  %v1098 = vmul.f32 %v1095, %v1097
  %v1099 = vadd.f32 %v1095, %v1098
  %vm1100 = vweird.f32 %v939
  %vm1101 = vweird.f32 %v1095
  %vm1102 = vmor %vm1100, %vm1101
  %v1103 = vsel %vm1102, %v1095, %v1099
  %v1104 = vand.u32 2147483647, %v939
  %vm1105 = vcmp.eq.f32.partialorder %v1104, 8.507059e+37
  %v1106 = vand.u32 %v939, 2147483648
  %v1107 = vor.u32 1.1754944e-38, %v1106
  %v1108 = vsel %vm1105, %v1107, %v1103
  %v1109 = vmul.f32 1.0, %v1108
  %v1110 = vrcp.pop %v940
  %v1111 = vmul.f32 %v940, %v1110
  %v1112 = vsub.f32 1.0, %v1111
  %v1113 = vmul.f32 %v1110, %v1112
  %v1114 = vadd.f32 %v1110, %v1113
  %vm1115 = vweird.f32 %v940
  %vm1116 = vweird.f32 %v1110
  %vm1117 = vmor %vm1115, %vm1116
  %v1118 = vsel %vm1117, %v1110, %v1114
  %v1119 = vand.u32 2147483647, %v940
  %vm1120 = vcmp.eq.f32.partialorder %v1119, 8.507059e+37
  %v1121 = vand.u32 %v940, 2147483648
  %v1122 = vor.u32 1.1754944e-38, %v1121
  %v1123 = vsel %vm1120, %v1122, %v1118
  %v1124 = vmul.f32 1.0, %v1123
  %v1125 = vrcp.pop %v941
  %v1126 = vmul.f32 %v941, %v1125
  %v1127 = vsub.f32 1.0, %v1126
  %v1128 = vmul.f32 %v1125, %v1127
  %v1129 = vadd.f32 %v1125, %v1128
  %vm1130 = vweird.f32 %v941
  %vm1131 = vweird.f32 %v1125
  %vm1132 = vmor %vm1130, %vm1131
  %v1133 = vsel %vm1132, %v1125, %v1129
  %v1134 = vand.u32 2147483647, %v941
  %vm1135 = vcmp.eq.f32.partialorder %v1134, 8.507059e+37
  %v1136 = vand.u32 %v941, 2147483648
  %v1137 = vor.u32 1.1754944e-38, %v1136
  %v1138 = vsel %vm1135, %v1137, %v1133
  %v1139 = vmul.f32 1.0, %v1138
  %v1140 = vrcp.pop %v942
  %v1141 = vmul.f32 %v942, %v1140
  %v1142 = vsub.f32 1.0, %v1141
  %v1143 = vmul.f32 %v1140, %v1142
  %v1144 = vadd.f32 %v1140, %v1143
  %vm1145 = vweird.f32 %v942
  %vm1146 = vweird.f32 %v1140
  %vm1147 = vmor %vm1145, %vm1146
  %v1148 = vsel %vm1147, %v1140, %v1144
  %v1149 = vand.u32 2147483647, %v942
  %vm1150 = vcmp.eq.f32.partialorder %v1149, 8.507059e+37
  %v1151 = vand.u32 %v942, 2147483648
  %v1152 = vor.u32 1.1754944e-38, %v1151
  %v1153 = vsel %vm1150, %v1152, %v1148
  %v1154 = vmul.f32 1.0, %v1153
  %v1155 = vrcp.pop %v943
  %v1156 = vmul.f32 %v943, %v1155
  %v1157 = vsub.f32 1.0, %v1156
  %v1158 = vmul.f32 %v1155, %v1157
  %v1159 = vadd.f32 %v1155, %v1158
  %vm1160 = vweird.f32 %v943
  %vm1161 = vweird.f32 %v1155
  %vm1162 = vmor %vm1160, %vm1161
  %v1163 = vsel %vm1162, %v1155, %v1159
  %v1164 = vand.u32 2147483647, %v943
  %vm1165 = vcmp.eq.f32.partialorder %v1164, 8.507059e+37
  %v1166 = vand.u32 %v943, 2147483648
  %v1167 = vor.u32 1.1754944e-38, %v1166
  %v1168 = vsel %vm1165, %v1167, %v1163
  %v1169 = vmul.f32 1.0, %v1168
  %v1170 = vrcp.pop %v944
  %v1171 = vmul.f32 %v944, %v1170
  %v1172 = vsub.f32 1.0, %v1171
  %v1173 = vmul.f32 %v1170, %v1172
  %v1174 = vadd.f32 %v1170, %v1173
  %vm1175 = vweird.f32 %v944
  %vm1176 = vweird.f32 %v1170
  %vm1177 = vmor %vm1175, %vm1176
  %v1178 = vsel %vm1177, %v1170, %v1174
  %v1179 = vand.u32 2147483647, %v944
  %vm1180 = vcmp.eq.f32.partialorder %v1179, 8.507059e+37
  %v1181 = vand.u32 %v944, 2147483648
  %v1182 = vor.u32 1.1754944e-38, %v1181
  %v1183 = vsel %vm1180, %v1182, %v1178
  %v1184 = vmul.f32 1.0, %v1183
  %v1185 = vmul.f32 %v842, %v959
  %v1186 = vmul.f32 %v844, %v974
  %v1187 = vmul.f32 %v847, %v989
  %v1188 = vmul.f32 %v849, %v1004
  %v1189 = vmul.f32 %v852, %v1019
  %v1190 = vmul.f32 %v854, %v1034
  %v1191 = vmul.f32 %v857, %v1049
  %v1192 = vmul.f32 %v859, %v1064
  %v1193 = vmul.f32 %v862, %v1079
  %v1194 = vmul.f32 %v864, %v1094
  %v1195 = vmul.f32 %v867, %v1109
  %v1196 = vmul.f32 %v869, %v1124
  %v1197 = vmul.f32 %v872, %v1139
  %v1198 = vmul.f32 %v874, %v1154
  %v1199 = vmul.f32 %v877, %v1169
  %v1200 = vmul.f32 %v879, %v1184
  %s1201 = scalar_lea.vmem %s2, 64
  %v1202 = vld [vmem:[%s1201] sm:$0xf]
  %v1203 = vld [vmem:[%s1201 + $0x4] sm:$0xf]
  %v1204 = vld [vmem:[%s1201 + $0x8] sm:$0xf]
  %v1205 = vld [vmem:[%s1201 + $0xc] sm:$0xf]
  %v1206 = vld [vmem:[%s1201 + $0x10] sm:$0xf]
  %v1207 = vld [vmem:[%s1201 + $0x14] sm:$0xf]
  %v1208 = vld [vmem:[%s1201 + $0x18] sm:$0xf]
  %v1209 = vld [vmem:[%s1201 + $0x1c] sm:$0xf]
  %v1210 = vld [vmem:[%s1201 + $0x20] sm:$0xf]
  %v1211 = vld [vmem:[%s1201 + $0x24] sm:$0xf]
  %v1212 = vld [vmem:[%s1201 + $0x28] sm:$0xf]
  %v1213 = vld [vmem:[%s1201 + $0x2c] sm:$0xf]
  %v1214 = vld [vmem:[%s1201 + $0x30] sm:$0xf]
  %v1215 = vld [vmem:[%s1201 + $0x34] sm:$0xf]
  %v1216 = vld [vmem:[%s1201 + $0x38] sm:$0xf]
  %v1217 = vld [vmem:[%s1201 + $0x3c] sm:$0xf]
  %v1218 = vpack.c.bf16 %v1186, %v1185
  %v1219 = vpack.c.bf16 %v1188, %v1187
  %v1220 = vpack.c.bf16 %v1190, %v1189
  %v1221 = vpack.c.bf16 %v1192, %v1191
  %v1222 = vpack.c.bf16 %v1194, %v1193
  %v1223 = vpack.c.bf16 %v1196, %v1195
  %v1224 = vpack.c.bf16 %v1198, %v1197
  %v1225 = vpack.c.bf16 %v1200, %v1199
  %s1226 = scalar_lea.vmem %s4, 256
  %v1227 = vld [vmem:[%s1226] sm:$0xff]
  %v1228 = vld [vmem:[%s1226 + $0x8] sm:$0xff]
  %v1229 = vld [vmem:[%s1226 + $0x10] sm:$0xff]
  %v1230 = vld [vmem:[%s1226 + $0x18] sm:$0xff]
  %v1231 = vld [vmem:[%s1226 + $0x20] sm:$0xff]
  %v1232 = vld [vmem:[%s1226 + $0x28] sm:$0xff]
  %v1233 = vld [vmem:[%s1226 + $0x30] sm:$0xff]
  %v1234 = vld [vmem:[%s1226 + $0x38] sm:$0xff]
  %v1235 = vld [vmem:[%s1226 + $0x40] sm:$0xff]
  %v1236 = vld [vmem:[%s1226 + $0x48] sm:$0xff]
  %v1237 = vld [vmem:[%s1226 + $0x50] sm:$0xff]
  %v1238 = vld [vmem:[%s1226 + $0x58] sm:$0xff]
  %v1239 = vld [vmem:[%s1226 + $0x60] sm:$0xff]
  %v1240 = vld [vmem:[%s1226 + $0x68] sm:$0xff]
  %v1241 = vld [vmem:[%s1226 + $0x70] sm:$0xff]
  %v1242 = vld [vmem:[%s1226 + $0x78] sm:$0xff]
  %1244 = vset.pattern.permute.xlu0 0
  %1245 = vperm.xlu0 %1244, %v1227
  %v1246 = vpop.permute.xlu0 %1245
  %1249 = vset.pattern.permute.xlu0 0
  %1250 = vperm.xlu0 %1249, %v1228
  %v1251 = vpop.permute.xlu0 %1250
  %1254 = vset.pattern.permute.xlu0 0
  %1255 = vperm.xlu0 %1254, %v1229
  %v1256 = vpop.permute.xlu0 %1255
  %1259 = vset.pattern.permute.xlu0 0
  %1260 = vperm.xlu0 %1259, %v1230
  %v1261 = vpop.permute.xlu0 %1260
  %1264 = vset.pattern.permute.xlu0 0
  %1265 = vperm.xlu0 %1264, %v1231
  %v1266 = vpop.permute.xlu0 %1265
  %1269 = vset.pattern.permute.xlu0 0
  %1270 = vperm.xlu0 %1269, %v1232
  %v1271 = vpop.permute.xlu0 %1270
  %1274 = vset.pattern.permute.xlu0 0
  %1275 = vperm.xlu0 %1274, %v1233
  %v1276 = vpop.permute.xlu0 %1275
  %1279 = vset.pattern.permute.xlu0 0
  %1280 = vperm.xlu0 %1279, %v1234
  %v1281 = vpop.permute.xlu0 %1280
  %1284 = vset.pattern.permute.xlu0 0
  %1285 = vperm.xlu0 %1284, %v1235
  %v1286 = vpop.permute.xlu0 %1285
  %1289 = vset.pattern.permute.xlu0 0
  %1290 = vperm.xlu0 %1289, %v1236
  %v1291 = vpop.permute.xlu0 %1290
  %1294 = vset.pattern.permute.xlu0 0
  %1295 = vperm.xlu0 %1294, %v1237
  %v1296 = vpop.permute.xlu0 %1295
  %1299 = vset.pattern.permute.xlu0 0
  %1300 = vperm.xlu0 %1299, %v1238
  %v1301 = vpop.permute.xlu0 %1300
  %1304 = vset.pattern.permute.xlu0 0
  %1305 = vperm.xlu0 %1304, %v1239
  %v1306 = vpop.permute.xlu0 %1305
  %1309 = vset.pattern.permute.xlu0 0
  %1310 = vperm.xlu0 %1309, %v1240
  %v1311 = vpop.permute.xlu0 %1310
  %1314 = vset.pattern.permute.xlu0 0
  %1315 = vperm.xlu0 %1314, %v1241
  %v1316 = vpop.permute.xlu0 %1315
  %1319 = vset.pattern.permute.xlu0 0
  %1320 = vperm.xlu0 %1319, %v1242
  %v1321 = vpop.permute.xlu0 %1320
  %v1339 = vunpack.c.l.b16 %v1202
  %v1340 = vunpack.c.l.b16 %v1203
  %v1341 = vunpack.c.l.b16 %v1204
  %v1342 = vunpack.c.l.b16 %v1205
  %v1343 = vunpack.c.l.b16 %v1206
  %v1344 = vunpack.c.l.b16 %v1207
  %v1345 = vunpack.c.l.b16 %v1208
  %v1346 = vunpack.c.l.b16 %v1209
  %v1347 = vunpack.c.l.b16 %v1210
  %v1348 = vunpack.c.l.b16 %v1211
  %v1349 = vunpack.c.l.b16 %v1212
  %v1350 = vunpack.c.l.b16 %v1213
  %v1351 = vunpack.c.l.b16 %v1214
  %v1352 = vunpack.c.l.b16 %v1215
  %v1353 = vunpack.c.l.b16 %v1216
  %v1354 = vunpack.c.l.b16 %v1217
  %v1355 = vpack.c.b16 %v1340, %v1339
  %v1356 = vpack.c.b16 %v1342, %v1341
  %v1357 = vpack.c.b16 %v1344, %v1343
  %v1358 = vpack.c.b16 %v1346, %v1345
  %v1359 = vpack.c.b16 %v1348, %v1347
  %v1360 = vpack.c.b16 %v1350, %v1349
  %v1361 = vpack.c.b16 %v1352, %v1351
  %v1362 = vpack.c.b16 %v1354, %v1353
  %1371 = vmatpush.bf16.msra.mxu0 %v1225
  %1372 = vmatpush.bf16.msra.mxu0 %v1224
  %1373 = vmatpush.bf16.msra.mxu0 %v1223
  %1374 = vmatpush.bf16.msra.mxu0 %v1222
  %1375 = vmatpush.bf16.msra.mxu0 %v1221
  %1376 = vmatpush.bf16.msra.mxu0 %v1220
  %1377 = vmatpush.bf16.msra.mxu0 %v1219
  %1378 = vmatpush.bf16.msra.mxu0 %v1218
  %1379 = vmatmul.bf16.gmra.mxu0 %v1355
  %v1380 = vpop.f32.mrf.mxu0
  %v1381 = vadd.f32 %v1246, %v1380
  %v1382 = vpop.f32.mrf.mxu0
  %v1383 = vadd.f32 %v1251, %v1382
  %1384 = vmatmul.bf16.gmra.mxu0 %v1356
  %v1385 = vpop.f32.mrf.mxu0
  %v1386 = vadd.f32 %v1256, %v1385
  %v1387 = vpop.f32.mrf.mxu0
  %v1388 = vadd.f32 %v1261, %v1387
  %1389 = vmatmul.bf16.gmra.mxu0 %v1357
  %v1390 = vpop.f32.mrf.mxu0
  %v1391 = vadd.f32 %v1266, %v1390
  %v1392 = vpop.f32.mrf.mxu0
  %v1393 = vadd.f32 %v1271, %v1392
  %1394 = vmatmul.bf16.gmra.mxu0 %v1358
  %v1395 = vpop.f32.mrf.mxu0
  %v1396 = vadd.f32 %v1276, %v1395
  %v1397 = vpop.f32.mrf.mxu0
  %v1398 = vadd.f32 %v1281, %v1397
  %1399 = vmatmul.bf16.gmra.mxu0 %v1359
  %v1400 = vpop.f32.mrf.mxu0
  %v1401 = vadd.f32 %v1286, %v1400
  %v1402 = vpop.f32.mrf.mxu0
  %v1403 = vadd.f32 %v1291, %v1402
  %1404 = vmatmul.bf16.gmra.mxu0 %v1360
  %v1405 = vpop.f32.mrf.mxu0
  %v1406 = vadd.f32 %v1296, %v1405
  %v1407 = vpop.f32.mrf.mxu0
  %v1408 = vadd.f32 %v1301, %v1407
  %1409 = vmatmul.bf16.gmra.mxu0 %v1361
  %v1410 = vpop.f32.mrf.mxu0
  %v1411 = vadd.f32 %v1306, %v1410
  %v1412 = vpop.f32.mrf.mxu0
  %v1413 = vadd.f32 %v1311, %v1412
  %1414 = vmatmul.bf16.gmra.mxu0 %v1362
  %v1415 = vpop.f32.mrf.mxu0
  %v1416 = vadd.f32 %v1316, %v1415
  %v1417 = vpop.f32.mrf.mxu0
  %v1418 = vadd.f32 %v1321, %v1417
  %1419 = vdwg.mxu0
  %v1420 = vxor.u32 %v1381, 2147483648
  %v1421 = vxor.u32 %v1383, 2147483648
  %v1422 = vxor.u32 %v1386, 2147483648
  %v1423 = vxor.u32 %v1388, 2147483648
  %v1424 = vxor.u32 %v1391, 2147483648
  %v1425 = vxor.u32 %v1393, 2147483648
  %v1426 = vxor.u32 %v1396, 2147483648
  %v1427 = vxor.u32 %v1398, 2147483648
  %v1428 = vxor.u32 %v1401, 2147483648
  %v1429 = vxor.u32 %v1403, 2147483648
  %v1430 = vxor.u32 %v1406, 2147483648
  %v1431 = vxor.u32 %v1408, 2147483648
  %v1432 = vxor.u32 %v1411, 2147483648
  %v1433 = vxor.u32 %v1413, 2147483648
  %v1434 = vxor.u32 %v1416, 2147483648
  %v1435 = vxor.u32 %v1418, 2147483648
  %v1436 = vmul.f32 %v1420, 1.442695
  %v1437 = vpow.pop %v1436
  %v1438 = vmul.f32 %v1421, 1.442695
  %v1439 = vpow.pop %v1438
  %v1440 = vmul.f32 %v1422, 1.442695
  %v1441 = vpow.pop %v1440
  %v1442 = vmul.f32 %v1423, 1.442695
  %v1443 = vpow.pop %v1442
  %v1444 = vmul.f32 %v1424, 1.442695
  %v1445 = vpow.pop %v1444
  %v1446 = vmul.f32 %v1425, 1.442695
  %v1447 = vpow.pop %v1446
  %v1448 = vmul.f32 %v1426, 1.442695
  %v1449 = vpow.pop %v1448
  %v1450 = vmul.f32 %v1427, 1.442695
  %v1451 = vpow.pop %v1450
  %v1452 = vmul.f32 %v1428, 1.442695
  %v1453 = vpow.pop %v1452
  %v1454 = vmul.f32 %v1429, 1.442695
  %v1455 = vpow.pop %v1454
  %v1456 = vmul.f32 %v1430, 1.442695
  %v1457 = vpow.pop %v1456
  %v1458 = vmul.f32 %v1431, 1.442695
  %v1459 = vpow.pop %v1458
  %v1460 = vmul.f32 %v1432, 1.442695
  %v1461 = vpow.pop %v1460
  %v1462 = vmul.f32 %v1433, 1.442695
  %v1463 = vpow.pop %v1462
  %v1464 = vmul.f32 %v1434, 1.442695
  %v1465 = vpow.pop %v1464
  %v1466 = vmul.f32 %v1435, 1.442695
  %v1467 = vpow.pop %v1466
  %v1468 = vadd.f32 %v1437, 1.0
  %v1469 = vadd.f32 %v1439, 1.0
  %v1470 = vadd.f32 %v1441, 1.0
  %v1471 = vadd.f32 %v1443, 1.0
  %v1472 = vadd.f32 %v1445, 1.0
  %v1473 = vadd.f32 %v1447, 1.0
  %v1474 = vadd.f32 %v1449, 1.0
  %v1475 = vadd.f32 %v1451, 1.0
  %v1476 = vadd.f32 %v1453, 1.0
  %v1477 = vadd.f32 %v1455, 1.0
  %v1478 = vadd.f32 %v1457, 1.0
  %v1479 = vadd.f32 %v1459, 1.0
  %v1480 = vadd.f32 %v1461, 1.0
  %v1481 = vadd.f32 %v1463, 1.0
  %v1482 = vadd.f32 %v1465, 1.0
  %v1483 = vadd.f32 %v1467, 1.0
  %v1484 = vrcp.pop %v1468
  %v1485 = vmul.f32 %v1468, %v1484
  %v1486 = vsub.f32 1.0, %v1485
  %v1487 = vmul.f32 %v1484, %v1486
  %v1488 = vadd.f32 %v1484, %v1487
  %vm1489 = vweird.f32 %v1468
  %vm1490 = vweird.f32 %v1484
  %vm1491 = vmor %vm1489, %vm1490
  %v1492 = vsel %vm1491, %v1484, %v1488
  %v1493 = vand.u32 2147483647, %v1468
  %vm1494 = vcmp.eq.f32.partialorder %v1493, 8.507059e+37
  %v1495 = vand.u32 %v1468, 2147483648
  %v1496 = vor.u32 1.1754944e-38, %v1495
  %v1497 = vsel %vm1494, %v1496, %v1492
  %v1498 = vmul.f32 1.0, %v1497
  %v1499 = vrcp.pop %v1469
  %v1500 = vmul.f32 %v1469, %v1499
  %v1501 = vsub.f32 1.0, %v1500
  %v1502 = vmul.f32 %v1499, %v1501
  %v1503 = vadd.f32 %v1499, %v1502
  %vm1504 = vweird.f32 %v1469
  %vm1505 = vweird.f32 %v1499
  %vm1506 = vmor %vm1504, %vm1505
  %v1507 = vsel %vm1506, %v1499, %v1503
  %v1508 = vand.u32 2147483647, %v1469
  %vm1509 = vcmp.eq.f32.partialorder %v1508, 8.507059e+37
  %v1510 = vand.u32 %v1469, 2147483648
  %v1511 = vor.u32 1.1754944e-38, %v1510
  %v1512 = vsel %vm1509, %v1511, %v1507
  %v1513 = vmul.f32 1.0, %v1512
  %v1514 = vrcp.pop %v1470
  %v1515 = vmul.f32 %v1470, %v1514
  %v1516 = vsub.f32 1.0, %v1515
  %v1517 = vmul.f32 %v1514, %v1516
  %v1518 = vadd.f32 %v1514, %v1517
  %vm1519 = vweird.f32 %v1470
  %vm1520 = vweird.f32 %v1514
  %vm1521 = vmor %vm1519, %vm1520
  %v1522 = vsel %vm1521, %v1514, %v1518
  %v1523 = vand.u32 2147483647, %v1470
  %vm1524 = vcmp.eq.f32.partialorder %v1523, 8.507059e+37
  %v1525 = vand.u32 %v1470, 2147483648
  %v1526 = vor.u32 1.1754944e-38, %v1525
  %v1527 = vsel %vm1524, %v1526, %v1522
  %v1528 = vmul.f32 1.0, %v1527
  %v1529 = vrcp.pop %v1471
  %v1530 = vmul.f32 %v1471, %v1529
  %v1531 = vsub.f32 1.0, %v1530
  %v1532 = vmul.f32 %v1529, %v1531
  %v1533 = vadd.f32 %v1529, %v1532
  %vm1534 = vweird.f32 %v1471
  %vm1535 = vweird.f32 %v1529
  %vm1536 = vmor %vm1534, %vm1535
  %v1537 = vsel %vm1536, %v1529, %v1533
  %v1538 = vand.u32 2147483647, %v1471
  %vm1539 = vcmp.eq.f32.partialorder %v1538, 8.507059e+37
  %v1540 = vand.u32 %v1471, 2147483648
  %v1541 = vor.u32 1.1754944e-38, %v1540
  %v1542 = vsel %vm1539, %v1541, %v1537
  %v1543 = vmul.f32 1.0, %v1542
  %v1544 = vrcp.pop %v1472
  %v1545 = vmul.f32 %v1472, %v1544
  %v1546 = vsub.f32 1.0, %v1545
  %v1547 = vmul.f32 %v1544, %v1546
  %v1548 = vadd.f32 %v1544, %v1547
  %vm1549 = vweird.f32 %v1472
  %vm1550 = vweird.f32 %v1544
  %vm1551 = vmor %vm1549, %vm1550
  %v1552 = vsel %vm1551, %v1544, %v1548
  %v1553 = vand.u32 2147483647, %v1472
  %vm1554 = vcmp.eq.f32.partialorder %v1553, 8.507059e+37
  %v1555 = vand.u32 %v1472, 2147483648
  %v1556 = vor.u32 1.1754944e-38, %v1555
  %v1557 = vsel %vm1554, %v1556, %v1552
  %v1558 = vmul.f32 1.0, %v1557
  %v1559 = vrcp.pop %v1473
  %v1560 = vmul.f32 %v1473, %v1559
  %v1561 = vsub.f32 1.0, %v1560
  %v1562 = vmul.f32 %v1559, %v1561
  %v1563 = vadd.f32 %v1559, %v1562
  %vm1564 = vweird.f32 %v1473
  %vm1565 = vweird.f32 %v1559
  %vm1566 = vmor %vm1564, %vm1565
  %v1567 = vsel %vm1566, %v1559, %v1563
  %v1568 = vand.u32 2147483647, %v1473
  %vm1569 = vcmp.eq.f32.partialorder %v1568, 8.507059e+37
  %v1570 = vand.u32 %v1473, 2147483648
  %v1571 = vor.u32 1.1754944e-38, %v1570
  %v1572 = vsel %vm1569, %v1571, %v1567
  %v1573 = vmul.f32 1.0, %v1572
  %v1574 = vrcp.pop %v1474
  %v1575 = vmul.f32 %v1474, %v1574
  %v1576 = vsub.f32 1.0, %v1575
  %v1577 = vmul.f32 %v1574, %v1576
  %v1578 = vadd.f32 %v1574, %v1577
  %vm1579 = vweird.f32 %v1474
  %vm1580 = vweird.f32 %v1574
  %vm1581 = vmor %vm1579, %vm1580
  %v1582 = vsel %vm1581, %v1574, %v1578
  %v1583 = vand.u32 2147483647, %v1474
  %vm1584 = vcmp.eq.f32.partialorder %v1583, 8.507059e+37
  %v1585 = vand.u32 %v1474, 2147483648
  %v1586 = vor.u32 1.1754944e-38, %v1585
  %v1587 = vsel %vm1584, %v1586, %v1582
  %v1588 = vmul.f32 1.0, %v1587
  %v1589 = vrcp.pop %v1475
  %v1590 = vmul.f32 %v1475, %v1589
  %v1591 = vsub.f32 1.0, %v1590
  %v1592 = vmul.f32 %v1589, %v1591
  %v1593 = vadd.f32 %v1589, %v1592
  %vm1594 = vweird.f32 %v1475
  %vm1595 = vweird.f32 %v1589
  %vm1596 = vmor %vm1594, %vm1595
  %v1597 = vsel %vm1596, %v1589, %v1593
  %v1598 = vand.u32 2147483647, %v1475
  %vm1599 = vcmp.eq.f32.partialorder %v1598, 8.507059e+37
  %v1600 = vand.u32 %v1475, 2147483648
  %v1601 = vor.u32 1.1754944e-38, %v1600
  %v1602 = vsel %vm1599, %v1601, %v1597
  %v1603 = vmul.f32 1.0, %v1602
  %v1604 = vrcp.pop %v1476
  %v1605 = vmul.f32 %v1476, %v1604
  %v1606 = vsub.f32 1.0, %v1605
  %v1607 = vmul.f32 %v1604, %v1606
  %v1608 = vadd.f32 %v1604, %v1607
  %vm1609 = vweird.f32 %v1476
  %vm1610 = vweird.f32 %v1604
  %vm1611 = vmor %vm1609, %vm1610
  %v1612 = vsel %vm1611, %v1604, %v1608
  %v1613 = vand.u32 2147483647, %v1476
  %vm1614 = vcmp.eq.f32.partialorder %v1613, 8.507059e+37
  %v1615 = vand.u32 %v1476, 2147483648
  %v1616 = vor.u32 1.1754944e-38, %v1615
  %v1617 = vsel %vm1614, %v1616, %v1612
  %v1618 = vmul.f32 1.0, %v1617
  %v1619 = vrcp.pop %v1477
  %v1620 = vmul.f32 %v1477, %v1619
  %v1621 = vsub.f32 1.0, %v1620
  %v1622 = vmul.f32 %v1619, %v1621
  %v1623 = vadd.f32 %v1619, %v1622
  %vm1624 = vweird.f32 %v1477
  %vm1625 = vweird.f32 %v1619
  %vm1626 = vmor %vm1624, %vm1625
  %v1627 = vsel %vm1626, %v1619, %v1623
  %v1628 = vand.u32 2147483647, %v1477
  %vm1629 = vcmp.eq.f32.partialorder %v1628, 8.507059e+37
  %v1630 = vand.u32 %v1477, 2147483648
  %v1631 = vor.u32 1.1754944e-38, %v1630
  %v1632 = vsel %vm1629, %v1631, %v1627
  %v1633 = vmul.f32 1.0, %v1632
  %v1634 = vrcp.pop %v1478
  %v1635 = vmul.f32 %v1478, %v1634
  %v1636 = vsub.f32 1.0, %v1635
  %v1637 = vmul.f32 %v1634, %v1636
  %v1638 = vadd.f32 %v1634, %v1637
  %vm1639 = vweird.f32 %v1478
  %vm1640 = vweird.f32 %v1634
  %vm1641 = vmor %vm1639, %vm1640
  %v1642 = vsel %vm1641, %v1634, %v1638
  %v1643 = vand.u32 2147483647, %v1478
  %vm1644 = vcmp.eq.f32.partialorder %v1643, 8.507059e+37
  %v1645 = vand.u32 %v1478, 2147483648
  %v1646 = vor.u32 1.1754944e-38, %v1645
  %v1647 = vsel %vm1644, %v1646, %v1642
  %v1648 = vmul.f32 1.0, %v1647
  %v1649 = vrcp.pop %v1479
  %v1650 = vmul.f32 %v1479, %v1649
  %v1651 = vsub.f32 1.0, %v1650
  %v1652 = vmul.f32 %v1649, %v1651
  %v1653 = vadd.f32 %v1649, %v1652
  %vm1654 = vweird.f32 %v1479
  %vm1655 = vweird.f32 %v1649
  %vm1656 = vmor %vm1654, %vm1655
  %v1657 = vsel %vm1656, %v1649, %v1653
  %v1658 = vand.u32 2147483647, %v1479
  %vm1659 = vcmp.eq.f32.partialorder %v1658, 8.507059e+37
  %v1660 = vand.u32 %v1479, 2147483648
  %v1661 = vor.u32 1.1754944e-38, %v1660
  %v1662 = vsel %vm1659, %v1661, %v1657
  %v1663 = vmul.f32 1.0, %v1662
  %v1664 = vrcp.pop %v1480
  %v1665 = vmul.f32 %v1480, %v1664
  %v1666 = vsub.f32 1.0, %v1665
  %v1667 = vmul.f32 %v1664, %v1666
  %v1668 = vadd.f32 %v1664, %v1667
  %vm1669 = vweird.f32 %v1480
  %vm1670 = vweird.f32 %v1664
  %vm1671 = vmor %vm1669, %vm1670
  %v1672 = vsel %vm1671, %v1664, %v1668
  %v1673 = vand.u32 2147483647, %v1480
  %vm1674 = vcmp.eq.f32.partialorder %v1673, 8.507059e+37
  %v1675 = vand.u32 %v1480, 2147483648
  %v1676 = vor.u32 1.1754944e-38, %v1675
  %v1677 = vsel %vm1674, %v1676, %v1672
  %v1678 = vmul.f32 1.0, %v1677
  %v1679 = vrcp.pop %v1481
  %v1680 = vmul.f32 %v1481, %v1679
  %v1681 = vsub.f32 1.0, %v1680
  %v1682 = vmul.f32 %v1679, %v1681
  %v1683 = vadd.f32 %v1679, %v1682
  %vm1684 = vweird.f32 %v1481
  %vm1685 = vweird.f32 %v1679
  %vm1686 = vmor %vm1684, %vm1685
  %v1687 = vsel %vm1686, %v1679, %v1683
  %v1688 = vand.u32 2147483647, %v1481
  %vm1689 = vcmp.eq.f32.partialorder %v1688, 8.507059e+37
  %v1690 = vand.u32 %v1481, 2147483648
  %v1691 = vor.u32 1.1754944e-38, %v1690
  %v1692 = vsel %vm1689, %v1691, %v1687
  %v1693 = vmul.f32 1.0, %v1692
  %v1694 = vrcp.pop %v1482
  %v1695 = vmul.f32 %v1482, %v1694
  %v1696 = vsub.f32 1.0, %v1695
  %v1697 = vmul.f32 %v1694, %v1696
  %v1698 = vadd.f32 %v1694, %v1697
  %vm1699 = vweird.f32 %v1482
  %vm1700 = vweird.f32 %v1694
  %vm1701 = vmor %vm1699, %vm1700
  %v1702 = vsel %vm1701, %v1694, %v1698
  %v1703 = vand.u32 2147483647, %v1482
  %vm1704 = vcmp.eq.f32.partialorder %v1703, 8.507059e+37
  %v1705 = vand.u32 %v1482, 2147483648
  %v1706 = vor.u32 1.1754944e-38, %v1705
  %v1707 = vsel %vm1704, %v1706, %v1702
  %v1708 = vmul.f32 1.0, %v1707
  %v1709 = vrcp.pop %v1483
  %v1710 = vmul.f32 %v1483, %v1709
  %v1711 = vsub.f32 1.0, %v1710
  %v1712 = vmul.f32 %v1709, %v1711
  %v1713 = vadd.f32 %v1709, %v1712
  %vm1714 = vweird.f32 %v1483
  %vm1715 = vweird.f32 %v1709
  %vm1716 = vmor %vm1714, %vm1715
  %v1717 = vsel %vm1716, %v1709, %v1713
  %v1718 = vand.u32 2147483647, %v1483
  %vm1719 = vcmp.eq.f32.partialorder %v1718, 8.507059e+37
  %v1720 = vand.u32 %v1483, 2147483648
  %v1721 = vor.u32 1.1754944e-38, %v1720
  %v1722 = vsel %vm1719, %v1721, %v1717
  %v1723 = vmul.f32 1.0, %v1722
  %v1724 = vmul.f32 %v1381, %v1498
  %v1725 = vmul.f32 %v1383, %v1513
  %v1726 = vmul.f32 %v1386, %v1528
  %v1727 = vmul.f32 %v1388, %v1543
  %v1728 = vmul.f32 %v1391, %v1558
  %v1729 = vmul.f32 %v1393, %v1573
  %v1730 = vmul.f32 %v1396, %v1588
  %v1731 = vmul.f32 %v1398, %v1603
  %v1732 = vmul.f32 %v1401, %v1618
  %v1733 = vmul.f32 %v1403, %v1633
  %v1734 = vmul.f32 %v1406, %v1648
  %v1735 = vmul.f32 %v1408, %v1663
  %v1736 = vmul.f32 %v1411, %v1678
  %v1737 = vmul.f32 %v1413, %v1693
  %v1738 = vmul.f32 %v1416, %v1708
  %v1739 = vmul.f32 %v1418, %v1723
  %s1740 = scalar_lea.vmem %s2, 128
  %v1741 = vld [vmem:[%s1740] sm:$0xf]
  %v1742 = vld [vmem:[%s1740 + $0x4] sm:$0xf]
  %v1743 = vld [vmem:[%s1740 + $0x8] sm:$0xf]
  %v1744 = vld [vmem:[%s1740 + $0xc] sm:$0xf]
  %v1745 = vld [vmem:[%s1740 + $0x10] sm:$0xf]
  %v1746 = vld [vmem:[%s1740 + $0x14] sm:$0xf]
  %v1747 = vld [vmem:[%s1740 + $0x18] sm:$0xf]
  %v1748 = vld [vmem:[%s1740 + $0x1c] sm:$0xf]
  %v1749 = vld [vmem:[%s1740 + $0x20] sm:$0xf]
  %v1750 = vld [vmem:[%s1740 + $0x24] sm:$0xf]
  %v1751 = vld [vmem:[%s1740 + $0x28] sm:$0xf]
  %v1752 = vld [vmem:[%s1740 + $0x2c] sm:$0xf]
  %v1753 = vld [vmem:[%s1740 + $0x30] sm:$0xf]
  %v1754 = vld [vmem:[%s1740 + $0x34] sm:$0xf]
  %v1755 = vld [vmem:[%s1740 + $0x38] sm:$0xf]
  %v1756 = vld [vmem:[%s1740 + $0x3c] sm:$0xf]
  %v1757 = vpack.c.bf16 %v1725, %v1724
  %v1758 = vpack.c.bf16 %v1727, %v1726
  %v1759 = vpack.c.bf16 %v1729, %v1728
  %v1760 = vpack.c.bf16 %v1731, %v1730
  %v1761 = vpack.c.bf16 %v1733, %v1732
  %v1762 = vpack.c.bf16 %v1735, %v1734
  %v1763 = vpack.c.bf16 %v1737, %v1736
  %v1764 = vpack.c.bf16 %v1739, %v1738
  %s1765 = scalar_lea.vmem %s4, 384
  %v1766 = vld [vmem:[%s1765] sm:$0xff]
  %v1767 = vld [vmem:[%s1765 + $0x8] sm:$0xff]
  %v1768 = vld [vmem:[%s1765 + $0x10] sm:$0xff]
  %v1769 = vld [vmem:[%s1765 + $0x18] sm:$0xff]
  %v1770 = vld [vmem:[%s1765 + $0x20] sm:$0xff]
  %v1771 = vld [vmem:[%s1765 + $0x28] sm:$0xff]
  %v1772 = vld [vmem:[%s1765 + $0x30] sm:$0xff]
  %v1773 = vld [vmem:[%s1765 + $0x38] sm:$0xff]
  %v1774 = vld [vmem:[%s1765 + $0x40] sm:$0xff]
  %v1775 = vld [vmem:[%s1765 + $0x48] sm:$0xff]
  %v1776 = vld [vmem:[%s1765 + $0x50] sm:$0xff]
  %v1777 = vld [vmem:[%s1765 + $0x58] sm:$0xff]
  %v1778 = vld [vmem:[%s1765 + $0x60] sm:$0xff]
  %v1779 = vld [vmem:[%s1765 + $0x68] sm:$0xff]
  %v1780 = vld [vmem:[%s1765 + $0x70] sm:$0xff]
  %v1781 = vld [vmem:[%s1765 + $0x78] sm:$0xff]
  %1783 = vset.pattern.permute.xlu0 0
  %1784 = vperm.xlu0 %1783, %v1766
  %v1785 = vpop.permute.xlu0 %1784
  %1788 = vset.pattern.permute.xlu0 0
  %1789 = vperm.xlu0 %1788, %v1767
  %v1790 = vpop.permute.xlu0 %1789
  %1793 = vset.pattern.permute.xlu0 0
  %1794 = vperm.xlu0 %1793, %v1768
  %v1795 = vpop.permute.xlu0 %1794
  %1798 = vset.pattern.permute.xlu0 0
  %1799 = vperm.xlu0 %1798, %v1769
  %v1800 = vpop.permute.xlu0 %1799
  %1803 = vset.pattern.permute.xlu0 0
  %1804 = vperm.xlu0 %1803, %v1770
  %v1805 = vpop.permute.xlu0 %1804
  %1808 = vset.pattern.permute.xlu0 0
  %1809 = vperm.xlu0 %1808, %v1771
  %v1810 = vpop.permute.xlu0 %1809
  %1813 = vset.pattern.permute.xlu0 0
  %1814 = vperm.xlu0 %1813, %v1772
  %v1815 = vpop.permute.xlu0 %1814
  %1818 = vset.pattern.permute.xlu0 0
  %1819 = vperm.xlu0 %1818, %v1773
  %v1820 = vpop.permute.xlu0 %1819
  %1823 = vset.pattern.permute.xlu0 0
  %1824 = vperm.xlu0 %1823, %v1774
  %v1825 = vpop.permute.xlu0 %1824
  %1828 = vset.pattern.permute.xlu0 0
  %1829 = vperm.xlu0 %1828, %v1775
  %v1830 = vpop.permute.xlu0 %1829
  %1833 = vset.pattern.permute.xlu0 0
  %1834 = vperm.xlu0 %1833, %v1776
  %v1835 = vpop.permute.xlu0 %1834
  %1838 = vset.pattern.permute.xlu0 0
  %1839 = vperm.xlu0 %1838, %v1777
  %v1840 = vpop.permute.xlu0 %1839
  %1843 = vset.pattern.permute.xlu0 0
  %1844 = vperm.xlu0 %1843, %v1778
  %v1845 = vpop.permute.xlu0 %1844
  %1848 = vset.pattern.permute.xlu0 0
  %1849 = vperm.xlu0 %1848, %v1779
  %v1850 = vpop.permute.xlu0 %1849
  %1853 = vset.pattern.permute.xlu0 0
  %1854 = vperm.xlu0 %1853, %v1780
  %v1855 = vpop.permute.xlu0 %1854
  %1858 = vset.pattern.permute.xlu0 0
  %1859 = vperm.xlu0 %1858, %v1781
  %v1860 = vpop.permute.xlu0 %1859
  %v1878 = vunpack.c.l.b16 %v1741
  %v1879 = vunpack.c.l.b16 %v1742
  %v1880 = vunpack.c.l.b16 %v1743
  %v1881 = vunpack.c.l.b16 %v1744
  %v1882 = vunpack.c.l.b16 %v1745
  %v1883 = vunpack.c.l.b16 %v1746
  %v1884 = vunpack.c.l.b16 %v1747
  %v1885 = vunpack.c.l.b16 %v1748
  %v1886 = vunpack.c.l.b16 %v1749
  %v1887 = vunpack.c.l.b16 %v1750
  %v1888 = vunpack.c.l.b16 %v1751
  %v1889 = vunpack.c.l.b16 %v1752
  %v1890 = vunpack.c.l.b16 %v1753
  %v1891 = vunpack.c.l.b16 %v1754
  %v1892 = vunpack.c.l.b16 %v1755
  %v1893 = vunpack.c.l.b16 %v1756
  %v1894 = vpack.c.b16 %v1879, %v1878
  %v1895 = vpack.c.b16 %v1881, %v1880
  %v1896 = vpack.c.b16 %v1883, %v1882
  %v1897 = vpack.c.b16 %v1885, %v1884
  %v1898 = vpack.c.b16 %v1887, %v1886
  %v1899 = vpack.c.b16 %v1889, %v1888
  %v1900 = vpack.c.b16 %v1891, %v1890
  %v1901 = vpack.c.b16 %v1893, %v1892
  %1910 = vmatpush.bf16.msra.mxu0 %v1764
  %1911 = vmatpush.bf16.msra.mxu0 %v1763
  %1912 = vmatpush.bf16.msra.mxu0 %v1762
  %1913 = vmatpush.bf16.msra.mxu0 %v1761
  %1914 = vmatpush.bf16.msra.mxu0 %v1760
  %1915 = vmatpush.bf16.msra.mxu0 %v1759
  %1916 = vmatpush.bf16.msra.mxu0 %v1758
  %1917 = vmatpush.bf16.msra.mxu0 %v1757
  %1918 = vmatmul.bf16.gmra.mxu0 %v1894
  %v1919 = vpop.f32.mrf.mxu0
  %v1920 = vadd.f32 %v1785, %v1919
  %v1921 = vpop.f32.mrf.mxu0
  %v1922 = vadd.f32 %v1790, %v1921
  %1923 = vmatmul.bf16.gmra.mxu0 %v1895
  %v1924 = vpop.f32.mrf.mxu0
  %v1925 = vadd.f32 %v1795, %v1924
  %v1926 = vpop.f32.mrf.mxu0
  %v1927 = vadd.f32 %v1800, %v1926
  %1928 = vmatmul.bf16.gmra.mxu0 %v1896
  %v1929 = vpop.f32.mrf.mxu0
  %v1930 = vadd.f32 %v1805, %v1929
  %v1931 = vpop.f32.mrf.mxu0
  %v1932 = vadd.f32 %v1810, %v1931
  %1933 = vmatmul.bf16.gmra.mxu0 %v1897
  %v1934 = vpop.f32.mrf.mxu0
  %v1935 = vadd.f32 %v1815, %v1934
  %v1936 = vpop.f32.mrf.mxu0
  %v1937 = vadd.f32 %v1820, %v1936
  %1938 = vmatmul.bf16.gmra.mxu0 %v1898
  %v1939 = vpop.f32.mrf.mxu0
  %v1940 = vadd.f32 %v1825, %v1939
  %v1941 = vpop.f32.mrf.mxu0
  %v1942 = vadd.f32 %v1830, %v1941
  %1943 = vmatmul.bf16.gmra.mxu0 %v1899
  %v1944 = vpop.f32.mrf.mxu0
  %v1945 = vadd.f32 %v1835, %v1944
  %v1946 = vpop.f32.mrf.mxu0
  %v1947 = vadd.f32 %v1840, %v1946
  %1948 = vmatmul.bf16.gmra.mxu0 %v1900
  %v1949 = vpop.f32.mrf.mxu0
  %v1950 = vadd.f32 %v1845, %v1949
  %v1951 = vpop.f32.mrf.mxu0
  %v1952 = vadd.f32 %v1850, %v1951
  %1953 = vmatmul.bf16.gmra.mxu0 %v1901
  %v1954 = vpop.f32.mrf.mxu0
  %v1955 = vadd.f32 %v1855, %v1954
  %v1956 = vpop.f32.mrf.mxu0
  %v1957 = vadd.f32 %v1860, %v1956
  %1958 = vdwg.mxu0
  %v1959 = vxor.u32 %v1920, 2147483648
  %v1960 = vxor.u32 %v1922, 2147483648
  %v1961 = vxor.u32 %v1925, 2147483648
  %v1962 = vxor.u32 %v1927, 2147483648
  %v1963 = vxor.u32 %v1930, 2147483648
  %v1964 = vxor.u32 %v1932, 2147483648
  %v1965 = vxor.u32 %v1935, 2147483648
  %v1966 = vxor.u32 %v1937, 2147483648
  %v1967 = vxor.u32 %v1940, 2147483648
  %v1968 = vxor.u32 %v1942, 2147483648
  %v1969 = vxor.u32 %v1945, 2147483648
  %v1970 = vxor.u32 %v1947, 2147483648
  %v1971 = vxor.u32 %v1950, 2147483648
  %v1972 = vxor.u32 %v1952, 2147483648
  %v1973 = vxor.u32 %v1955, 2147483648
  %v1974 = vxor.u32 %v1957, 2147483648
  %v1975 = vmul.f32 %v1959, 1.442695
  %v1976 = vpow.pop %v1975
  %v1977 = vmul.f32 %v1960, 1.442695
  %v1978 = vpow.pop %v1977
  %v1979 = vmul.f32 %v1961, 1.442695
  %v1980 = vpow.pop %v1979
  %v1981 = vmul.f32 %v1962, 1.442695
  %v1982 = vpow.pop %v1981
  %v1983 = vmul.f32 %v1963, 1.442695
  %v1984 = vpow.pop %v1983
  %v1985 = vmul.f32 %v1964, 1.442695
  %v1986 = vpow.pop %v1985
  %v1987 = vmul.f32 %v1965, 1.442695
  %v1988 = vpow.pop %v1987
  %v1989 = vmul.f32 %v1966, 1.442695
  %v1990 = vpow.pop %v1989
  %v1991 = vmul.f32 %v1967, 1.442695
  %v1992 = vpow.pop %v1991
  %v1993 = vmul.f32 %v1968, 1.442695
  %v1994 = vpow.pop %v1993
  %v1995 = vmul.f32 %v1969, 1.442695
  %v1996 = vpow.pop %v1995
  %v1997 = vmul.f32 %v1970, 1.442695
  %v1998 = vpow.pop %v1997
  %v1999 = vmul.f32 %v1971, 1.442695
  %v2000 = vpow.pop %v1999
  %v2001 = vmul.f32 %v1972, 1.442695
  %v2002 = vpow.pop %v2001
  %v2003 = vmul.f32 %v1973, 1.442695
  %v2004 = vpow.pop %v2003
  %v2005 = vmul.f32 %v1974, 1.442695
  %v2006 = vpow.pop %v2005
  %v2007 = vadd.f32 %v1976, 1.0
  %v2008 = vadd.f32 %v1978, 1.0
  %v2009 = vadd.f32 %v1980, 1.0
  %v2010 = vadd.f32 %v1982, 1.0
  %v2011 = vadd.f32 %v1984, 1.0
  %v2012 = vadd.f32 %v1986, 1.0
  %v2013 = vadd.f32 %v1988, 1.0
  %v2014 = vadd.f32 %v1990, 1.0
  %v2015 = vadd.f32 %v1992, 1.0
  %v2016 = vadd.f32 %v1994, 1.0
  %v2017 = vadd.f32 %v1996, 1.0
  %v2018 = vadd.f32 %v1998, 1.0
  %v2019 = vadd.f32 %v2000, 1.0
  %v2020 = vadd.f32 %v2002, 1.0
  %v2021 = vadd.f32 %v2004, 1.0
  %v2022 = vadd.f32 %v2006, 1.0
  %v2023 = vrcp.pop %v2007
  %v2024 = vmul.f32 %v2007, %v2023
  %v2025 = vsub.f32 1.0, %v2024
  %v2026 = vmul.f32 %v2023, %v2025
  %v2027 = vadd.f32 %v2023, %v2026
  %vm2028 = vweird.f32 %v2007
  %vm2029 = vweird.f32 %v2023
  %vm2030 = vmor %vm2028, %vm2029
  %v2031 = vsel %vm2030, %v2023, %v2027
  %v2032 = vand.u32 2147483647, %v2007
  %vm2033 = vcmp.eq.f32.partialorder %v2032, 8.507059e+37
  %v2034 = vand.u32 %v2007, 2147483648
  %v2035 = vor.u32 1.1754944e-38, %v2034
  %v2036 = vsel %vm2033, %v2035, %v2031
  %v2037 = vmul.f32 1.0, %v2036
  %v2038 = vrcp.pop %v2008
  %v2039 = vmul.f32 %v2008, %v2038
  %v2040 = vsub.f32 1.0, %v2039
  %v2041 = vmul.f32 %v2038, %v2040
  %v2042 = vadd.f32 %v2038, %v2041
  %vm2043 = vweird.f32 %v2008
  %vm2044 = vweird.f32 %v2038
  %vm2045 = vmor %vm2043, %vm2044
  %v2046 = vsel %vm2045, %v2038, %v2042
  %v2047 = vand.u32 2147483647, %v2008
  %vm2048 = vcmp.eq.f32.partialorder %v2047, 8.507059e+37
  %v2049 = vand.u32 %v2008, 2147483648
  %v2050 = vor.u32 1.1754944e-38, %v2049
  %v2051 = vsel %vm2048, %v2050, %v2046
  %v2052 = vmul.f32 1.0, %v2051
  %v2053 = vrcp.pop %v2009
  %v2054 = vmul.f32 %v2009, %v2053
  %v2055 = vsub.f32 1.0, %v2054
  %v2056 = vmul.f32 %v2053, %v2055
  %v2057 = vadd.f32 %v2053, %v2056
  %vm2058 = vweird.f32 %v2009
  %vm2059 = vweird.f32 %v2053
  %vm2060 = vmor %vm2058, %vm2059
  %v2061 = vsel %vm2060, %v2053, %v2057
  %v2062 = vand.u32 2147483647, %v2009
  %vm2063 = vcmp.eq.f32.partialorder %v2062, 8.507059e+37
  %v2064 = vand.u32 %v2009, 2147483648
  %v2065 = vor.u32 1.1754944e-38, %v2064
  %v2066 = vsel %vm2063, %v2065, %v2061
  %v2067 = vmul.f32 1.0, %v2066
  %v2068 = vrcp.pop %v2010
  %v2069 = vmul.f32 %v2010, %v2068
  %v2070 = vsub.f32 1.0, %v2069
  %v2071 = vmul.f32 %v2068, %v2070
  %v2072 = vadd.f32 %v2068, %v2071
  %vm2073 = vweird.f32 %v2010
  %vm2074 = vweird.f32 %v2068
  %vm2075 = vmor %vm2073, %vm2074
  %v2076 = vsel %vm2075, %v2068, %v2072
  %v2077 = vand.u32 2147483647, %v2010
  %vm2078 = vcmp.eq.f32.partialorder %v2077, 8.507059e+37
  %v2079 = vand.u32 %v2010, 2147483648
  %v2080 = vor.u32 1.1754944e-38, %v2079
  %v2081 = vsel %vm2078, %v2080, %v2076
  %v2082 = vmul.f32 1.0, %v2081
  %v2083 = vrcp.pop %v2011
  %v2084 = vmul.f32 %v2011, %v2083
  %v2085 = vsub.f32 1.0, %v2084
  %v2086 = vmul.f32 %v2083, %v2085
  %v2087 = vadd.f32 %v2083, %v2086
  %vm2088 = vweird.f32 %v2011
  %vm2089 = vweird.f32 %v2083
  %vm2090 = vmor %vm2088, %vm2089
  %v2091 = vsel %vm2090, %v2083, %v2087
  %v2092 = vand.u32 2147483647, %v2011
  %vm2093 = vcmp.eq.f32.partialorder %v2092, 8.507059e+37
  %v2094 = vand.u32 %v2011, 2147483648
  %v2095 = vor.u32 1.1754944e-38, %v2094
  %v2096 = vsel %vm2093, %v2095, %v2091
  %v2097 = vmul.f32 1.0, %v2096
  %v2098 = vrcp.pop %v2012
  %v2099 = vmul.f32 %v2012, %v2098
  %v2100 = vsub.f32 1.0, %v2099
  %v2101 = vmul.f32 %v2098, %v2100
  %v2102 = vadd.f32 %v2098, %v2101
  %vm2103 = vweird.f32 %v2012
  %vm2104 = vweird.f32 %v2098
  %vm2105 = vmor %vm2103, %vm2104
  %v2106 = vsel %vm2105, %v2098, %v2102
  %v2107 = vand.u32 2147483647, %v2012
  %vm2108 = vcmp.eq.f32.partialorder %v2107, 8.507059e+37
  %v2109 = vand.u32 %v2012, 2147483648
  %v2110 = vor.u32 1.1754944e-38, %v2109
  %v2111 = vsel %vm2108, %v2110, %v2106
  %v2112 = vmul.f32 1.0, %v2111
  %v2113 = vrcp.pop %v2013
  %v2114 = vmul.f32 %v2013, %v2113
  %v2115 = vsub.f32 1.0, %v2114
  %v2116 = vmul.f32 %v2113, %v2115
  %v2117 = vadd.f32 %v2113, %v2116
  %vm2118 = vweird.f32 %v2013
  %vm2119 = vweird.f32 %v2113
  %vm2120 = vmor %vm2118, %vm2119
  %v2121 = vsel %vm2120, %v2113, %v2117
  %v2122 = vand.u32 2147483647, %v2013
  %vm2123 = vcmp.eq.f32.partialorder %v2122, 8.507059e+37
  %v2124 = vand.u32 %v2013, 2147483648
  %v2125 = vor.u32 1.1754944e-38, %v2124
  %v2126 = vsel %vm2123, %v2125, %v2121
  %v2127 = vmul.f32 1.0, %v2126
  %v2128 = vrcp.pop %v2014
  %v2129 = vmul.f32 %v2014, %v2128
  %v2130 = vsub.f32 1.0, %v2129
  %v2131 = vmul.f32 %v2128, %v2130
  %v2132 = vadd.f32 %v2128, %v2131
  %vm2133 = vweird.f32 %v2014
  %vm2134 = vweird.f32 %v2128
  %vm2135 = vmor %vm2133, %vm2134
  %v2136 = vsel %vm2135, %v2128, %v2132
  %v2137 = vand.u32 2147483647, %v2014
  %vm2138 = vcmp.eq.f32.partialorder %v2137, 8.507059e+37
  %v2139 = vand.u32 %v2014, 2147483648
  %v2140 = vor.u32 1.1754944e-38, %v2139
  %v2141 = vsel %vm2138, %v2140, %v2136
  %v2142 = vmul.f32 1.0, %v2141
  %v2143 = vrcp.pop %v2015
  %v2144 = vmul.f32 %v2015, %v2143
  %v2145 = vsub.f32 1.0, %v2144
  %v2146 = vmul.f32 %v2143, %v2145
  %v2147 = vadd.f32 %v2143, %v2146
  %vm2148 = vweird.f32 %v2015
  %vm2149 = vweird.f32 %v2143
  %vm2150 = vmor %vm2148, %vm2149
  %v2151 = vsel %vm2150, %v2143, %v2147
  %v2152 = vand.u32 2147483647, %v2015
  %vm2153 = vcmp.eq.f32.partialorder %v2152, 8.507059e+37
  %v2154 = vand.u32 %v2015, 2147483648
  %v2155 = vor.u32 1.1754944e-38, %v2154
  %v2156 = vsel %vm2153, %v2155, %v2151
  %v2157 = vmul.f32 1.0, %v2156
  %v2158 = vrcp.pop %v2016
  %v2159 = vmul.f32 %v2016, %v2158
  %v2160 = vsub.f32 1.0, %v2159
  %v2161 = vmul.f32 %v2158, %v2160
  %v2162 = vadd.f32 %v2158, %v2161
  %vm2163 = vweird.f32 %v2016
  %vm2164 = vweird.f32 %v2158
  %vm2165 = vmor %vm2163, %vm2164
  %v2166 = vsel %vm2165, %v2158, %v2162
  %v2167 = vand.u32 2147483647, %v2016
  %vm2168 = vcmp.eq.f32.partialorder %v2167, 8.507059e+37
  %v2169 = vand.u32 %v2016, 2147483648
  %v2170 = vor.u32 1.1754944e-38, %v2169
  %v2171 = vsel %vm2168, %v2170, %v2166
  %v2172 = vmul.f32 1.0, %v2171
  %v2173 = vrcp.pop %v2017
  %v2174 = vmul.f32 %v2017, %v2173
  %v2175 = vsub.f32 1.0, %v2174
  %v2176 = vmul.f32 %v2173, %v2175
  %v2177 = vadd.f32 %v2173, %v2176
  %vm2178 = vweird.f32 %v2017
  %vm2179 = vweird.f32 %v2173
  %vm2180 = vmor %vm2178, %vm2179
  %v2181 = vsel %vm2180, %v2173, %v2177
  %v2182 = vand.u32 2147483647, %v2017
  %vm2183 = vcmp.eq.f32.partialorder %v2182, 8.507059e+37
  %v2184 = vand.u32 %v2017, 2147483648
  %v2185 = vor.u32 1.1754944e-38, %v2184
  %v2186 = vsel %vm2183, %v2185, %v2181
  %v2187 = vmul.f32 1.0, %v2186
  %v2188 = vrcp.pop %v2018
  %v2189 = vmul.f32 %v2018, %v2188
  %v2190 = vsub.f32 1.0, %v2189
  %v2191 = vmul.f32 %v2188, %v2190
  %v2192 = vadd.f32 %v2188, %v2191
  %vm2193 = vweird.f32 %v2018
  %vm2194 = vweird.f32 %v2188
  %vm2195 = vmor %vm2193, %vm2194
  %v2196 = vsel %vm2195, %v2188, %v2192
  %v2197 = vand.u32 2147483647, %v2018
  %vm2198 = vcmp.eq.f32.partialorder %v2197, 8.507059e+37
  %v2199 = vand.u32 %v2018, 2147483648
  %v2200 = vor.u32 1.1754944e-38, %v2199
  %v2201 = vsel %vm2198, %v2200, %v2196
  %v2202 = vmul.f32 1.0, %v2201
  %v2203 = vrcp.pop %v2019
  %v2204 = vmul.f32 %v2019, %v2203
  %v2205 = vsub.f32 1.0, %v2204
  %v2206 = vmul.f32 %v2203, %v2205
  %v2207 = vadd.f32 %v2203, %v2206
  %vm2208 = vweird.f32 %v2019
  %vm2209 = vweird.f32 %v2203
  %vm2210 = vmor %vm2208, %vm2209
  %v2211 = vsel %vm2210, %v2203, %v2207
  %v2212 = vand.u32 2147483647, %v2019
  %vm2213 = vcmp.eq.f32.partialorder %v2212, 8.507059e+37
  %v2214 = vand.u32 %v2019, 2147483648
  %v2215 = vor.u32 1.1754944e-38, %v2214
  %v2216 = vsel %vm2213, %v2215, %v2211
  %v2217 = vmul.f32 1.0, %v2216
  %v2218 = vrcp.pop %v2020
  %v2219 = vmul.f32 %v2020, %v2218
  %v2220 = vsub.f32 1.0, %v2219
  %v2221 = vmul.f32 %v2218, %v2220
  %v2222 = vadd.f32 %v2218, %v2221
  %vm2223 = vweird.f32 %v2020
  %vm2224 = vweird.f32 %v2218
  %vm2225 = vmor %vm2223, %vm2224
  %v2226 = vsel %vm2225, %v2218, %v2222
  %v2227 = vand.u32 2147483647, %v2020
  %vm2228 = vcmp.eq.f32.partialorder %v2227, 8.507059e+37
  %v2229 = vand.u32 %v2020, 2147483648
  %v2230 = vor.u32 1.1754944e-38, %v2229
  %v2231 = vsel %vm2228, %v2230, %v2226
  %v2232 = vmul.f32 1.0, %v2231
  %v2233 = vrcp.pop %v2021
  %v2234 = vmul.f32 %v2021, %v2233
  %v2235 = vsub.f32 1.0, %v2234
  %v2236 = vmul.f32 %v2233, %v2235
  %v2237 = vadd.f32 %v2233, %v2236
  %vm2238 = vweird.f32 %v2021
  %vm2239 = vweird.f32 %v2233
  %vm2240 = vmor %vm2238, %vm2239
  %v2241 = vsel %vm2240, %v2233, %v2237
  %v2242 = vand.u32 2147483647, %v2021
  %vm2243 = vcmp.eq.f32.partialorder %v2242, 8.507059e+37
  %v2244 = vand.u32 %v2021, 2147483648
  %v2245 = vor.u32 1.1754944e-38, %v2244
  %v2246 = vsel %vm2243, %v2245, %v2241
  %v2247 = vmul.f32 1.0, %v2246
  %v2248 = vrcp.pop %v2022
  %v2249 = vmul.f32 %v2022, %v2248
  %v2250 = vsub.f32 1.0, %v2249
  %v2251 = vmul.f32 %v2248, %v2250
  %v2252 = vadd.f32 %v2248, %v2251
  %vm2253 = vweird.f32 %v2022
  %vm2254 = vweird.f32 %v2248
  %vm2255 = vmor %vm2253, %vm2254
  %v2256 = vsel %vm2255, %v2248, %v2252
  %v2257 = vand.u32 2147483647, %v2022
  %vm2258 = vcmp.eq.f32.partialorder %v2257, 8.507059e+37
  %v2259 = vand.u32 %v2022, 2147483648
  %v2260 = vor.u32 1.1754944e-38, %v2259
  %v2261 = vsel %vm2258, %v2260, %v2256
  %v2262 = vmul.f32 1.0, %v2261
  %v2263 = vmul.f32 %v1920, %v2037
  %v2264 = vmul.f32 %v1922, %v2052
  %v2265 = vmul.f32 %v1925, %v2067
  %v2266 = vmul.f32 %v1927, %v2082
  %v2267 = vmul.f32 %v1930, %v2097
  %v2268 = vmul.f32 %v1932, %v2112
  %v2269 = vmul.f32 %v1935, %v2127
  %v2270 = vmul.f32 %v1937, %v2142
  %v2271 = vmul.f32 %v1940, %v2157
  %v2272 = vmul.f32 %v1942, %v2172
  %v2273 = vmul.f32 %v1945, %v2187
  %v2274 = vmul.f32 %v1947, %v2202
  %v2275 = vmul.f32 %v1950, %v2217
  %v2276 = vmul.f32 %v1952, %v2232
  %v2277 = vmul.f32 %v1955, %v2247
  %v2278 = vmul.f32 %v1957, %v2262
  %s2279 = scalar_lea.vmem %s2, 192
  %v2280 = vld [vmem:[%s2279] sm:$0xf]
  %v2281 = vld [vmem:[%s2279 + $0x4] sm:$0xf]
  %v2282 = vld [vmem:[%s2279 + $0x8] sm:$0xf]
  %v2283 = vld [vmem:[%s2279 + $0xc] sm:$0xf]
  %v2284 = vld [vmem:[%s2279 + $0x10] sm:$0xf]
  %v2285 = vld [vmem:[%s2279 + $0x14] sm:$0xf]
  %v2286 = vld [vmem:[%s2279 + $0x18] sm:$0xf]
  %v2287 = vld [vmem:[%s2279 + $0x1c] sm:$0xf]
  %v2288 = vld [vmem:[%s2279 + $0x20] sm:$0xf]
  %v2289 = vld [vmem:[%s2279 + $0x24] sm:$0xf]
  %v2290 = vld [vmem:[%s2279 + $0x28] sm:$0xf]
  %v2291 = vld [vmem:[%s2279 + $0x2c] sm:$0xf]
  %v2292 = vld [vmem:[%s2279 + $0x30] sm:$0xf]
  %v2293 = vld [vmem:[%s2279 + $0x34] sm:$0xf]
  %v2294 = vld [vmem:[%s2279 + $0x38] sm:$0xf]
  %v2295 = vld [vmem:[%s2279 + $0x3c] sm:$0xf]
  %v2296 = vpack.c.bf16 %v2264, %v2263
  %v2297 = vpack.c.bf16 %v2266, %v2265
  %v2298 = vpack.c.bf16 %v2268, %v2267
  %v2299 = vpack.c.bf16 %v2270, %v2269
  %v2300 = vpack.c.bf16 %v2272, %v2271
  %v2301 = vpack.c.bf16 %v2274, %v2273
  %v2302 = vpack.c.bf16 %v2276, %v2275
  %v2303 = vpack.c.bf16 %v2278, %v2277
  %s2304 = scalar_lea.vmem %s4, 512
  %v2305 = vld [vmem:[%s2304] sm:$0xff]
  %v2306 = vld [vmem:[%s2304 + $0x8] sm:$0xff]
  %v2307 = vld [vmem:[%s2304 + $0x10] sm:$0xff]
  %v2308 = vld [vmem:[%s2304 + $0x18] sm:$0xff]
  %v2309 = vld [vmem:[%s2304 + $0x20] sm:$0xff]
  %v2310 = vld [vmem:[%s2304 + $0x28] sm:$0xff]
  %v2311 = vld [vmem:[%s2304 + $0x30] sm:$0xff]
  %v2312 = vld [vmem:[%s2304 + $0x38] sm:$0xff]
  %v2313 = vld [vmem:[%s2304 + $0x40] sm:$0xff]
  %v2314 = vld [vmem:[%s2304 + $0x48] sm:$0xff]
  %v2315 = vld [vmem:[%s2304 + $0x50] sm:$0xff]
  %v2316 = vld [vmem:[%s2304 + $0x58] sm:$0xff]
  %v2317 = vld [vmem:[%s2304 + $0x60] sm:$0xff]
  %v2318 = vld [vmem:[%s2304 + $0x68] sm:$0xff]
  %v2319 = vld [vmem:[%s2304 + $0x70] sm:$0xff]
  %v2320 = vld [vmem:[%s2304 + $0x78] sm:$0xff]
  %2322 = vset.pattern.permute.xlu0 0
  %2323 = vperm.xlu0 %2322, %v2305
  %v2324 = vpop.permute.xlu0 %2323
  %2327 = vset.pattern.permute.xlu0 0
  %2328 = vperm.xlu0 %2327, %v2306
  %v2329 = vpop.permute.xlu0 %2328
  %2332 = vset.pattern.permute.xlu0 0
  %2333 = vperm.xlu0 %2332, %v2307
  %v2334 = vpop.permute.xlu0 %2333
  %2337 = vset.pattern.permute.xlu0 0
  %2338 = vperm.xlu0 %2337, %v2308
  %v2339 = vpop.permute.xlu0 %2338
  %2342 = vset.pattern.permute.xlu0 0
  %2343 = vperm.xlu0 %2342, %v2309
  %v2344 = vpop.permute.xlu0 %2343
  %2347 = vset.pattern.permute.xlu0 0
  %2348 = vperm.xlu0 %2347, %v2310
  %v2349 = vpop.permute.xlu0 %2348
  %2352 = vset.pattern.permute.xlu0 0
  %2353 = vperm.xlu0 %2352, %v2311
  %v2354 = vpop.permute.xlu0 %2353
  %2357 = vset.pattern.permute.xlu0 0
  %2358 = vperm.xlu0 %2357, %v2312
  %v2359 = vpop.permute.xlu0 %2358
  %2362 = vset.pattern.permute.xlu0 0
  %2363 = vperm.xlu0 %2362, %v2313
  %v2364 = vpop.permute.xlu0 %2363
  %2367 = vset.pattern.permute.xlu0 0
  %2368 = vperm.xlu0 %2367, %v2314
  %v2369 = vpop.permute.xlu0 %2368
  %2372 = vset.pattern.permute.xlu0 0
  %2373 = vperm.xlu0 %2372, %v2315
  %v2374 = vpop.permute.xlu0 %2373
  %2377 = vset.pattern.permute.xlu0 0
  %2378 = vperm.xlu0 %2377, %v2316
  %v2379 = vpop.permute.xlu0 %2378
  %2382 = vset.pattern.permute.xlu0 0
  %2383 = vperm.xlu0 %2382, %v2317
  %v2384 = vpop.permute.xlu0 %2383
  %2387 = vset.pattern.permute.xlu0 0
  %2388 = vperm.xlu0 %2387, %v2318
  %v2389 = vpop.permute.xlu0 %2388
  %2392 = vset.pattern.permute.xlu0 0
  %2393 = vperm.xlu0 %2392, %v2319
  %v2394 = vpop.permute.xlu0 %2393
  %2397 = vset.pattern.permute.xlu0 0
  %2398 = vperm.xlu0 %2397, %v2320
  %v2399 = vpop.permute.xlu0 %2398
  %v2417 = vunpack.c.l.b16 %v2280
  %v2418 = vunpack.c.l.b16 %v2281
  %v2419 = vunpack.c.l.b16 %v2282
  %v2420 = vunpack.c.l.b16 %v2283
  %v2421 = vunpack.c.l.b16 %v2284
  %v2422 = vunpack.c.l.b16 %v2285
  %v2423 = vunpack.c.l.b16 %v2286
  %v2424 = vunpack.c.l.b16 %v2287
  %v2425 = vunpack.c.l.b16 %v2288
  %v2426 = vunpack.c.l.b16 %v2289
  %v2427 = vunpack.c.l.b16 %v2290
  %v2428 = vunpack.c.l.b16 %v2291
  %v2429 = vunpack.c.l.b16 %v2292
  %v2430 = vunpack.c.l.b16 %v2293
  %v2431 = vunpack.c.l.b16 %v2294
  %v2432 = vunpack.c.l.b16 %v2295
  %v2433 = vpack.c.b16 %v2418, %v2417
  %v2434 = vpack.c.b16 %v2420, %v2419
  %v2435 = vpack.c.b16 %v2422, %v2421
  %v2436 = vpack.c.b16 %v2424, %v2423
  %v2437 = vpack.c.b16 %v2426, %v2425
  %v2438 = vpack.c.b16 %v2428, %v2427
  %v2439 = vpack.c.b16 %v2430, %v2429
  %v2440 = vpack.c.b16 %v2432, %v2431
  %2449 = vmatpush.bf16.msra.mxu0 %v2303
  %2450 = vmatpush.bf16.msra.mxu0 %v2302
  %2451 = vmatpush.bf16.msra.mxu0 %v2301
  %2452 = vmatpush.bf16.msra.mxu0 %v2300
  %2453 = vmatpush.bf16.msra.mxu0 %v2299
  %2454 = vmatpush.bf16.msra.mxu0 %v2298
  %2455 = vmatpush.bf16.msra.mxu0 %v2297
  %2456 = vmatpush.bf16.msra.mxu0 %v2296
  %2457 = vmatmul.bf16.gmra.mxu0 %v2433
  %v2458 = vpop.f32.mrf.mxu0
  %v2459 = vadd.f32 %v2324, %v2458
  %v2460 = vpop.f32.mrf.mxu0
  %v2461 = vadd.f32 %v2329, %v2460
  %2462 = vmatmul.bf16.gmra.mxu0 %v2434
  %v2463 = vpop.f32.mrf.mxu0
  %v2464 = vadd.f32 %v2334, %v2463
  %v2465 = vpop.f32.mrf.mxu0
  %v2466 = vadd.f32 %v2339, %v2465
  %2467 = vmatmul.bf16.gmra.mxu0 %v2435
  %v2468 = vpop.f32.mrf.mxu0
  %v2469 = vadd.f32 %v2344, %v2468
  %v2470 = vpop.f32.mrf.mxu0
  %v2471 = vadd.f32 %v2349, %v2470
  %2472 = vmatmul.bf16.gmra.mxu0 %v2436
  %v2473 = vpop.f32.mrf.mxu0
  %v2474 = vadd.f32 %v2354, %v2473
  %v2475 = vpop.f32.mrf.mxu0
  %v2476 = vadd.f32 %v2359, %v2475
  %2477 = vmatmul.bf16.gmra.mxu0 %v2437
  %v2478 = vpop.f32.mrf.mxu0
  %v2479 = vadd.f32 %v2364, %v2478
  %v2480 = vpop.f32.mrf.mxu0
  %v2481 = vadd.f32 %v2369, %v2480
  %2482 = vmatmul.bf16.gmra.mxu0 %v2438
  %v2483 = vpop.f32.mrf.mxu0
  %v2484 = vadd.f32 %v2374, %v2483
  %v2485 = vpop.f32.mrf.mxu0
  %v2486 = vadd.f32 %v2379, %v2485
  %2487 = vmatmul.bf16.gmra.mxu0 %v2439
  %v2488 = vpop.f32.mrf.mxu0
  %v2489 = vadd.f32 %v2384, %v2488
  %v2490 = vpop.f32.mrf.mxu0
  %v2491 = vadd.f32 %v2389, %v2490
  %2492 = vmatmul.bf16.gmra.mxu0 %v2440
  %v2493 = vpop.f32.mrf.mxu0
  %v2494 = vadd.f32 %v2394, %v2493
  %v2495 = vpop.f32.mrf.mxu0
  %v2496 = vadd.f32 %v2399, %v2495
  %2497 = vdwg.mxu0
  %v2498 = vxor.u32 %v2459, 2147483648
  %v2499 = vxor.u32 %v2461, 2147483648
  %v2500 = vxor.u32 %v2464, 2147483648
  %v2501 = vxor.u32 %v2466, 2147483648
  %v2502 = vxor.u32 %v2469, 2147483648
  %v2503 = vxor.u32 %v2471, 2147483648
  %v2504 = vxor.u32 %v2474, 2147483648
  %v2505 = vxor.u32 %v2476, 2147483648
  %v2506 = vxor.u32 %v2479, 2147483648
  %v2507 = vxor.u32 %v2481, 2147483648
  %v2508 = vxor.u32 %v2484, 2147483648
  %v2509 = vxor.u32 %v2486, 2147483648
  %v2510 = vxor.u32 %v2489, 2147483648
  %v2511 = vxor.u32 %v2491, 2147483648
  %v2512 = vxor.u32 %v2494, 2147483648
  %v2513 = vxor.u32 %v2496, 2147483648
  %v2514 = vmul.f32 %v2498, 1.442695
  %v2515 = vpow.pop %v2514
  %v2516 = vmul.f32 %v2499, 1.442695
  %v2517 = vpow.pop %v2516
  %v2518 = vmul.f32 %v2500, 1.442695
  %v2519 = vpow.pop %v2518
  %v2520 = vmul.f32 %v2501, 1.442695
  %v2521 = vpow.pop %v2520
  %v2522 = vmul.f32 %v2502, 1.442695
  %v2523 = vpow.pop %v2522
  %v2524 = vmul.f32 %v2503, 1.442695
  %v2525 = vpow.pop %v2524
  %v2526 = vmul.f32 %v2504, 1.442695
  %v2527 = vpow.pop %v2526
  %v2528 = vmul.f32 %v2505, 1.442695
  %v2529 = vpow.pop %v2528
  %v2530 = vmul.f32 %v2506, 1.442695
  %v2531 = vpow.pop %v2530
  %v2532 = vmul.f32 %v2507, 1.442695
  %v2533 = vpow.pop %v2532
  %v2534 = vmul.f32 %v2508, 1.442695
  %v2535 = vpow.pop %v2534
  %v2536 = vmul.f32 %v2509, 1.442695
  %v2537 = vpow.pop %v2536
  %v2538 = vmul.f32 %v2510, 1.442695
  %v2539 = vpow.pop %v2538
  %v2540 = vmul.f32 %v2511, 1.442695
  %v2541 = vpow.pop %v2540
  %v2542 = vmul.f32 %v2512, 1.442695
  %v2543 = vpow.pop %v2542
  %v2544 = vmul.f32 %v2513, 1.442695
  %v2545 = vpow.pop %v2544
  %v2546 = vadd.f32 %v2515, 1.0
  %v2547 = vadd.f32 %v2517, 1.0
  %v2548 = vadd.f32 %v2519, 1.0
  %v2549 = vadd.f32 %v2521, 1.0
  %v2550 = vadd.f32 %v2523, 1.0
  %v2551 = vadd.f32 %v2525, 1.0
  %v2552 = vadd.f32 %v2527, 1.0
  %v2553 = vadd.f32 %v2529, 1.0
  %v2554 = vadd.f32 %v2531, 1.0
  %v2555 = vadd.f32 %v2533, 1.0
  %v2556 = vadd.f32 %v2535, 1.0
  %v2557 = vadd.f32 %v2537, 1.0
  %v2558 = vadd.f32 %v2539, 1.0
  %v2559 = vadd.f32 %v2541, 1.0
  %v2560 = vadd.f32 %v2543, 1.0
  %v2561 = vadd.f32 %v2545, 1.0
  %v2562 = vrcp.pop %v2546
  %v2563 = vmul.f32 %v2546, %v2562
  %v2564 = vsub.f32 1.0, %v2563
  %v2565 = vmul.f32 %v2562, %v2564
  %v2566 = vadd.f32 %v2562, %v2565
  %vm2567 = vweird.f32 %v2546
  %vm2568 = vweird.f32 %v2562
  %vm2569 = vmor %vm2567, %vm2568
  %v2570 = vsel %vm2569, %v2562, %v2566
  %v2571 = vand.u32 2147483647, %v2546
  %vm2572 = vcmp.eq.f32.partialorder %v2571, 8.507059e+37
  %v2573 = vand.u32 %v2546, 2147483648
  %v2574 = vor.u32 1.1754944e-38, %v2573
  %v2575 = vsel %vm2572, %v2574, %v2570
  %v2576 = vmul.f32 1.0, %v2575
  %v2577 = vrcp.pop %v2547
  %v2578 = vmul.f32 %v2547, %v2577
  %v2579 = vsub.f32 1.0, %v2578
  %v2580 = vmul.f32 %v2577, %v2579
  %v2581 = vadd.f32 %v2577, %v2580
  %vm2582 = vweird.f32 %v2547
  %vm2583 = vweird.f32 %v2577
  %vm2584 = vmor %vm2582, %vm2583
  %v2585 = vsel %vm2584, %v2577, %v2581
  %v2586 = vand.u32 2147483647, %v2547
  %vm2587 = vcmp.eq.f32.partialorder %v2586, 8.507059e+37
  %v2588 = vand.u32 %v2547, 2147483648
  %v2589 = vor.u32 1.1754944e-38, %v2588
  %v2590 = vsel %vm2587, %v2589, %v2585
  %v2591 = vmul.f32 1.0, %v2590
  %v2592 = vrcp.pop %v2548
  %v2593 = vmul.f32 %v2548, %v2592
  %v2594 = vsub.f32 1.0, %v2593
  %v2595 = vmul.f32 %v2592, %v2594
  %v2596 = vadd.f32 %v2592, %v2595
  %vm2597 = vweird.f32 %v2548
  %vm2598 = vweird.f32 %v2592
  %vm2599 = vmor %vm2597, %vm2598
  %v2600 = vsel %vm2599, %v2592, %v2596
  %v2601 = vand.u32 2147483647, %v2548
  %vm2602 = vcmp.eq.f32.partialorder %v2601, 8.507059e+37
  %v2603 = vand.u32 %v2548, 2147483648
  %v2604 = vor.u32 1.1754944e-38, %v2603
  %v2605 = vsel %vm2602, %v2604, %v2600
  %v2606 = vmul.f32 1.0, %v2605
  %v2607 = vrcp.pop %v2549
  %v2608 = vmul.f32 %v2549, %v2607
  %v2609 = vsub.f32 1.0, %v2608
  %v2610 = vmul.f32 %v2607, %v2609
  %v2611 = vadd.f32 %v2607, %v2610
  %vm2612 = vweird.f32 %v2549
  %vm2613 = vweird.f32 %v2607
  %vm2614 = vmor %vm2612, %vm2613
  %v2615 = vsel %vm2614, %v2607, %v2611
  %v2616 = vand.u32 2147483647, %v2549
  %vm2617 = vcmp.eq.f32.partialorder %v2616, 8.507059e+37
  %v2618 = vand.u32 %v2549, 2147483648
  %v2619 = vor.u32 1.1754944e-38, %v2618
  %v2620 = vsel %vm2617, %v2619, %v2615
  %v2621 = vmul.f32 1.0, %v2620
  %v2622 = vrcp.pop %v2550
  %v2623 = vmul.f32 %v2550, %v2622
  %v2624 = vsub.f32 1.0, %v2623
  %v2625 = vmul.f32 %v2622, %v2624
  %v2626 = vadd.f32 %v2622, %v2625
  %vm2627 = vweird.f32 %v2550
  %vm2628 = vweird.f32 %v2622
  %vm2629 = vmor %vm2627, %vm2628
  %v2630 = vsel %vm2629, %v2622, %v2626
  %v2631 = vand.u32 2147483647, %v2550
  %vm2632 = vcmp.eq.f32.partialorder %v2631, 8.507059e+37
  %v2633 = vand.u32 %v2550, 2147483648
  %v2634 = vor.u32 1.1754944e-38, %v2633
  %v2635 = vsel %vm2632, %v2634, %v2630
  %v2636 = vmul.f32 1.0, %v2635
  %v2637 = vrcp.pop %v2551
  %v2638 = vmul.f32 %v2551, %v2637
  %v2639 = vsub.f32 1.0, %v2638
  %v2640 = vmul.f32 %v2637, %v2639
  %v2641 = vadd.f32 %v2637, %v2640
  %vm2642 = vweird.f32 %v2551
  %vm2643 = vweird.f32 %v2637
  %vm2644 = vmor %vm2642, %vm2643
  %v2645 = vsel %vm2644, %v2637, %v2641
  %v2646 = vand.u32 2147483647, %v2551
  %vm2647 = vcmp.eq.f32.partialorder %v2646, 8.507059e+37
  %v2648 = vand.u32 %v2551, 2147483648
  %v2649 = vor.u32 1.1754944e-38, %v2648
  %v2650 = vsel %vm2647, %v2649, %v2645
  %v2651 = vmul.f32 1.0, %v2650
  %v2652 = vrcp.pop %v2552
  %v2653 = vmul.f32 %v2552, %v2652
  %v2654 = vsub.f32 1.0, %v2653
  %v2655 = vmul.f32 %v2652, %v2654
  %v2656 = vadd.f32 %v2652, %v2655
  %vm2657 = vweird.f32 %v2552
  %vm2658 = vweird.f32 %v2652
  %vm2659 = vmor %vm2657, %vm2658
  %v2660 = vsel %vm2659, %v2652, %v2656
  %v2661 = vand.u32 2147483647, %v2552
  %vm2662 = vcmp.eq.f32.partialorder %v2661, 8.507059e+37
  %v2663 = vand.u32 %v2552, 2147483648
  %v2664 = vor.u32 1.1754944e-38, %v2663
  %v2665 = vsel %vm2662, %v2664, %v2660
  %v2666 = vmul.f32 1.0, %v2665
  %v2667 = vrcp.pop %v2553
  %v2668 = vmul.f32 %v2553, %v2667
  %v2669 = vsub.f32 1.0, %v2668
  %v2670 = vmul.f32 %v2667, %v2669
  %v2671 = vadd.f32 %v2667, %v2670
  %vm2672 = vweird.f32 %v2553
  %vm2673 = vweird.f32 %v2667
  %vm2674 = vmor %vm2672, %vm2673
  %v2675 = vsel %vm2674, %v2667, %v2671
  %v2676 = vand.u32 2147483647, %v2553
  %vm2677 = vcmp.eq.f32.partialorder %v2676, 8.507059e+37
  %v2678 = vand.u32 %v2553, 2147483648
  %v2679 = vor.u32 1.1754944e-38, %v2678
  %v2680 = vsel %vm2677, %v2679, %v2675
  %v2681 = vmul.f32 1.0, %v2680
  %v2682 = vrcp.pop %v2554
  %v2683 = vmul.f32 %v2554, %v2682
  %v2684 = vsub.f32 1.0, %v2683
  %v2685 = vmul.f32 %v2682, %v2684
  %v2686 = vadd.f32 %v2682, %v2685
  %vm2687 = vweird.f32 %v2554
  %vm2688 = vweird.f32 %v2682
  %vm2689 = vmor %vm2687, %vm2688
  %v2690 = vsel %vm2689, %v2682, %v2686
  %v2691 = vand.u32 2147483647, %v2554
  %vm2692 = vcmp.eq.f32.partialorder %v2691, 8.507059e+37
  %v2693 = vand.u32 %v2554, 2147483648
  %v2694 = vor.u32 1.1754944e-38, %v2693
  %v2695 = vsel %vm2692, %v2694, %v2690
  %v2696 = vmul.f32 1.0, %v2695
  %v2697 = vrcp.pop %v2555
  %v2698 = vmul.f32 %v2555, %v2697
  %v2699 = vsub.f32 1.0, %v2698
  %v2700 = vmul.f32 %v2697, %v2699
  %v2701 = vadd.f32 %v2697, %v2700
  %vm2702 = vweird.f32 %v2555
  %vm2703 = vweird.f32 %v2697
  %vm2704 = vmor %vm2702, %vm2703
  %v2705 = vsel %vm2704, %v2697, %v2701
  %v2706 = vand.u32 2147483647, %v2555
  %vm2707 = vcmp.eq.f32.partialorder %v2706, 8.507059e+37
  %v2708 = vand.u32 %v2555, 2147483648
  %v2709 = vor.u32 1.1754944e-38, %v2708
  %v2710 = vsel %vm2707, %v2709, %v2705
  %v2711 = vmul.f32 1.0, %v2710
  %v2712 = vrcp.pop %v2556
  %v2713 = vmul.f32 %v2556, %v2712
  %v2714 = vsub.f32 1.0, %v2713
  %v2715 = vmul.f32 %v2712, %v2714
  %v2716 = vadd.f32 %v2712, %v2715
  %vm2717 = vweird.f32 %v2556
  %vm2718 = vweird.f32 %v2712
  %vm2719 = vmor %vm2717, %vm2718
  %v2720 = vsel %vm2719, %v2712, %v2716
  %v2721 = vand.u32 2147483647, %v2556
  %vm2722 = vcmp.eq.f32.partialorder %v2721, 8.507059e+37
  %v2723 = vand.u32 %v2556, 2147483648
  %v2724 = vor.u32 1.1754944e-38, %v2723
  %v2725 = vsel %vm2722, %v2724, %v2720
  %v2726 = vmul.f32 1.0, %v2725
  %v2727 = vrcp.pop %v2557
  %v2728 = vmul.f32 %v2557, %v2727
  %v2729 = vsub.f32 1.0, %v2728
  %v2730 = vmul.f32 %v2727, %v2729
  %v2731 = vadd.f32 %v2727, %v2730
  %vm2732 = vweird.f32 %v2557
  %vm2733 = vweird.f32 %v2727
  %vm2734 = vmor %vm2732, %vm2733
  %v2735 = vsel %vm2734, %v2727, %v2731
  %v2736 = vand.u32 2147483647, %v2557
  %vm2737 = vcmp.eq.f32.partialorder %v2736, 8.507059e+37
  %v2738 = vand.u32 %v2557, 2147483648
  %v2739 = vor.u32 1.1754944e-38, %v2738
  %v2740 = vsel %vm2737, %v2739, %v2735
  %v2741 = vmul.f32 1.0, %v2740
  %v2742 = vrcp.pop %v2558
  %v2743 = vmul.f32 %v2558, %v2742
  %v2744 = vsub.f32 1.0, %v2743
  %v2745 = vmul.f32 %v2742, %v2744
  %v2746 = vadd.f32 %v2742, %v2745
  %vm2747 = vweird.f32 %v2558
  %vm2748 = vweird.f32 %v2742
  %vm2749 = vmor %vm2747, %vm2748
  %v2750 = vsel %vm2749, %v2742, %v2746
  %v2751 = vand.u32 2147483647, %v2558
  %vm2752 = vcmp.eq.f32.partialorder %v2751, 8.507059e+37
  %v2753 = vand.u32 %v2558, 2147483648
  %v2754 = vor.u32 1.1754944e-38, %v2753
  %v2755 = vsel %vm2752, %v2754, %v2750
  %v2756 = vmul.f32 1.0, %v2755
  %v2757 = vrcp.pop %v2559
  %v2758 = vmul.f32 %v2559, %v2757
  %v2759 = vsub.f32 1.0, %v2758
  %v2760 = vmul.f32 %v2757, %v2759
  %v2761 = vadd.f32 %v2757, %v2760
  %vm2762 = vweird.f32 %v2559
  %vm2763 = vweird.f32 %v2757
  %vm2764 = vmor %vm2762, %vm2763
  %v2765 = vsel %vm2764, %v2757, %v2761
  %v2766 = vand.u32 2147483647, %v2559
  %vm2767 = vcmp.eq.f32.partialorder %v2766, 8.507059e+37
  %v2768 = vand.u32 %v2559, 2147483648
  %v2769 = vor.u32 1.1754944e-38, %v2768
  %v2770 = vsel %vm2767, %v2769, %v2765
  %v2771 = vmul.f32 1.0, %v2770
  %v2772 = vrcp.pop %v2560
  %v2773 = vmul.f32 %v2560, %v2772
  %v2774 = vsub.f32 1.0, %v2773
  %v2775 = vmul.f32 %v2772, %v2774
  %v2776 = vadd.f32 %v2772, %v2775
  %vm2777 = vweird.f32 %v2560
  %vm2778 = vweird.f32 %v2772
  %vm2779 = vmor %vm2777, %vm2778
  %v2780 = vsel %vm2779, %v2772, %v2776
  %v2781 = vand.u32 2147483647, %v2560
  %vm2782 = vcmp.eq.f32.partialorder %v2781, 8.507059e+37
  %v2783 = vand.u32 %v2560, 2147483648
  %v2784 = vor.u32 1.1754944e-38, %v2783
  %v2785 = vsel %vm2782, %v2784, %v2780
  %v2786 = vmul.f32 1.0, %v2785
  %v2787 = vrcp.pop %v2561
  %v2788 = vmul.f32 %v2561, %v2787
  %v2789 = vsub.f32 1.0, %v2788
  %v2790 = vmul.f32 %v2787, %v2789
  %v2791 = vadd.f32 %v2787, %v2790
  %vm2792 = vweird.f32 %v2561
  %vm2793 = vweird.f32 %v2787
  %vm2794 = vmor %vm2792, %vm2793
  %v2795 = vsel %vm2794, %v2787, %v2791
  %v2796 = vand.u32 2147483647, %v2561
  %vm2797 = vcmp.eq.f32.partialorder %v2796, 8.507059e+37
  %v2798 = vand.u32 %v2561, 2147483648
  %v2799 = vor.u32 1.1754944e-38, %v2798
  %v2800 = vsel %vm2797, %v2799, %v2795
  %v2801 = vmul.f32 1.0, %v2800
  %v2802 = vmul.f32 %v2459, %v2576
  %v2803 = vmul.f32 %v2461, %v2591
  %v2804 = vmul.f32 %v2464, %v2606
  %v2805 = vmul.f32 %v2466, %v2621
  %v2806 = vmul.f32 %v2469, %v2636
  %v2807 = vmul.f32 %v2471, %v2651
  %v2808 = vmul.f32 %v2474, %v2666
  %v2809 = vmul.f32 %v2476, %v2681
  %v2810 = vmul.f32 %v2479, %v2696
  %v2811 = vmul.f32 %v2481, %v2711
  %v2812 = vmul.f32 %v2484, %v2726
  %v2813 = vmul.f32 %v2486, %v2741
  %v2814 = vmul.f32 %v2489, %v2756
  %v2815 = vmul.f32 %v2491, %v2771
  %v2816 = vmul.f32 %v2494, %v2786
  %v2817 = vmul.f32 %v2496, %v2801
  %s2818 = scalar_lea.vmem %s2, 256
  %v2819 = vld [vmem:[%s2818] sm:$0xf]
  %v2820 = vld [vmem:[%s2818 + $0x4] sm:$0xf]
  %v2821 = vld [vmem:[%s2818 + $0x8] sm:$0xf]
  %v2822 = vld [vmem:[%s2818 + $0xc] sm:$0xf]
  %v2823 = vld [vmem:[%s2818 + $0x10] sm:$0xf]
  %v2824 = vld [vmem:[%s2818 + $0x14] sm:$0xf]
  %v2825 = vld [vmem:[%s2818 + $0x18] sm:$0xf]
  %v2826 = vld [vmem:[%s2818 + $0x1c] sm:$0xf]
  %v2827 = vld [vmem:[%s2818 + $0x20] sm:$0xf]
  %v2828 = vld [vmem:[%s2818 + $0x24] sm:$0xf]
  %v2829 = vld [vmem:[%s2818 + $0x28] sm:$0xf]
  %v2830 = vld [vmem:[%s2818 + $0x2c] sm:$0xf]
  %v2831 = vld [vmem:[%s2818 + $0x30] sm:$0xf]
  %v2832 = vld [vmem:[%s2818 + $0x34] sm:$0xf]
  %v2833 = vld [vmem:[%s2818 + $0x38] sm:$0xf]
  %v2834 = vld [vmem:[%s2818 + $0x3c] sm:$0xf]
  %v2835 = vpack.c.bf16 %v2803, %v2802
  %v2836 = vpack.c.bf16 %v2805, %v2804
  %v2837 = vpack.c.bf16 %v2807, %v2806
  %v2838 = vpack.c.bf16 %v2809, %v2808
  %v2839 = vpack.c.bf16 %v2811, %v2810
  %v2840 = vpack.c.bf16 %v2813, %v2812
  %v2841 = vpack.c.bf16 %v2815, %v2814
  %v2842 = vpack.c.bf16 %v2817, %v2816
  %s2843 = scalar_lea.vmem %s4, 640
  %v2844 = vld [vmem:[%s2843] sm:$0xff]
  %v2845 = vld [vmem:[%s2843 + $0x8] sm:$0xff]
  %v2846 = vld [vmem:[%s2843 + $0x10] sm:$0xff]
  %v2847 = vld [vmem:[%s2843 + $0x18] sm:$0xff]
  %v2848 = vld [vmem:[%s2843 + $0x20] sm:$0xff]
  %v2849 = vld [vmem:[%s2843 + $0x28] sm:$0xff]
  %v2850 = vld [vmem:[%s2843 + $0x30] sm:$0xff]
  %v2851 = vld [vmem:[%s2843 + $0x38] sm:$0xff]
  %v2852 = vld [vmem:[%s2843 + $0x40] sm:$0xff]
  %v2853 = vld [vmem:[%s2843 + $0x48] sm:$0xff]
  %v2854 = vld [vmem:[%s2843 + $0x50] sm:$0xff]
  %v2855 = vld [vmem:[%s2843 + $0x58] sm:$0xff]
  %v2856 = vld [vmem:[%s2843 + $0x60] sm:$0xff]
  %v2857 = vld [vmem:[%s2843 + $0x68] sm:$0xff]
  %v2858 = vld [vmem:[%s2843 + $0x70] sm:$0xff]
  %v2859 = vld [vmem:[%s2843 + $0x78] sm:$0xff]
  %2861 = vset.pattern.permute.xlu0 0
  %2862 = vperm.xlu0 %2861, %v2844
  %v2863 = vpop.permute.xlu0 %2862
  %2866 = vset.pattern.permute.xlu0 0
  %2867 = vperm.xlu0 %2866, %v2845
  %v2868 = vpop.permute.xlu0 %2867
  %2871 = vset.pattern.permute.xlu0 0
  %2872 = vperm.xlu0 %2871, %v2846
  %v2873 = vpop.permute.xlu0 %2872
  %2876 = vset.pattern.permute.xlu0 0
  %2877 = vperm.xlu0 %2876, %v2847
  %v2878 = vpop.permute.xlu0 %2877
  %2881 = vset.pattern.permute.xlu0 0
  %2882 = vperm.xlu0 %2881, %v2848
  %v2883 = vpop.permute.xlu0 %2882
  %2886 = vset.pattern.permute.xlu0 0
  %2887 = vperm.xlu0 %2886, %v2849
  %v2888 = vpop.permute.xlu0 %2887
  %2891 = vset.pattern.permute.xlu0 0
  %2892 = vperm.xlu0 %2891, %v2850
  %v2893 = vpop.permute.xlu0 %2892
  %2896 = vset.pattern.permute.xlu0 0
  %2897 = vperm.xlu0 %2896, %v2851
  %v2898 = vpop.permute.xlu0 %2897
  %2901 = vset.pattern.permute.xlu0 0
  %2902 = vperm.xlu0 %2901, %v2852
  %v2903 = vpop.permute.xlu0 %2902
  %2906 = vset.pattern.permute.xlu0 0
  %2907 = vperm.xlu0 %2906, %v2853
  %v2908 = vpop.permute.xlu0 %2907
  %2911 = vset.pattern.permute.xlu0 0
  %2912 = vperm.xlu0 %2911, %v2854
  %v2913 = vpop.permute.xlu0 %2912
  %2916 = vset.pattern.permute.xlu0 0
  %2917 = vperm.xlu0 %2916, %v2855
  %v2918 = vpop.permute.xlu0 %2917
  %2921 = vset.pattern.permute.xlu0 0
  %2922 = vperm.xlu0 %2921, %v2856
  %v2923 = vpop.permute.xlu0 %2922
  %2926 = vset.pattern.permute.xlu0 0
  %2927 = vperm.xlu0 %2926, %v2857
  %v2928 = vpop.permute.xlu0 %2927
  %2931 = vset.pattern.permute.xlu0 0
  %2932 = vperm.xlu0 %2931, %v2858
  %v2933 = vpop.permute.xlu0 %2932
  %2936 = vset.pattern.permute.xlu0 0
  %2937 = vperm.xlu0 %2936, %v2859
  %v2938 = vpop.permute.xlu0 %2937
  %v2956 = vunpack.c.l.b16 %v2819
  %v2957 = vunpack.c.l.b16 %v2820
  %v2958 = vunpack.c.l.b16 %v2821
  %v2959 = vunpack.c.l.b16 %v2822
  %v2960 = vunpack.c.l.b16 %v2823
  %v2961 = vunpack.c.l.b16 %v2824
  %v2962 = vunpack.c.l.b16 %v2825
  %v2963 = vunpack.c.l.b16 %v2826
  %v2964 = vunpack.c.l.b16 %v2827
  %v2965 = vunpack.c.l.b16 %v2828
  %v2966 = vunpack.c.l.b16 %v2829
  %v2967 = vunpack.c.l.b16 %v2830
  %v2968 = vunpack.c.l.b16 %v2831
  %v2969 = vunpack.c.l.b16 %v2832
  %v2970 = vunpack.c.l.b16 %v2833
  %v2971 = vunpack.c.l.b16 %v2834
  %v2972 = vpack.c.b16 %v2957, %v2956
  %v2973 = vpack.c.b16 %v2959, %v2958
  %v2974 = vpack.c.b16 %v2961, %v2960
  %v2975 = vpack.c.b16 %v2963, %v2962
  %v2976 = vpack.c.b16 %v2965, %v2964
  %v2977 = vpack.c.b16 %v2967, %v2966
  %v2978 = vpack.c.b16 %v2969, %v2968
  %v2979 = vpack.c.b16 %v2971, %v2970
  %2988 = vmatpush.bf16.msra.mxu0 %v2842
  %2989 = vmatpush.bf16.msra.mxu0 %v2841
  %2990 = vmatpush.bf16.msra.mxu0 %v2840
  %2991 = vmatpush.bf16.msra.mxu0 %v2839
  %2992 = vmatpush.bf16.msra.mxu0 %v2838
  %2993 = vmatpush.bf16.msra.mxu0 %v2837
  %2994 = vmatpush.bf16.msra.mxu0 %v2836
  %2995 = vmatpush.bf16.msra.mxu0 %v2835
  %2996 = vmatmul.bf16.gmra.mxu0 %v2972
  %v2997 = vpop.f32.mrf.mxu0
  %v2998 = vadd.f32 %v2863, %v2997
  %v2999 = vpop.f32.mrf.mxu0
  %v3000 = vadd.f32 %v2868, %v2999
  %3001 = vmatmul.bf16.gmra.mxu0 %v2973
  %v3002 = vpop.f32.mrf.mxu0
  %v3003 = vadd.f32 %v2873, %v3002
  %v3004 = vpop.f32.mrf.mxu0
  %v3005 = vadd.f32 %v2878, %v3004
  %3006 = vmatmul.bf16.gmra.mxu0 %v2974
  %v3007 = vpop.f32.mrf.mxu0
  %v3008 = vadd.f32 %v2883, %v3007
  %v3009 = vpop.f32.mrf.mxu0
  %v3010 = vadd.f32 %v2888, %v3009
  %3011 = vmatmul.bf16.gmra.mxu0 %v2975
  %v3012 = vpop.f32.mrf.mxu0
  %v3013 = vadd.f32 %v2893, %v3012
  %v3014 = vpop.f32.mrf.mxu0
  %v3015 = vadd.f32 %v2898, %v3014
  %3016 = vmatmul.bf16.gmra.mxu0 %v2976
  %v3017 = vpop.f32.mrf.mxu0
  %v3018 = vadd.f32 %v2903, %v3017
  %v3019 = vpop.f32.mrf.mxu0
  %v3020 = vadd.f32 %v2908, %v3019
  %3021 = vmatmul.bf16.gmra.mxu0 %v2977
  %v3022 = vpop.f32.mrf.mxu0
  %v3023 = vadd.f32 %v2913, %v3022
  %v3024 = vpop.f32.mrf.mxu0
  %v3025 = vadd.f32 %v2918, %v3024
  %3026 = vmatmul.bf16.gmra.mxu0 %v2978
  %v3027 = vpop.f32.mrf.mxu0
  %v3028 = vadd.f32 %v2923, %v3027
  %v3029 = vpop.f32.mrf.mxu0
  %v3030 = vadd.f32 %v2928, %v3029
  %3031 = vmatmul.bf16.gmra.mxu0 %v2979
  %v3032 = vpop.f32.mrf.mxu0
  %v3033 = vadd.f32 %v2933, %v3032
  %v3034 = vpop.f32.mrf.mxu0
  %v3035 = vadd.f32 %v2938, %v3034
  %3036 = vdwg.mxu0
  %v3037 = vxor.u32 %v2998, 2147483648
  %v3038 = vxor.u32 %v3000, 2147483648
  %v3039 = vxor.u32 %v3003, 2147483648
  %v3040 = vxor.u32 %v3005, 2147483648
  %v3041 = vxor.u32 %v3008, 2147483648
  %v3042 = vxor.u32 %v3010, 2147483648
  %v3043 = vxor.u32 %v3013, 2147483648
  %v3044 = vxor.u32 %v3015, 2147483648
  %v3045 = vxor.u32 %v3018, 2147483648
  %v3046 = vxor.u32 %v3020, 2147483648
  %v3047 = vxor.u32 %v3023, 2147483648
  %v3048 = vxor.u32 %v3025, 2147483648
  %v3049 = vxor.u32 %v3028, 2147483648
  %v3050 = vxor.u32 %v3030, 2147483648
  %v3051 = vxor.u32 %v3033, 2147483648
  %v3052 = vxor.u32 %v3035, 2147483648
  %v3053 = vmul.f32 %v3037, 1.442695
  %v3054 = vpow.pop %v3053
  %v3055 = vmul.f32 %v3038, 1.442695
  %v3056 = vpow.pop %v3055
  %v3057 = vmul.f32 %v3039, 1.442695
  %v3058 = vpow.pop %v3057
  %v3059 = vmul.f32 %v3040, 1.442695
  %v3060 = vpow.pop %v3059
  %v3061 = vmul.f32 %v3041, 1.442695
  %v3062 = vpow.pop %v3061
  %v3063 = vmul.f32 %v3042, 1.442695
  %v3064 = vpow.pop %v3063
  %v3065 = vmul.f32 %v3043, 1.442695
  %v3066 = vpow.pop %v3065
  %v3067 = vmul.f32 %v3044, 1.442695
  %v3068 = vpow.pop %v3067
  %v3069 = vmul.f32 %v3045, 1.442695
  %v3070 = vpow.pop %v3069
  %v3071 = vmul.f32 %v3046, 1.442695
  %v3072 = vpow.pop %v3071
  %v3073 = vmul.f32 %v3047, 1.442695
  %v3074 = vpow.pop %v3073
  %v3075 = vmul.f32 %v3048, 1.442695
  %v3076 = vpow.pop %v3075
  %v3077 = vmul.f32 %v3049, 1.442695
  %v3078 = vpow.pop %v3077
  %v3079 = vmul.f32 %v3050, 1.442695
  %v3080 = vpow.pop %v3079
  %v3081 = vmul.f32 %v3051, 1.442695
  %v3082 = vpow.pop %v3081
  %v3083 = vmul.f32 %v3052, 1.442695
  %v3084 = vpow.pop %v3083
  %v3085 = vadd.f32 %v3054, 1.0
  %v3086 = vadd.f32 %v3056, 1.0
  %v3087 = vadd.f32 %v3058, 1.0
  %v3088 = vadd.f32 %v3060, 1.0
  %v3089 = vadd.f32 %v3062, 1.0
  %v3090 = vadd.f32 %v3064, 1.0
  %v3091 = vadd.f32 %v3066, 1.0
  %v3092 = vadd.f32 %v3068, 1.0
  %v3093 = vadd.f32 %v3070, 1.0
  %v3094 = vadd.f32 %v3072, 1.0
  %v3095 = vadd.f32 %v3074, 1.0
  %v3096 = vadd.f32 %v3076, 1.0
  %v3097 = vadd.f32 %v3078, 1.0
  %v3098 = vadd.f32 %v3080, 1.0
  %v3099 = vadd.f32 %v3082, 1.0
  %v3100 = vadd.f32 %v3084, 1.0
  %v3101 = vrcp.pop %v3085
  %v3102 = vmul.f32 %v3085, %v3101
  %v3103 = vsub.f32 1.0, %v3102
  %v3104 = vmul.f32 %v3101, %v3103
  %v3105 = vadd.f32 %v3101, %v3104
  %vm3106 = vweird.f32 %v3085
  %vm3107 = vweird.f32 %v3101
  %vm3108 = vmor %vm3106, %vm3107
  %v3109 = vsel %vm3108, %v3101, %v3105
  %v3110 = vand.u32 2147483647, %v3085
  %vm3111 = vcmp.eq.f32.partialorder %v3110, 8.507059e+37
  %v3112 = vand.u32 %v3085, 2147483648
  %v3113 = vor.u32 1.1754944e-38, %v3112
  %v3114 = vsel %vm3111, %v3113, %v3109
  %v3115 = vmul.f32 1.0, %v3114
  %v3116 = vrcp.pop %v3086
  %v3117 = vmul.f32 %v3086, %v3116
  %v3118 = vsub.f32 1.0, %v3117
  %v3119 = vmul.f32 %v3116, %v3118
  %v3120 = vadd.f32 %v3116, %v3119
  %vm3121 = vweird.f32 %v3086
  %vm3122 = vweird.f32 %v3116
  %vm3123 = vmor %vm3121, %vm3122
  %v3124 = vsel %vm3123, %v3116, %v3120
  %v3125 = vand.u32 2147483647, %v3086
  %vm3126 = vcmp.eq.f32.partialorder %v3125, 8.507059e+37
  %v3127 = vand.u32 %v3086, 2147483648
  %v3128 = vor.u32 1.1754944e-38, %v3127
  %v3129 = vsel %vm3126, %v3128, %v3124
  %v3130 = vmul.f32 1.0, %v3129
  %v3131 = vrcp.pop %v3087
  %v3132 = vmul.f32 %v3087, %v3131
  %v3133 = vsub.f32 1.0, %v3132
  %v3134 = vmul.f32 %v3131, %v3133
  %v3135 = vadd.f32 %v3131, %v3134
  %vm3136 = vweird.f32 %v3087
  %vm3137 = vweird.f32 %v3131
  %vm3138 = vmor %vm3136, %vm3137
  %v3139 = vsel %vm3138, %v3131, %v3135
  %v3140 = vand.u32 2147483647, %v3087
  %vm3141 = vcmp.eq.f32.partialorder %v3140, 8.507059e+37
  %v3142 = vand.u32 %v3087, 2147483648
  %v3143 = vor.u32 1.1754944e-38, %v3142
  %v3144 = vsel %vm3141, %v3143, %v3139
  %v3145 = vmul.f32 1.0, %v3144
  %v3146 = vrcp.pop %v3088
  %v3147 = vmul.f32 %v3088, %v3146
  %v3148 = vsub.f32 1.0, %v3147
  %v3149 = vmul.f32 %v3146, %v3148
  %v3150 = vadd.f32 %v3146, %v3149
  %vm3151 = vweird.f32 %v3088
  %vm3152 = vweird.f32 %v3146
  %vm3153 = vmor %vm3151, %vm3152
  %v3154 = vsel %vm3153, %v3146, %v3150
  %v3155 = vand.u32 2147483647, %v3088
  %vm3156 = vcmp.eq.f32.partialorder %v3155, 8.507059e+37
  %v3157 = vand.u32 %v3088, 2147483648
  %v3158 = vor.u32 1.1754944e-38, %v3157
  %v3159 = vsel %vm3156, %v3158, %v3154
  %v3160 = vmul.f32 1.0, %v3159
  %v3161 = vrcp.pop %v3089
  %v3162 = vmul.f32 %v3089, %v3161
  %v3163 = vsub.f32 1.0, %v3162
  %v3164 = vmul.f32 %v3161, %v3163
  %v3165 = vadd.f32 %v3161, %v3164
  %vm3166 = vweird.f32 %v3089
  %vm3167 = vweird.f32 %v3161
  %vm3168 = vmor %vm3166, %vm3167
  %v3169 = vsel %vm3168, %v3161, %v3165
  %v3170 = vand.u32 2147483647, %v3089
  %vm3171 = vcmp.eq.f32.partialorder %v3170, 8.507059e+37
  %v3172 = vand.u32 %v3089, 2147483648
  %v3173 = vor.u32 1.1754944e-38, %v3172
  %v3174 = vsel %vm3171, %v3173, %v3169
  %v3175 = vmul.f32 1.0, %v3174
  %v3176 = vrcp.pop %v3090
  %v3177 = vmul.f32 %v3090, %v3176
  %v3178 = vsub.f32 1.0, %v3177
  %v3179 = vmul.f32 %v3176, %v3178
  %v3180 = vadd.f32 %v3176, %v3179
  %vm3181 = vweird.f32 %v3090
  %vm3182 = vweird.f32 %v3176
  %vm3183 = vmor %vm3181, %vm3182
  %v3184 = vsel %vm3183, %v3176, %v3180
  %v3185 = vand.u32 2147483647, %v3090
  %vm3186 = vcmp.eq.f32.partialorder %v3185, 8.507059e+37
  %v3187 = vand.u32 %v3090, 2147483648
  %v3188 = vor.u32 1.1754944e-38, %v3187
  %v3189 = vsel %vm3186, %v3188, %v3184
  %v3190 = vmul.f32 1.0, %v3189
  %v3191 = vrcp.pop %v3091
  %v3192 = vmul.f32 %v3091, %v3191
  %v3193 = vsub.f32 1.0, %v3192
  %v3194 = vmul.f32 %v3191, %v3193
  %v3195 = vadd.f32 %v3191, %v3194
  %vm3196 = vweird.f32 %v3091
  %vm3197 = vweird.f32 %v3191
  %vm3198 = vmor %vm3196, %vm3197
  %v3199 = vsel %vm3198, %v3191, %v3195
  %v3200 = vand.u32 2147483647, %v3091
  %vm3201 = vcmp.eq.f32.partialorder %v3200, 8.507059e+37
  %v3202 = vand.u32 %v3091, 2147483648
  %v3203 = vor.u32 1.1754944e-38, %v3202
  %v3204 = vsel %vm3201, %v3203, %v3199
  %v3205 = vmul.f32 1.0, %v3204
  %v3206 = vrcp.pop %v3092
  %v3207 = vmul.f32 %v3092, %v3206
  %v3208 = vsub.f32 1.0, %v3207
  %v3209 = vmul.f32 %v3206, %v3208
  %v3210 = vadd.f32 %v3206, %v3209
  %vm3211 = vweird.f32 %v3092
  %vm3212 = vweird.f32 %v3206
  %vm3213 = vmor %vm3211, %vm3212
  %v3214 = vsel %vm3213, %v3206, %v3210
  %v3215 = vand.u32 2147483647, %v3092
  %vm3216 = vcmp.eq.f32.partialorder %v3215, 8.507059e+37
  %v3217 = vand.u32 %v3092, 2147483648
  %v3218 = vor.u32 1.1754944e-38, %v3217
  %v3219 = vsel %vm3216, %v3218, %v3214
  %v3220 = vmul.f32 1.0, %v3219
  %v3221 = vrcp.pop %v3093
  %v3222 = vmul.f32 %v3093, %v3221
  %v3223 = vsub.f32 1.0, %v3222
  %v3224 = vmul.f32 %v3221, %v3223
  %v3225 = vadd.f32 %v3221, %v3224
  %vm3226 = vweird.f32 %v3093
  %vm3227 = vweird.f32 %v3221
  %vm3228 = vmor %vm3226, %vm3227
  %v3229 = vsel %vm3228, %v3221, %v3225
  %v3230 = vand.u32 2147483647, %v3093
  %vm3231 = vcmp.eq.f32.partialorder %v3230, 8.507059e+37
  %v3232 = vand.u32 %v3093, 2147483648
  %v3233 = vor.u32 1.1754944e-38, %v3232
  %v3234 = vsel %vm3231, %v3233, %v3229
  %v3235 = vmul.f32 1.0, %v3234
  %v3236 = vrcp.pop %v3094
  %v3237 = vmul.f32 %v3094, %v3236
  %v3238 = vsub.f32 1.0, %v3237
  %v3239 = vmul.f32 %v3236, %v3238
  %v3240 = vadd.f32 %v3236, %v3239
  %vm3241 = vweird.f32 %v3094
  %vm3242 = vweird.f32 %v3236
  %vm3243 = vmor %vm3241, %vm3242
  %v3244 = vsel %vm3243, %v3236, %v3240
  %v3245 = vand.u32 2147483647, %v3094
  %vm3246 = vcmp.eq.f32.partialorder %v3245, 8.507059e+37
  %v3247 = vand.u32 %v3094, 2147483648
  %v3248 = vor.u32 1.1754944e-38, %v3247
  %v3249 = vsel %vm3246, %v3248, %v3244
  %v3250 = vmul.f32 1.0, %v3249
  %v3251 = vrcp.pop %v3095
  %v3252 = vmul.f32 %v3095, %v3251
  %v3253 = vsub.f32 1.0, %v3252
  %v3254 = vmul.f32 %v3251, %v3253
  %v3255 = vadd.f32 %v3251, %v3254
  %vm3256 = vweird.f32 %v3095
  %vm3257 = vweird.f32 %v3251
  %vm3258 = vmor %vm3256, %vm3257
  %v3259 = vsel %vm3258, %v3251, %v3255
  %v3260 = vand.u32 2147483647, %v3095
  %vm3261 = vcmp.eq.f32.partialorder %v3260, 8.507059e+37
  %v3262 = vand.u32 %v3095, 2147483648
  %v3263 = vor.u32 1.1754944e-38, %v3262
  %v3264 = vsel %vm3261, %v3263, %v3259
  %v3265 = vmul.f32 1.0, %v3264
  %v3266 = vrcp.pop %v3096
  %v3267 = vmul.f32 %v3096, %v3266
  %v3268 = vsub.f32 1.0, %v3267
  %v3269 = vmul.f32 %v3266, %v3268
  %v3270 = vadd.f32 %v3266, %v3269
  %vm3271 = vweird.f32 %v3096
  %vm3272 = vweird.f32 %v3266
  %vm3273 = vmor %vm3271, %vm3272
  %v3274 = vsel %vm3273, %v3266, %v3270
  %v3275 = vand.u32 2147483647, %v3096
  %vm3276 = vcmp.eq.f32.partialorder %v3275, 8.507059e+37
  %v3277 = vand.u32 %v3096, 2147483648
  %v3278 = vor.u32 1.1754944e-38, %v3277
  %v3279 = vsel %vm3276, %v3278, %v3274
  %v3280 = vmul.f32 1.0, %v3279
  %v3281 = vrcp.pop %v3097
  %v3282 = vmul.f32 %v3097, %v3281
  %v3283 = vsub.f32 1.0, %v3282
  %v3284 = vmul.f32 %v3281, %v3283
  %v3285 = vadd.f32 %v3281, %v3284
  %vm3286 = vweird.f32 %v3097
  %vm3287 = vweird.f32 %v3281
  %vm3288 = vmor %vm3286, %vm3287
  %v3289 = vsel %vm3288, %v3281, %v3285
  %v3290 = vand.u32 2147483647, %v3097
  %vm3291 = vcmp.eq.f32.partialorder %v3290, 8.507059e+37
  %v3292 = vand.u32 %v3097, 2147483648
  %v3293 = vor.u32 1.1754944e-38, %v3292
  %v3294 = vsel %vm3291, %v3293, %v3289
  %v3295 = vmul.f32 1.0, %v3294
  %v3296 = vrcp.pop %v3098
  %v3297 = vmul.f32 %v3098, %v3296
  %v3298 = vsub.f32 1.0, %v3297
  %v3299 = vmul.f32 %v3296, %v3298
  %v3300 = vadd.f32 %v3296, %v3299
  %vm3301 = vweird.f32 %v3098
  %vm3302 = vweird.f32 %v3296
  %vm3303 = vmor %vm3301, %vm3302
  %v3304 = vsel %vm3303, %v3296, %v3300
  %v3305 = vand.u32 2147483647, %v3098
  %vm3306 = vcmp.eq.f32.partialorder %v3305, 8.507059e+37
  %v3307 = vand.u32 %v3098, 2147483648
  %v3308 = vor.u32 1.1754944e-38, %v3307
  %v3309 = vsel %vm3306, %v3308, %v3304
  %v3310 = vmul.f32 1.0, %v3309
  %v3311 = vrcp.pop %v3099
  %v3312 = vmul.f32 %v3099, %v3311
  %v3313 = vsub.f32 1.0, %v3312
  %v3314 = vmul.f32 %v3311, %v3313
  %v3315 = vadd.f32 %v3311, %v3314
  %vm3316 = vweird.f32 %v3099
  %vm3317 = vweird.f32 %v3311
  %vm3318 = vmor %vm3316, %vm3317
  %v3319 = vsel %vm3318, %v3311, %v3315
  %v3320 = vand.u32 2147483647, %v3099
  %vm3321 = vcmp.eq.f32.partialorder %v3320, 8.507059e+37
  %v3322 = vand.u32 %v3099, 2147483648
  %v3323 = vor.u32 1.1754944e-38, %v3322
  %v3324 = vsel %vm3321, %v3323, %v3319
  %v3325 = vmul.f32 1.0, %v3324
  %v3326 = vrcp.pop %v3100
  %v3327 = vmul.f32 %v3100, %v3326
  %v3328 = vsub.f32 1.0, %v3327
  %v3329 = vmul.f32 %v3326, %v3328
  %v3330 = vadd.f32 %v3326, %v3329
  %vm3331 = vweird.f32 %v3100
  %vm3332 = vweird.f32 %v3326
  %vm3333 = vmor %vm3331, %vm3332
  %v3334 = vsel %vm3333, %v3326, %v3330
  %v3335 = vand.u32 2147483647, %v3100
  %vm3336 = vcmp.eq.f32.partialorder %v3335, 8.507059e+37
  %v3337 = vand.u32 %v3100, 2147483648
  %v3338 = vor.u32 1.1754944e-38, %v3337
  %v3339 = vsel %vm3336, %v3338, %v3334
  %v3340 = vmul.f32 1.0, %v3339
  %v3341 = vmul.f32 %v2998, %v3115
  %v3342 = vmul.f32 %v3000, %v3130
  %v3343 = vmul.f32 %v3003, %v3145
  %v3344 = vmul.f32 %v3005, %v3160
  %v3345 = vmul.f32 %v3008, %v3175
  %v3346 = vmul.f32 %v3010, %v3190
  %v3347 = vmul.f32 %v3013, %v3205
  %v3348 = vmul.f32 %v3015, %v3220
  %v3349 = vmul.f32 %v3018, %v3235
  %v3350 = vmul.f32 %v3020, %v3250
  %v3351 = vmul.f32 %v3023, %v3265
  %v3352 = vmul.f32 %v3025, %v3280
  %v3353 = vmul.f32 %v3028, %v3295
  %v3354 = vmul.f32 %v3030, %v3310
  %v3355 = vmul.f32 %v3033, %v3325
  %v3356 = vmul.f32 %v3035, %v3340
  %s3357 = scalar_lea.vmem %s4, 768
  %v3358 = vld [vmem:[%s3357] sm:$0xff]
  %v3359 = vld [vmem:[%s3] sm:$0xff]
  %v3360 = vld [vmem:[%s3 + $0x8] sm:$0xff]
  %v3361 = vld [vmem:[%s3 + $0x10] sm:$0xff]
  %v3362 = vld [vmem:[%s3 + $0x18] sm:$0xff]
  %v3363 = vld [vmem:[%s3 + $0x20] sm:$0xff]
  %v3364 = vld [vmem:[%s3 + $0x28] sm:$0xff]
  %v3365 = vld [vmem:[%s3 + $0x30] sm:$0xff]
  %v3366 = vld [vmem:[%s3 + $0x38] sm:$0xff]
  %v3367 = vld [vmem:[%s3 + $0x40] sm:$0xff]
  %v3368 = vld [vmem:[%s3 + $0x48] sm:$0xff]
  %v3369 = vld [vmem:[%s3 + $0x50] sm:$0xff]
  %v3370 = vld [vmem:[%s3 + $0x58] sm:$0xff]
  %v3371 = vld [vmem:[%s3 + $0x60] sm:$0xff]
  %v3372 = vld [vmem:[%s3 + $0x68] sm:$0xff]
  %v3373 = vld [vmem:[%s3 + $0x70] sm:$0xff]
  %v3374 = vld [vmem:[%s3 + $0x78] sm:$0xff]
  %3376 = vset.pattern.permute.xlu0 0
  %3377 = vperm.xlu0 %3376, %v3359
  %v3378 = vpop.permute.xlu0 %3377
  %3381 = vset.pattern.permute.xlu0 0
  %3382 = vperm.xlu0 %3381, %v3360
  %v3383 = vpop.permute.xlu0 %3382
  %3386 = vset.pattern.permute.xlu0 0
  %3387 = vperm.xlu0 %3386, %v3361
  %v3388 = vpop.permute.xlu0 %3387
  %3391 = vset.pattern.permute.xlu0 0
  %3392 = vperm.xlu0 %3391, %v3362
  %v3393 = vpop.permute.xlu0 %3392
  %3396 = vset.pattern.permute.xlu0 0
  %3397 = vperm.xlu0 %3396, %v3363
  %v3398 = vpop.permute.xlu0 %3397
  %3401 = vset.pattern.permute.xlu0 0
  %3402 = vperm.xlu0 %3401, %v3364
  %v3403 = vpop.permute.xlu0 %3402
  %3406 = vset.pattern.permute.xlu0 0
  %3407 = vperm.xlu0 %3406, %v3365
  %v3408 = vpop.permute.xlu0 %3407
  %3411 = vset.pattern.permute.xlu0 0
  %3412 = vperm.xlu0 %3411, %v3366
  %v3413 = vpop.permute.xlu0 %3412
  %3416 = vset.pattern.permute.xlu0 0
  %3417 = vperm.xlu0 %3416, %v3367
  %v3418 = vpop.permute.xlu0 %3417
  %3421 = vset.pattern.permute.xlu0 0
  %3422 = vperm.xlu0 %3421, %v3368
  %v3423 = vpop.permute.xlu0 %3422
  %3426 = vset.pattern.permute.xlu0 0
  %3427 = vperm.xlu0 %3426, %v3369
  %v3428 = vpop.permute.xlu0 %3427
  %3431 = vset.pattern.permute.xlu0 0
  %3432 = vperm.xlu0 %3431, %v3370
  %v3433 = vpop.permute.xlu0 %3432
  %3436 = vset.pattern.permute.xlu0 0
  %3437 = vperm.xlu0 %3436, %v3371
  %v3438 = vpop.permute.xlu0 %3437
  %3441 = vset.pattern.permute.xlu0 0
  %3442 = vperm.xlu0 %3441, %v3372
  %v3443 = vpop.permute.xlu0 %3442
  %3446 = vset.pattern.permute.xlu0 0
  %3447 = vperm.xlu0 %3446, %v3373
  %v3448 = vpop.permute.xlu0 %3447
  %3451 = vset.pattern.permute.xlu0 0
  %3452 = vperm.xlu0 %3451, %v3374
  %v3453 = vpop.permute.xlu0 %3452
  %v3455 = vmul.f32 %v3378, %v3341
  %v3456 = vmul.f32 %v3383, %v3342
  %v3457 = vmul.f32 %v3388, %v3343
  %v3458 = vmul.f32 %v3393, %v3344
  %v3459 = vmul.f32 %v3398, %v3345
  %v3460 = vmul.f32 %v3403, %v3346
  %v3461 = vmul.f32 %v3408, %v3347
  %v3462 = vmul.f32 %v3413, %v3348
  %v3463 = vmul.f32 %v3418, %v3349
  %v3464 = vmul.f32 %v3423, %v3350
  %v3465 = vmul.f32 %v3428, %v3351
  %v3466 = vmul.f32 %v3433, %v3352
  %v3467 = vmul.f32 %v3438, %v3353
  %v3468 = vmul.f32 %v3443, %v3354
  %v3469 = vmul.f32 %v3448, %v3355
  %v3470 = vmul.f32 %v3453, %v3356
  %v3471 = vadd.f32 %v3455, %v3456
  %v3472 = vadd.f32 %v3471, %v3457
  %v3473 = vadd.f32 %v3472, %v3458
  %v3474 = vadd.f32 %v3473, %v3459
  %v3475 = vadd.f32 %v3474, %v3460
  %v3476 = vadd.f32 %v3475, %v3461
  %v3477 = vadd.f32 %v3476, %v3462
  %v3478 = vadd.f32 %v3477, %v3463
  %v3479 = vadd.f32 %v3478, %v3464
  %v3480 = vadd.f32 %v3479, %v3465
  %v3481 = vadd.f32 %v3480, %v3466
  %v3482 = vadd.f32 %v3481, %v3467
  %v3483 = vadd.f32 %v3482, %v3468
  %v3484 = vadd.f32 %v3483, %v3469
  %v3485 = vadd.f32 %v3484, %v3470
  %v3486 = vrot.slane %v3485, 4
  %v3487 = vadd.f32 %v3485, %v3486
  %v3488 = vrot.slane %v3487, 2
  %v3489 = vadd.f32 %v3487, %v3488
  %v3490 = vrot.slane %v3489, 1
  %v3491 = vadd.f32 %v3489, %v3490
  %3493 = vset.pattern.permute.xlu0 0
  %3494 = vperm.xlu0 %3493, %v3358
  %v3495 = vpop.permute.xlu0 %3494
  %v3497 = vadd.f32 %v3491, %v3495
  %3498 = vst [vmem:[%s5] sm:$0x1] %v3497
  // Predicated region
  $region22: #{neural_net_forward.1} parent=0 // pred_check
    _
  $region23: #{neural_net_forward.1} parent=0 // pred_check_branch
    %3500 = sbr.rel (0) target = $region25
  $region24: #{neural_net_forward.1} parent=0 // pred_region
    _
  $region25: #{neural_net_forward.1} parent=0 // pred_fallthru
    _
  // Predicated region
  $region26: #{neural_net_forward.1} parent=0 // pred_check
    _
  $region27: #{neural_net_forward.1} parent=0 // pred_check_branch
    %3502 = sbr.rel (0) target = $region29
  $region28: #{neural_net_forward.1} parent=0 // pred_region
    _
  $region29: #{neural_net_forward.1} parent=0 // pred_fallthru
    _

</llo_original>
